<compile_context>
chip_gen: v7x
topology: tpu7x:2x2x1
jax: 0.10.0
libtpu: 0.0.40
codegen_flags: <defaults>
</compile_context>

<pallas_src>
import functools

import jax
import jax.numpy as jnp
import numpy as np
from jax.experimental import pallas as pl
from jax.experimental.pallas import tpu as pltpu

_LANE = 128
_SUBLANE = 8


def _round_up(x, m):
    return (x + m - 1) // m * m


# ---------------------------------------------------------------------------
# Fused Pallas kernel: all LSTM layers + final FC, single invocation (no grid)
# ---------------------------------------------------------------------------
def lstm_fused_kernel(*refs, num_layers, seq_len, batch):
    """Refs (L = num_layers, all dims pre-padded: B -> mult of 8, H -> mult of 128):
      inputs : xp (T*B, 4H) layer-0 gate pre-activations (proj + combined bias),
               whh_all (L, H, 4H), [wih_rest (L-1, H, 4H), b_rest (L-1, 1, 4H) if L>1],
               fc_w (1, H), fc_b (1, 1)
      outputs: out (B, 1)
      scratch: [hseq (T*B, H), proj (T*B, 4H) if L>1]   (f32 VMEM)
    Gate column packing is (i, f, o, g).
    """
    if num_layers > 1:
        (xp_ref, whh_ref, wih_rest_ref, brest_ref, fcw_ref, fcb_ref,
         out_ref, hseq_sc, proj_sc) = refs
    else:
        (xp_ref, whh_ref, fcw_ref, fcb_ref, out_ref) = refs
        wih_rest_ref = brest_ref = hseq_sc = proj_sc = None

    T, B = seq_len, batch
    H4 = xp_ref.shape[1]
    H = H4 // 4
    unroll = min(T, 8)   # bounded unroll: scheduler visibility without code blowup

    def recurrence(read_proj, layer_idx, write_seq):
        """Serial time loop; h/c are loop-carried vreg values (no VMEM traffic)."""
        def step(t, carry):
            h_prev, c_prev = carry
            row = pl.multiple_of(t * B, B)          # sublane-aligned row offset
            gates = read_proj(row) + jnp.dot(
                h_prev, whh_ref[layer_idx], preferred_element_type=jnp.float32)
            # (i, f, o, g) packing: one sigmoid, one tanh; all slice boundaries
            # are multiples of 128 lanes.
            ifo = jax.nn.sigmoid(gates[:, :3 * H])
            g_g = jnp.tanh(gates[:, 3 * H:])
            i_g = ifo[:, 0 * H:1 * H]
            f_g = ifo[:, 1 * H:2 * H]
            o_g = ifo[:, 2 * H:3 * H]
            c_new = f_g * c_prev + i_g * g_g
            h_new = o_g * jnp.tanh(c_new)
            if write_seq:
                hseq_sc[pl.ds(row, B), :] = h_new
            return h_new, c_new

        init = (jnp.zeros((B, H), jnp.float32),
                jnp.zeros((B, H), jnp.float32))
        h_last, _ = jax.lax.fori_loop(0, T, step, init, unroll=unroll)
        return h_last

    # ---- layer 0: input projection hoisted outside (one big XLA GEMM) ----
    h_last = recurrence(lambda r: xp_ref[pl.ds(r, B), :], 0,
                        write_seq=(num_layers > 1))

    # ---- layers 1 .. L-1 ----
    for layer in range(1, num_layers):
        # Input projection for this layer: ONE (T*B, H) x (H, 4H) GEMM, off the
        # serial critical path.
        proj_sc[...] = (
            jnp.dot(hseq_sc[...], wih_rest_ref[layer - 1],
                    preferred_element_type=jnp.float32)
            + brest_ref[layer - 1])
        h_last = recurrence(lambda r: proj_sc[pl.ds(r, B), :], layer,
                            write_seq=(layer < num_layers - 1))

    # ---- fused final Linear(H, 1) on the last hidden state ----
    out_ref[...] = (jnp.sum(h_last * fcw_ref[...], axis=1, keepdims=True)
                    + fcb_ref[...])


# ---------------------------------------------------------------------------
# Parameter preparation (one-time): gate reorder (i,f,g,o)->(i,f,o,g),
# zero-pad H to a multiple of 128, transpose, combine biases, stack layers.
# ---------------------------------------------------------------------------
def prepare_params(params):
    lstm = params["lstm"]
    L = len(lstm)
    H = lstm[0][1].shape[1]            # w_hh: (4H, H)
    H_pad = _round_up(H, _LANE)

    def reorder_pad_gates(w):
        """(4H, ...) PyTorch gate order (i,f,g,o) -> (4H_pad, ...) order (i,f,o,g)."""
        i, f, g, o = w[0:H], w[H:2 * H], w[2 * H:3 * H], w[3 * H:4 * H]
        pad = [(0, H_pad - H)] + [(0, 0)] * (w.ndim - 1)
        return jnp.concatenate([jnp.pad(b, pad) for b in (i, f, o, g)], axis=0)

    def pad_cols(w):
        return jnp.pad(w, [(0, 0)] * (w.ndim - 1) + [(0, H_pad - H)])

    w_ih0, _, b_ih0, b_hh0 = lstm[0]
    prepared = {
        # (D, 4H_pad): layer-0 input projection weight
        "w_ih0_t": reorder_pad_gates(jnp.asarray(w_ih0, jnp.float32)).T,
        # (4H_pad,): combined layer-0 bias
        "b0": reorder_pad_gates(jnp.asarray(b_ih0 + b_hh0, jnp.float32)),
        # (L, H_pad, 4H_pad)
        "whh_all": jnp.stack([
            pad_cols(reorder_pad_gates(jnp.asarray(w_hh, jnp.float32))).T
            for (_, w_hh, _, _) in lstm]),
        "fc_w": pad_cols(jnp.asarray(params["fc_w"], jnp.float32)),     # (1, H_pad)
        "fc_b": jnp.asarray(params["fc_b"].reshape(1, 1), jnp.float32),  # (1, 1)
    }
    if L > 1:
        prepared["wih_rest"] = jnp.stack([
            pad_cols(reorder_pad_gates(jnp.asarray(w_ih, jnp.float32))).T
            for (w_ih, _, _, _) in lstm[1:]])                # (L-1, H_pad, 4H_pad)
        prepared["b_rest"] = jnp.stack([
            reorder_pad_gates(jnp.asarray(b_ih + b_hh, jnp.float32)
                              ).reshape(1, 4 * H_pad)
            for (_, _, b_ih, b_hh) in lstm[1:]])              # (L-1, 1, 4H_pad)
    return prepared


# ---------------------------------------------------------------------------
# Forward wrapper
# ---------------------------------------------------------------------------
def lstm_forward(x, prepared):
    """x: (B, T, input_size) -> (B, 1). Matches the torch LSTM module forward."""
    B, T, D = x.shape
    whh_all = prepared["whh_all"]
    L, H_pad, H4 = whh_all.shape
    B_pad = _round_up(max(B, _SUBLANE), _SUBLANE)

    # Pad batch to a sublane multiple; padded rows are independent garbage that
    # is sliced off at the end (no cross-batch mixing anywhere).
    x_pad = jnp.pad(x.astype(jnp.float32), ((0, B_pad - B), (0, 0), (0, 0)))

    # cuDNN-style hoist: one big (T*B_pad, D) x (D, 4H_pad) GEMM for the layer-0
    # input projection (+ combined bias), time-major, full f32 precision.
    xp = jnp.einsum("btd,dg->tbg", x_pad, prepared["w_ih0_t"],
                    precision=jax.lax.Precision.HIGHEST,
                    preferred_element_type=jnp.float32) + prepared["b0"]
    xp = xp.reshape(T * B_pad, H4)

    args = [xp, whh_all]
    if L > 1:
        args += [prepared["wih_rest"], prepared["b_rest"]]
    args += [prepared["fc_w"], prepared["fc_b"]]

    scratch = []
    if L > 1:
        scratch += [pltpu.VMEM((T * B_pad, H_pad), jnp.float32),  # hidden sequence
                    pltpu.VMEM((T * B_pad, H4), jnp.float32)]     # gate projections

    arg_bytes = sum(int(np.prod(a.shape)) * 4 for a in args)
    scratch_bytes = (T * B_pad * (H_pad + H4) * 4) if L > 1 else 0
    vmem_limit = int(min(2 * arg_bytes + scratch_bytes + (8 << 20), 64 << 20))

    out_pad = pl.pallas_call(
        functools.partial(lstm_fused_kernel,
                          num_layers=L, seq_len=T, batch=B_pad),
        out_shape=jax.ShapeDtypeStruct((B_pad, 1), jnp.float32),
        in_specs=[pl.BlockSpec(memory_space=pltpu.MemorySpace.VMEM)] * len(args),
        out_specs=pl.BlockSpec(memory_space=pltpu.MemorySpace.VMEM),
        scratch_shapes=scratch,
        compiler_params=pltpu.CompilerParams(vmem_limit_bytes=vmem_limit),
    )(*args)
    return out_pad[:B]


# ---------------------------------------------------------------------------
# Deterministic parameter init (same shapes / init range as nn.LSTM + nn.Linear)
# ---------------------------------------------------------------------------
def init_params(key, input_size, hidden_size, num_layers):
    k = 1.0 / np.sqrt(hidden_size)
    params = {"lstm": []}
    for layer in range(num_layers):
        d_in = input_size if layer == 0 else hidden_size
        key, k1, k2, k3, k4 = jax.random.split(key, 5)
        w_ih = jax.random.uniform(k1, (4 * hidden_size, d_in), jnp.float32, -k, k)
        w_hh = jax.random.uniform(k2, (4 * hidden_size, hidden_size), jnp.float32, -k, k)
        b_ih = jax.random.uniform(k3, (4 * hidden_size,), jnp.float32, -k, k)
        b_hh = jax.random.uniform(k4, (4 * hidden_size,), jnp.float32, -k, k)
        params["lstm"].append((w_ih, w_hh, b_ih, b_hh))
    key, k1, k2 = jax.random.split(key, 3)
    params["fc_w"] = jax.random.uniform(k1, (1, hidden_size), jnp.float32, -k, k)
    params["fc_b"] = jax.random.uniform(k2, (1,), jnp.float32, -k, k)
    return params


# ---------------------------------------------------------------------------
# Pure-JAX reference (for correctness check)
# ---------------------------------------------------------------------------
def lstm_forward_ref(x, params):
    h_seq = jnp.asarray(x, jnp.float32)  # (B, T, D)
    B = x.shape[0]
    for (w_ih, w_hh, b_ih, b_hh) in params["lstm"]:
        H = w_hh.shape[1]
        h0 = jnp.zeros((B, H), jnp.float32)
        c0 = jnp.zeros((B, H), jnp.float32)

        def step(carry, x_t):
            h, c = carry
            gates = x_t @ w_ih.T + h @ w_hh.T + b_ih + b_hh
            i = jax.nn.sigmoid(gates[:, 0 * H:1 * H])
            f = jax.nn.sigmoid(gates[:, 1 * H:2 * H])
            g = jnp.tanh(gates[:, 2 * H:3 * H])
            o = jax.nn.sigmoid(gates[:, 3 * H:4 * H])
            c = f * c + i * g
            h = o * jnp.tanh(c)
            return (h, c), h

        _, hs = jax.lax.scan(step, (h0, c0), jnp.transpose(h_seq, (1, 0, 2)))
        h_seq = jnp.transpose(hs, (1, 0, 2))
    return h_seq[:, -1, :] @ params["fc_w"].T + params["fc_b"]


# ---------------------------------------------------------------------------
if __name__ == "__main__":
    B, T = 2, 8
    input_size, hidden_size, num_layers = 16, 32, 2

    key = jax.random.PRNGKey(0)
    key, xk, pk = jax.random.split(key, 3)
    x = jax.random.normal(xk, (B, T, input_size), jnp.float32)
    params = init_params(pk, input_size, hidden_size, num_layers)
    prepared = prepare_params(params)

    fwd = jax.jit(lstm_forward)
    out = jax.block_until_ready(fwd(x, prepared))

    ref = jax.block_until_ready(lstm_forward_ref(x, params))
    np.testing.assert_allclose(np.asarray(out), np.asarray(ref), rtol=1e-4, atol=1e-4)
    assert out.shape == (B, 1)

    print("KERNEL_OK")
</pallas_src>

<mosaic_0001>
module attributes {stable_mosaic.version = 11 : i64} {
  func.func @lstm_fused_kernel(%arg0: memref<64x512xf32, #tpu.memory_space<vmem>>, %arg1: memref<2x128x512xf32, #tpu.memory_space<vmem>>, %arg2: memref<1x128x512xf32, #tpu.memory_space<vmem>>, %arg3: memref<1x1x512xf32, #tpu.memory_space<vmem>>, %arg4: memref<1x128xf32, #tpu.memory_space<vmem>>, %arg5: memref<1x1xf32, #tpu.memory_space<vmem>>, %arg6: memref<8x1xf32, #tpu.memory_space<vmem>>, %arg7: memref<64x128xf32, #tpu.memory_space<vmem>>, %arg8: memref<64x512xf32, #tpu.memory_space<vmem>>) attributes {dimension_semantics = [], scalar_prefetch = 0 : i64, scratch_operands = 2 : i64, tpu.core_type = #tpu.core_type<tc>} {
    %cst = arith.constant 0.000000e+00 : f32
    %0 = vector.broadcast %cst : f32 to vector<8x128xf32>
    %cst_0 = arith.constant 0.000000e+00 : f32
    %1 = vector.broadcast %cst_0 : f32 to vector<8x128xf32>
    %c0_i32 = arith.constant 0 : i32
    %c8_i32 = arith.constant 8 : i32
    %2 = arith.muli %c0_i32, %c8_i32 : i32
    %3 = tpu.assume_multiple %2, 8 : i32
    %4 = arith.index_cast %3 : i32 to index
    %c0 = arith.constant 0 : index
    %5 = vector.load %arg0[%4, %c0] : memref<64x512xf32, #tpu.memory_space<vmem>>, vector<8x512xf32>
    %c0_1 = arith.constant 0 : index
    %c0_2 = arith.constant 0 : index
    %c0_3 = arith.constant 0 : index
    %6 = vector.load %arg1[%c0_1, %c0_2, %c0_3] : memref<2x128x512xf32, #tpu.memory_space<vmem>>, vector<1x128x512xf32>
    %7 = vector.shape_cast %6 : vector<1x128x512xf32> to vector<128x512xf32>
    %cst_4 = arith.constant dense<0.000000e+00> : vector<8x512xf32>
    %8 = tpu.matmul %0, %7, %cst_4 {dimension_numbers = #tpu.dot_dimension_numbers<[1], [0], [0], [1], [0, 0, 1, 1], [], []>} : vector<8x128xf32>, vector<128x512xf32>, vector<8x512xf32> -> vector<8x512xf32>
    %9 = arith.addf %5, %8 : vector<8x512xf32>
    %10 = vector.extract_strided_slice %9 {offsets = [0, 0], sizes = [8, 384], strides = [1, 1]} : vector<8x512xf32> to vector<8x384xf32>
    %11 = arith.negf %10 : vector<8x384xf32>
    %12 = math.exp %11 : vector<8x384xf32>
    %cst_5 = arith.constant 1.000000e+00 : f32
    %13 = vector.broadcast %cst_5 : f32 to vector<8x384xf32>
    %14 = arith.addf %13, %12 : vector<8x384xf32>
    %15 = arith.divf %13, %14 : vector<8x384xf32>
    %16 = vector.extract_strided_slice %9 {offsets = [0, 384], sizes = [8, 128], strides = [1, 1]} : vector<8x512xf32> to vector<8x128xf32>
    %17 = math.tanh %16 : vector<8x128xf32>
    %18 = vector.extract_strided_slice %15 {offsets = [0, 0], sizes = [8, 128], strides = [1, 1]} : vector<8x384xf32> to vector<8x128xf32>
    %19 = vector.extract_strided_slice %15 {offsets = [0, 128], sizes = [8, 128], strides = [1, 1]} : vector<8x384xf32> to vector<8x128xf32>
    %20 = vector.extract_strided_slice %15 {offsets = [0, 256], sizes = [8, 128], strides = [1, 1]} : vector<8x384xf32> to vector<8x128xf32>
    %21 = arith.mulf %19, %1 : vector<8x128xf32>
    %22 = arith.mulf %18, %17 : vector<8x128xf32>
    %23 = arith.addf %21, %22 : vector<8x128xf32>
    %24 = math.tanh %23 : vector<8x128xf32>
    %25 = arith.mulf %20, %24 : vector<8x128xf32>
    %26 = arith.index_cast %3 : i32 to index
    %c0_6 = arith.constant 0 : index
    %27 = vector.load %arg7[%26, %c0_6] : memref<64x128xf32, #tpu.memory_space<vmem>>, vector<8x128xf32>
    tpu.vector_store %arg7[%26, %c0_6], %25 {strides = array<i32>} : memref<64x128xf32, #tpu.memory_space<vmem>>, vector<8x128xf32>,
    %c1_i32 = arith.constant 1 : i32
    %c8_i32_7 = arith.constant 8 : i32
    %28 = arith.muli %c1_i32, %c8_i32_7 : i32
    %29 = tpu.assume_multiple %28, 8 : i32
    %30 = arith.index_cast %29 : i32 to index
    %c0_8 = arith.constant 0 : index
    %31 = vector.load %arg0[%30, %c0_8] : memref<64x512xf32, #tpu.memory_space<vmem>>, vector<8x512xf32>
    %c0_9 = arith.constant 0 : index
    %c0_10 = arith.constant 0 : index
    %c0_11 = arith.constant 0 : index
    %32 = vector.load %arg1[%c0_9, %c0_10, %c0_11] : memref<2x128x512xf32, #tpu.memory_space<vmem>>, vector<1x128x512xf32>
    %33 = vector.shape_cast %32 : vector<1x128x512xf32> to vector<128x512xf32>
    %cst_12 = arith.constant dense<0.000000e+00> : vector<8x512xf32>
    %34 = tpu.matmul %25, %33, %cst_12 {dimension_numbers = #tpu.dot_dimension_numbers<[1], [0], [0], [1], [0, 0, 1, 1], [], []>} : vector<8x128xf32>, vector<128x512xf32>, vector<8x512xf32> -> vector<8x512xf32>
    %35 = arith.addf %31, %34 : vector<8x512xf32>
    %36 = vector.extract_strided_slice %35 {offsets = [0, 0], sizes = [8, 384], strides = [1, 1]} : vector<8x512xf32> to vector<8x384xf32>
    %37 = arith.negf %36 : vector<8x384xf32>
    %38 = math.exp %37 : vector<8x384xf32>
    %cst_13 = arith.constant 1.000000e+00 : f32
    %39 = vector.broadcast %cst_13 : f32 to vector<8x384xf32>
    %40 = arith.addf %39, %38 : vector<8x384xf32>
    %41 = arith.divf %39, %40 : vector<8x384xf32>
    %42 = vector.extract_strided_slice %35 {offsets = [0, 384], sizes = [8, 128], strides = [1, 1]} : vector<8x512xf32> to vector<8x128xf32>
    %43 = math.tanh %42 : vector<8x128xf32>
    %44 = vector.extract_strided_slice %41 {offsets = [0, 0], sizes = [8, 128], strides = [1, 1]} : vector<8x384xf32> to vector<8x128xf32>
    %45 = vector.extract_strided_slice %41 {offsets = [0, 128], sizes = [8, 128], strides = [1, 1]} : vector<8x384xf32> to vector<8x128xf32>
    %46 = vector.extract_strided_slice %41 {offsets = [0, 256], sizes = [8, 128], strides = [1, 1]} : vector<8x384xf32> to vector<8x128xf32>
    %47 = arith.mulf %45, %23 : vector<8x128xf32>
    %48 = arith.mulf %44, %43 : vector<8x128xf32>
    %49 = arith.addf %47, %48 : vector<8x128xf32>
    %50 = math.tanh %49 : vector<8x128xf32>
    %51 = arith.mulf %46, %50 : vector<8x128xf32>
    %52 = arith.index_cast %29 : i32 to index
    %c0_14 = arith.constant 0 : index
    %53 = vector.load %arg7[%52, %c0_14] : memref<64x128xf32, #tpu.memory_space<vmem>>, vector<8x128xf32>
    tpu.vector_store %arg7[%52, %c0_14], %51 {strides = array<i32>} : memref<64x128xf32, #tpu.memory_space<vmem>>, vector<8x128xf32>,
    %c2_i32 = arith.constant 2 : i32
    %c8_i32_15 = arith.constant 8 : i32
    %54 = arith.muli %c2_i32, %c8_i32_15 : i32
    %55 = tpu.assume_multiple %54, 8 : i32
    %56 = arith.index_cast %55 : i32 to index
    %c0_16 = arith.constant 0 : index
    %57 = vector.load %arg0[%56, %c0_16] : memref<64x512xf32, #tpu.memory_space<vmem>>, vector<8x512xf32>
    %c0_17 = arith.constant 0 : index
    %c0_18 = arith.constant 0 : index
    %c0_19 = arith.constant 0 : index
    %58 = vector.load %arg1[%c0_17, %c0_18, %c0_19] : memref<2x128x512xf32, #tpu.memory_space<vmem>>, vector<1x128x512xf32>
    %59 = vector.shape_cast %58 : vector<1x128x512xf32> to vector<128x512xf32>
    %cst_20 = arith.constant dense<0.000000e+00> : vector<8x512xf32>
    %60 = tpu.matmul %51, %59, %cst_20 {dimension_numbers = #tpu.dot_dimension_numbers<[1], [0], [0], [1], [0, 0, 1, 1], [], []>} : vector<8x128xf32>, vector<128x512xf32>, vector<8x512xf32> -> vector<8x512xf32>
    %61 = arith.addf %57, %60 : vector<8x512xf32>
    %62 = vector.extract_strided_slice %61 {offsets = [0, 0], sizes = [8, 384], strides = [1, 1]} : vector<8x512xf32> to vector<8x384xf32>
    %63 = arith.negf %62 : vector<8x384xf32>
    %64 = math.exp %63 : vector<8x384xf32>
    %cst_21 = arith.constant 1.000000e+00 : f32
    %65 = vector.broadcast %cst_21 : f32 to vector<8x384xf32>
    %66 = arith.addf %65, %64 : vector<8x384xf32>
    %67 = arith.divf %65, %66 : vector<8x384xf32>
    %68 = vector.extract_strided_slice %61 {offsets = [0, 384], sizes = [8, 128], strides = [1, 1]} : vector<8x512xf32> to vector<8x128xf32>
    %69 = math.tanh %68 : vector<8x128xf32>
    %70 = vector.extract_strided_slice %67 {offsets = [0, 0], sizes = [8, 128], strides = [1, 1]} : vector<8x384xf32> to vector<8x128xf32>
    %71 = vector.extract_strided_slice %67 {offsets = [0, 128], sizes = [8, 128], strides = [1, 1]} : vector<8x384xf32> to vector<8x128xf32>
    %72 = vector.extract_strided_slice %67 {offsets = [0, 256], sizes = [8, 128], strides = [1, 1]} : vector<8x384xf32> to vector<8x128xf32>
    %73 = arith.mulf %71, %49 : vector<8x128xf32>
    %74 = arith.mulf %70, %69 : vector<8x128xf32>
    %75 = arith.addf %73, %74 : vector<8x128xf32>
    %76 = math.tanh %75 : vector<8x128xf32>
    %77 = arith.mulf %72, %76 : vector<8x128xf32>
    %78 = arith.index_cast %55 : i32 to index
    %c0_22 = arith.constant 0 : index
    %79 = vector.load %arg7[%78, %c0_22] : memref<64x128xf32, #tpu.memory_space<vmem>>, vector<8x128xf32>
    tpu.vector_store %arg7[%78, %c0_22], %77 {strides = array<i32>} : memref<64x128xf32, #tpu.memory_space<vmem>>, vector<8x128xf32>,
    %c3_i32 = arith.constant 3 : i32
    %c8_i32_23 = arith.constant 8 : i32
    %80 = arith.muli %c3_i32, %c8_i32_23 : i32
    %81 = tpu.assume_multiple %80, 8 : i32
    %82 = arith.index_cast %81 : i32 to index
    %c0_24 = arith.constant 0 : index
    %83 = vector.load %arg0[%82, %c0_24] : memref<64x512xf32, #tpu.memory_space<vmem>>, vector<8x512xf32>
    %c0_25 = arith.constant 0 : index
    %c0_26 = arith.constant 0 : index
    %c0_27 = arith.constant 0 : index
    %84 = vector.load %arg1[%c0_25, %c0_26, %c0_27] : memref<2x128x512xf32, #tpu.memory_space<vmem>>, vector<1x128x512xf32>
    %85 = vector.shape_cast %84 : vector<1x128x512xf32> to vector<128x512xf32>
    %cst_28 = arith.constant dense<0.000000e+00> : vector<8x512xf32>
    %86 = tpu.matmul %77, %85, %cst_28 {dimension_numbers = #tpu.dot_dimension_numbers<[1], [0], [0], [1], [0, 0, 1, 1], [], []>} : vector<8x128xf32>, vector<128x512xf32>, vector<8x512xf32> -> vector<8x512xf32>
    %87 = arith.addf %83, %86 : vector<8x512xf32>
    %88 = vector.extract_strided_slice %87 {offsets = [0, 0], sizes = [8, 384], strides = [1, 1]} : vector<8x512xf32> to vector<8x384xf32>
    %89 = arith.negf %88 : vector<8x384xf32>
    %90 = math.exp %89 : vector<8x384xf32>
    %cst_29 = arith.constant 1.000000e+00 : f32
    %91 = vector.broadcast %cst_29 : f32 to vector<8x384xf32>
    %92 = arith.addf %91, %90 : vector<8x384xf32>
    %93 = arith.divf %91, %92 : vector<8x384xf32>
    %94 = vector.extract_strided_slice %87 {offsets = [0, 384], sizes = [8, 128], strides = [1, 1]} : vector<8x512xf32> to vector<8x128xf32>
    %95 = math.tanh %94 : vector<8x128xf32>
    %96 = vector.extract_strided_slice %93 {offsets = [0, 0], sizes = [8, 128], strides = [1, 1]} : vector<8x384xf32> to vector<8x128xf32>
    %97 = vector.extract_strided_slice %93 {offsets = [0, 128], sizes = [8, 128], strides = [1, 1]} : vector<8x384xf32> to vector<8x128xf32>
    %98 = vector.extract_strided_slice %93 {offsets = [0, 256], sizes = [8, 128], strides = [1, 1]} : vector<8x384xf32> to vector<8x128xf32>
    %99 = arith.mulf %97, %75 : vector<8x128xf32>
    %100 = arith.mulf %96, %95 : vector<8x128xf32>
    %101 = arith.addf %99, %100 : vector<8x128xf32>
    %102 = math.tanh %101 : vector<8x128xf32>
    %103 = arith.mulf %98, %102 : vector<8x128xf32>
    %104 = arith.index_cast %81 : i32 to index
    %c0_30 = arith.constant 0 : index
    %105 = vector.load %arg7[%104, %c0_30] : memref<64x128xf32, #tpu.memory_space<vmem>>, vector<8x128xf32>
    tpu.vector_store %arg7[%104, %c0_30], %103 {strides = array<i32>} : memref<64x128xf32, #tpu.memory_space<vmem>>, vector<8x128xf32>,
    %c4_i32 = arith.constant 4 : i32
    %c8_i32_31 = arith.constant 8 : i32
    %106 = arith.muli %c4_i32, %c8_i32_31 : i32
    %107 = tpu.assume_multiple %106, 8 : i32
    %108 = arith.index_cast %107 : i32 to index
    %c0_32 = arith.constant 0 : index
    %109 = vector.load %arg0[%108, %c0_32] : memref<64x512xf32, #tpu.memory_space<vmem>>, vector<8x512xf32>
    %c0_33 = arith.constant 0 : index
    %c0_34 = arith.constant 0 : index
    %c0_35 = arith.constant 0 : index
    %110 = vector.load %arg1[%c0_33, %c0_34, %c0_35] : memref<2x128x512xf32, #tpu.memory_space<vmem>>, vector<1x128x512xf32>
    %111 = vector.shape_cast %110 : vector<1x128x512xf32> to vector<128x512xf32>
    %cst_36 = arith.constant dense<0.000000e+00> : vector<8x512xf32>
    %112 = tpu.matmul %103, %111, %cst_36 {dimension_numbers = #tpu.dot_dimension_numbers<[1], [0], [0], [1], [0, 0, 1, 1], [], []>} : vector<8x128xf32>, vector<128x512xf32>, vector<8x512xf32> -> vector<8x512xf32>
    %113 = arith.addf %109, %112 : vector<8x512xf32>
    %114 = vector.extract_strided_slice %113 {offsets = [0, 0], sizes = [8, 384], strides = [1, 1]} : vector<8x512xf32> to vector<8x384xf32>
    %115 = arith.negf %114 : vector<8x384xf32>
    %116 = math.exp %115 : vector<8x384xf32>
    %cst_37 = arith.constant 1.000000e+00 : f32
    %117 = vector.broadcast %cst_37 : f32 to vector<8x384xf32>
    %118 = arith.addf %117, %116 : vector<8x384xf32>
    %119 = arith.divf %117, %118 : vector<8x384xf32>
    %120 = vector.extract_strided_slice %113 {offsets = [0, 384], sizes = [8, 128], strides = [1, 1]} : vector<8x512xf32> to vector<8x128xf32>
    %121 = math.tanh %120 : vector<8x128xf32>
    %122 = vector.extract_strided_slice %119 {offsets = [0, 0], sizes = [8, 128], strides = [1, 1]} : vector<8x384xf32> to vector<8x128xf32>
    %123 = vector.extract_strided_slice %119 {offsets = [0, 128], sizes = [8, 128], strides = [1, 1]} : vector<8x384xf32> to vector<8x128xf32>
    %124 = vector.extract_strided_slice %119 {offsets = [0, 256], sizes = [8, 128], strides = [1, 1]} : vector<8x384xf32> to vector<8x128xf32>
    %125 = arith.mulf %123, %101 : vector<8x128xf32>
    %126 = arith.mulf %122, %121 : vector<8x128xf32>
    %127 = arith.addf %125, %126 : vector<8x128xf32>
    %128 = math.tanh %127 : vector<8x128xf32>
    %129 = arith.mulf %124, %128 : vector<8x128xf32>
    %130 = arith.index_cast %107 : i32 to index
    %c0_38 = arith.constant 0 : index
    %131 = vector.load %arg7[%130, %c0_38] : memref<64x128xf32, #tpu.memory_space<vmem>>, vector<8x128xf32>
    tpu.vector_store %arg7[%130, %c0_38], %129 {strides = array<i32>} : memref<64x128xf32, #tpu.memory_space<vmem>>, vector<8x128xf32>,
    %c5_i32 = arith.constant 5 : i32
    %c8_i32_39 = arith.constant 8 : i32
    %132 = arith.muli %c5_i32, %c8_i32_39 : i32
    %133 = tpu.assume_multiple %132, 8 : i32
    %134 = arith.index_cast %133 : i32 to index
    %c0_40 = arith.constant 0 : index
    %135 = vector.load %arg0[%134, %c0_40] : memref<64x512xf32, #tpu.memory_space<vmem>>, vector<8x512xf32>
    %c0_41 = arith.constant 0 : index
    %c0_42 = arith.constant 0 : index
    %c0_43 = arith.constant 0 : index
    %136 = vector.load %arg1[%c0_41, %c0_42, %c0_43] : memref<2x128x512xf32, #tpu.memory_space<vmem>>, vector<1x128x512xf32>
    %137 = vector.shape_cast %136 : vector<1x128x512xf32> to vector<128x512xf32>
    %cst_44 = arith.constant dense<0.000000e+00> : vector<8x512xf32>
    %138 = tpu.matmul %129, %137, %cst_44 {dimension_numbers = #tpu.dot_dimension_numbers<[1], [0], [0], [1], [0, 0, 1, 1], [], []>} : vector<8x128xf32>, vector<128x512xf32>, vector<8x512xf32> -> vector<8x512xf32>
    %139 = arith.addf %135, %138 : vector<8x512xf32>
    %140 = vector.extract_strided_slice %139 {offsets = [0, 0], sizes = [8, 384], strides = [1, 1]} : vector<8x512xf32> to vector<8x384xf32>
    %141 = arith.negf %140 : vector<8x384xf32>
    %142 = math.exp %141 : vector<8x384xf32>
    %cst_45 = arith.constant 1.000000e+00 : f32
    %143 = vector.broadcast %cst_45 : f32 to vector<8x384xf32>
    %144 = arith.addf %143, %142 : vector<8x384xf32>
    %145 = arith.divf %143, %144 : vector<8x384xf32>
    %146 = vector.extract_strided_slice %139 {offsets = [0, 384], sizes = [8, 128], strides = [1, 1]} : vector<8x512xf32> to vector<8x128xf32>
    %147 = math.tanh %146 : vector<8x128xf32>
    %148 = vector.extract_strided_slice %145 {offsets = [0, 0], sizes = [8, 128], strides = [1, 1]} : vector<8x384xf32> to vector<8x128xf32>
    %149 = vector.extract_strided_slice %145 {offsets = [0, 128], sizes = [8, 128], strides = [1, 1]} : vector<8x384xf32> to vector<8x128xf32>
    %150 = vector.extract_strided_slice %145 {offsets = [0, 256], sizes = [8, 128], strides = [1, 1]} : vector<8x384xf32> to vector<8x128xf32>
    %151 = arith.mulf %149, %127 : vector<8x128xf32>
    %152 = arith.mulf %148, %147 : vector<8x128xf32>
    %153 = arith.addf %151, %152 : vector<8x128xf32>
    %154 = math.tanh %153 : vector<8x128xf32>
    %155 = arith.mulf %150, %154 : vector<8x128xf32>
    %156 = arith.index_cast %133 : i32 to index
    %c0_46 = arith.constant 0 : index
    %157 = vector.load %arg7[%156, %c0_46] : memref<64x128xf32, #tpu.memory_space<vmem>>, vector<8x128xf32>
    tpu.vector_store %arg7[%156, %c0_46], %155 {strides = array<i32>} : memref<64x128xf32, #tpu.memory_space<vmem>>, vector<8x128xf32>,
    %c6_i32 = arith.constant 6 : i32
    %c8_i32_47 = arith.constant 8 : i32
    %158 = arith.muli %c6_i32, %c8_i32_47 : i32
    %159 = tpu.assume_multiple %158, 8 : i32
    %160 = arith.index_cast %159 : i32 to index
    %c0_48 = arith.constant 0 : index
    %161 = vector.load %arg0[%160, %c0_48] : memref<64x512xf32, #tpu.memory_space<vmem>>, vector<8x512xf32>
    %c0_49 = arith.constant 0 : index
    %c0_50 = arith.constant 0 : index
    %c0_51 = arith.constant 0 : index
    %162 = vector.load %arg1[%c0_49, %c0_50, %c0_51] : memref<2x128x512xf32, #tpu.memory_space<vmem>>, vector<1x128x512xf32>
    %163 = vector.shape_cast %162 : vector<1x128x512xf32> to vector<128x512xf32>
    %cst_52 = arith.constant dense<0.000000e+00> : vector<8x512xf32>
    %164 = tpu.matmul %155, %163, %cst_52 {dimension_numbers = #tpu.dot_dimension_numbers<[1], [0], [0], [1], [0, 0, 1, 1], [], []>} : vector<8x128xf32>, vector<128x512xf32>, vector<8x512xf32> -> vector<8x512xf32>
    %165 = arith.addf %161, %164 : vector<8x512xf32>
    %166 = vector.extract_strided_slice %165 {offsets = [0, 0], sizes = [8, 384], strides = [1, 1]} : vector<8x512xf32> to vector<8x384xf32>
    %167 = arith.negf %166 : vector<8x384xf32>
    %168 = math.exp %167 : vector<8x384xf32>
    %cst_53 = arith.constant 1.000000e+00 : f32
    %169 = vector.broadcast %cst_53 : f32 to vector<8x384xf32>
    %170 = arith.addf %169, %168 : vector<8x384xf32>
    %171 = arith.divf %169, %170 : vector<8x384xf32>
    %172 = vector.extract_strided_slice %165 {offsets = [0, 384], sizes = [8, 128], strides = [1, 1]} : vector<8x512xf32> to vector<8x128xf32>
    %173 = math.tanh %172 : vector<8x128xf32>
    %174 = vector.extract_strided_slice %171 {offsets = [0, 0], sizes = [8, 128], strides = [1, 1]} : vector<8x384xf32> to vector<8x128xf32>
    %175 = vector.extract_strided_slice %171 {offsets = [0, 128], sizes = [8, 128], strides = [1, 1]} : vector<8x384xf32> to vector<8x128xf32>
    %176 = vector.extract_strided_slice %171 {offsets = [0, 256], sizes = [8, 128], strides = [1, 1]} : vector<8x384xf32> to vector<8x128xf32>
    %177 = arith.mulf %175, %153 : vector<8x128xf32>
    %178 = arith.mulf %174, %173 : vector<8x128xf32>
    %179 = arith.addf %177, %178 : vector<8x128xf32>
    %180 = math.tanh %179 : vector<8x128xf32>
    %181 = arith.mulf %176, %180 : vector<8x128xf32>
    %182 = arith.index_cast %159 : i32 to index
    %c0_54 = arith.constant 0 : index
    %183 = vector.load %arg7[%182, %c0_54] : memref<64x128xf32, #tpu.memory_space<vmem>>, vector<8x128xf32>
    tpu.vector_store %arg7[%182, %c0_54], %181 {strides = array<i32>} : memref<64x128xf32, #tpu.memory_space<vmem>>, vector<8x128xf32>,
    %c7_i32 = arith.constant 7 : i32
    %c8_i32_55 = arith.constant 8 : i32
    %184 = arith.muli %c7_i32, %c8_i32_55 : i32
    %185 = tpu.assume_multiple %184, 8 : i32
    %186 = arith.index_cast %185 : i32 to index
    %c0_56 = arith.constant 0 : index
    %187 = vector.load %arg0[%186, %c0_56] : memref<64x512xf32, #tpu.memory_space<vmem>>, vector<8x512xf32>
    %c0_57 = arith.constant 0 : index
    %c0_58 = arith.constant 0 : index
    %c0_59 = arith.constant 0 : index
    %188 = vector.load %arg1[%c0_57, %c0_58, %c0_59] : memref<2x128x512xf32, #tpu.memory_space<vmem>>, vector<1x128x512xf32>
    %189 = vector.shape_cast %188 : vector<1x128x512xf32> to vector<128x512xf32>
    %cst_60 = arith.constant dense<0.000000e+00> : vector<8x512xf32>
    %190 = tpu.matmul %181, %189, %cst_60 {dimension_numbers = #tpu.dot_dimension_numbers<[1], [0], [0], [1], [0, 0, 1, 1], [], []>} : vector<8x128xf32>, vector<128x512xf32>, vector<8x512xf32> -> vector<8x512xf32>
    %191 = arith.addf %187, %190 : vector<8x512xf32>
    %192 = vector.extract_strided_slice %191 {offsets = [0, 0], sizes = [8, 384], strides = [1, 1]} : vector<8x512xf32> to vector<8x384xf32>
    %193 = arith.negf %192 : vector<8x384xf32>
    %194 = math.exp %193 : vector<8x384xf32>
    %cst_61 = arith.constant 1.000000e+00 : f32
    %195 = vector.broadcast %cst_61 : f32 to vector<8x384xf32>
    %196 = arith.addf %195, %194 : vector<8x384xf32>
    %197 = arith.divf %195, %196 : vector<8x384xf32>
    %198 = vector.extract_strided_slice %191 {offsets = [0, 384], sizes = [8, 128], strides = [1, 1]} : vector<8x512xf32> to vector<8x128xf32>
    %199 = math.tanh %198 : vector<8x128xf32>
    %200 = vector.extract_strided_slice %197 {offsets = [0, 0], sizes = [8, 128], strides = [1, 1]} : vector<8x384xf32> to vector<8x128xf32>
    %201 = vector.extract_strided_slice %197 {offsets = [0, 128], sizes = [8, 128], strides = [1, 1]} : vector<8x384xf32> to vector<8x128xf32>
    %202 = vector.extract_strided_slice %197 {offsets = [0, 256], sizes = [8, 128], strides = [1, 1]} : vector<8x384xf32> to vector<8x128xf32>
    %203 = arith.mulf %201, %179 : vector<8x128xf32>
    %204 = arith.mulf %200, %199 : vector<8x128xf32>
    %205 = arith.addf %203, %204 : vector<8x128xf32>
    %206 = math.tanh %205 : vector<8x128xf32>
    %207 = arith.mulf %202, %206 : vector<8x128xf32>
    %208 = arith.index_cast %185 : i32 to index
    %c0_62 = arith.constant 0 : index
    %209 = vector.load %arg7[%208, %c0_62] : memref<64x128xf32, #tpu.memory_space<vmem>>, vector<8x128xf32>
    tpu.vector_store %arg7[%208, %c0_62], %207 {strides = array<i32>} : memref<64x128xf32, #tpu.memory_space<vmem>>, vector<8x128xf32>,
    %c8_i32_63 = arith.constant 8 : i32
    %c0_64 = arith.constant 0 : index
    %c0_65 = arith.constant 0 : index
    %210 = vector.load %arg7[%c0_64, %c0_65] : memref<64x128xf32, #tpu.memory_space<vmem>>, vector<64x128xf32>
    %c0_66 = arith.constant 0 : index
    %c0_67 = arith.constant 0 : index
    %c0_68 = arith.constant 0 : index
    %211 = vector.load %arg2[%c0_66, %c0_67, %c0_68] : memref<1x128x512xf32, #tpu.memory_space<vmem>>, vector<1x128x512xf32>
    %212 = vector.shape_cast %211 : vector<1x128x512xf32> to vector<128x512xf32>
    %cst_69 = arith.constant dense<0.000000e+00> : vector<64x512xf32>
    %213 = tpu.matmul %210, %212, %cst_69 {dimension_numbers = #tpu.dot_dimension_numbers<[1], [0], [0], [1], [0, 0, 1, 1], [], []>} : vector<64x128xf32>, vector<128x512xf32>, vector<64x512xf32> -> vector<64x512xf32>
    %c0_70 = arith.constant 0 : index
    %c0_71 = arith.constant 0 : index
    %c0_72 = arith.constant 0 : index
    %214 = vector.load %arg3[%c0_70, %c0_71, %c0_72] : memref<1x1x512xf32, #tpu.memory_space<vmem>>, vector<1x1x512xf32>
    %215 = vector.shape_cast %214 : vector<1x1x512xf32> to vector<1x512xf32>
    %216 = vector.broadcast %215 : vector<1x512xf32> to vector<64x512xf32>
    %217 = arith.addf %213, %216 : vector<64x512xf32>
    %c0_73 = arith.constant 0 : index
    %c0_74 = arith.constant 0 : index
    %218 = vector.load %arg8[%c0_73, %c0_74] : memref<64x512xf32, #tpu.memory_space<vmem>>, vector<64x512xf32>
    tpu.vector_store %arg8[%c0_73, %c0_74], %217 {strides = array<i32>} : memref<64x512xf32, #tpu.memory_space<vmem>>, vector<64x512xf32>,
    %cst_75 = arith.constant 0.000000e+00 : f32
    %219 = vector.broadcast %cst_75 : f32 to vector<8x128xf32>
    %cst_76 = arith.constant 0.000000e+00 : f32
    %220 = vector.broadcast %cst_76 : f32 to vector<8x128xf32>
    %c0_i32_77 = arith.constant 0 : i32
    %c8_i32_78 = arith.constant 8 : i32
    %221 = arith.muli %c0_i32_77, %c8_i32_78 : i32
    %222 = tpu.assume_multiple %221, 8 : i32
    %223 = arith.index_cast %222 : i32 to index
    %c0_79 = arith.constant 0 : index
    %224 = vector.load %arg8[%223, %c0_79] : memref<64x512xf32, #tpu.memory_space<vmem>>, vector<8x512xf32>
    %c1 = arith.constant 1 : index
    %c0_80 = arith.constant 0 : index
    %c0_81 = arith.constant 0 : index
    %225 = vector.load %arg1[%c1, %c0_80, %c0_81] : memref<2x128x512xf32, #tpu.memory_space<vmem>>, vector<1x128x512xf32>
    %226 = vector.shape_cast %225 : vector<1x128x512xf32> to vector<128x512xf32>
    %cst_82 = arith.constant dense<0.000000e+00> : vector<8x512xf32>
    %227 = tpu.matmul %219, %226, %cst_82 {dimension_numbers = #tpu.dot_dimension_numbers<[1], [0], [0], [1], [0, 0, 1, 1], [], []>} : vector<8x128xf32>, vector<128x512xf32>, vector<8x512xf32> -> vector<8x512xf32>
    %228 = arith.addf %224, %227 : vector<8x512xf32>
    %229 = vector.extract_strided_slice %228 {offsets = [0, 0], sizes = [8, 384], strides = [1, 1]} : vector<8x512xf32> to vector<8x384xf32>
    %230 = arith.negf %229 : vector<8x384xf32>
    %231 = math.exp %230 : vector<8x384xf32>
    %cst_83 = arith.constant 1.000000e+00 : f32
    %232 = vector.broadcast %cst_83 : f32 to vector<8x384xf32>
    %233 = arith.addf %232, %231 : vector<8x384xf32>
    %234 = arith.divf %232, %233 : vector<8x384xf32>
    %235 = vector.extract_strided_slice %228 {offsets = [0, 384], sizes = [8, 128], strides = [1, 1]} : vector<8x512xf32> to vector<8x128xf32>
    %236 = math.tanh %235 : vector<8x128xf32>
    %237 = vector.extract_strided_slice %234 {offsets = [0, 0], sizes = [8, 128], strides = [1, 1]} : vector<8x384xf32> to vector<8x128xf32>
    %238 = vector.extract_strided_slice %234 {offsets = [0, 128], sizes = [8, 128], strides = [1, 1]} : vector<8x384xf32> to vector<8x128xf32>
    %239 = vector.extract_strided_slice %234 {offsets = [0, 256], sizes = [8, 128], strides = [1, 1]} : vector<8x384xf32> to vector<8x128xf32>
    %240 = arith.mulf %238, %220 : vector<8x128xf32>
    %241 = arith.mulf %237, %236 : vector<8x128xf32>
    %242 = arith.addf %240, %241 : vector<8x128xf32>
    %243 = math.tanh %242 : vector<8x128xf32>
    %244 = arith.mulf %239, %243 : vector<8x128xf32>
    %c1_i32_84 = arith.constant 1 : i32
    %c8_i32_85 = arith.constant 8 : i32
    %245 = arith.muli %c1_i32_84, %c8_i32_85 : i32
    %246 = tpu.assume_multiple %245, 8 : i32
    %247 = arith.index_cast %246 : i32 to index
    %c0_86 = arith.constant 0 : index
    %248 = vector.load %arg8[%247, %c0_86] : memref<64x512xf32, #tpu.memory_space<vmem>>, vector<8x512xf32>
    %c1_87 = arith.constant 1 : index
    %c0_88 = arith.constant 0 : index
    %c0_89 = arith.constant 0 : index
    %249 = vector.load %arg1[%c1_87, %c0_88, %c0_89] : memref<2x128x512xf32, #tpu.memory_space<vmem>>, vector<1x128x512xf32>
    %250 = vector.shape_cast %249 : vector<1x128x512xf32> to vector<128x512xf32>
    %cst_90 = arith.constant dense<0.000000e+00> : vector<8x512xf32>
    %251 = tpu.matmul %244, %250, %cst_90 {dimension_numbers = #tpu.dot_dimension_numbers<[1], [0], [0], [1], [0, 0, 1, 1], [], []>} : vector<8x128xf32>, vector<128x512xf32>, vector<8x512xf32> -> vector<8x512xf32>
    %252 = arith.addf %248, %251 : vector<8x512xf32>
    %253 = vector.extract_strided_slice %252 {offsets = [0, 0], sizes = [8, 384], strides = [1, 1]} : vector<8x512xf32> to vector<8x384xf32>
    %254 = arith.negf %253 : vector<8x384xf32>
    %255 = math.exp %254 : vector<8x384xf32>
    %cst_91 = arith.constant 1.000000e+00 : f32
    %256 = vector.broadcast %cst_91 : f32 to vector<8x384xf32>
    %257 = arith.addf %256, %255 : vector<8x384xf32>
    %258 = arith.divf %256, %257 : vector<8x384xf32>
    %259 = vector.extract_strided_slice %252 {offsets = [0, 384], sizes = [8, 128], strides = [1, 1]} : vector<8x512xf32> to vector<8x128xf32>
    %260 = math.tanh %259 : vector<8x128xf32>
    %261 = vector.extract_strided_slice %258 {offsets = [0, 0], sizes = [8, 128], strides = [1, 1]} : vector<8x384xf32> to vector<8x128xf32>
    %262 = vector.extract_strided_slice %258 {offsets = [0, 128], sizes = [8, 128], strides = [1, 1]} : vector<8x384xf32> to vector<8x128xf32>
    %263 = vector.extract_strided_slice %258 {offsets = [0, 256], sizes = [8, 128], strides = [1, 1]} : vector<8x384xf32> to vector<8x128xf32>
    %264 = arith.mulf %262, %242 : vector<8x128xf32>
    %265 = arith.mulf %261, %260 : vector<8x128xf32>
    %266 = arith.addf %264, %265 : vector<8x128xf32>
    %267 = math.tanh %266 : vector<8x128xf32>
    %268 = arith.mulf %263, %267 : vector<8x128xf32>
    %c2_i32_92 = arith.constant 2 : i32
    %c8_i32_93 = arith.constant 8 : i32
    %269 = arith.muli %c2_i32_92, %c8_i32_93 : i32
    %270 = tpu.assume_multiple %269, 8 : i32
    %271 = arith.index_cast %270 : i32 to index
    %c0_94 = arith.constant 0 : index
    %272 = vector.load %arg8[%271, %c0_94] : memref<64x512xf32, #tpu.memory_space<vmem>>, vector<8x512xf32>
    %c1_95 = arith.constant 1 : index
    %c0_96 = arith.constant 0 : index
    %c0_97 = arith.constant 0 : index
    %273 = vector.load %arg1[%c1_95, %c0_96, %c0_97] : memref<2x128x512xf32, #tpu.memory_space<vmem>>, vector<1x128x512xf32>
    %274 = vector.shape_cast %273 : vector<1x128x512xf32> to vector<128x512xf32>
    %cst_98 = arith.constant dense<0.000000e+00> : vector<8x512xf32>
    %275 = tpu.matmul %268, %274, %cst_98 {dimension_numbers = #tpu.dot_dimension_numbers<[1], [0], [0], [1], [0, 0, 1, 1], [], []>} : vector<8x128xf32>, vector<128x512xf32>, vector<8x512xf32> -> vector<8x512xf32>
    %276 = arith.addf %272, %275 : vector<8x512xf32>
    %277 = vector.extract_strided_slice %276 {offsets = [0, 0], sizes = [8, 384], strides = [1, 1]} : vector<8x512xf32> to vector<8x384xf32>
    %278 = arith.negf %277 : vector<8x384xf32>
    %279 = math.exp %278 : vector<8x384xf32>
    %cst_99 = arith.constant 1.000000e+00 : f32
    %280 = vector.broadcast %cst_99 : f32 to vector<8x384xf32>
    %281 = arith.addf %280, %279 : vector<8x384xf32>
    %282 = arith.divf %280, %281 : vector<8x384xf32>
    %283 = vector.extract_strided_slice %276 {offsets = [0, 384], sizes = [8, 128], strides = [1, 1]} : vector<8x512xf32> to vector<8x128xf32>
    %284 = math.tanh %283 : vector<8x128xf32>
    %285 = vector.extract_strided_slice %282 {offsets = [0, 0], sizes = [8, 128], strides = [1, 1]} : vector<8x384xf32> to vector<8x128xf32>
    %286 = vector.extract_strided_slice %282 {offsets = [0, 128], sizes = [8, 128], strides = [1, 1]} : vector<8x384xf32> to vector<8x128xf32>
    %287 = vector.extract_strided_slice %282 {offsets = [0, 256], sizes = [8, 128], strides = [1, 1]} : vector<8x384xf32> to vector<8x128xf32>
    %288 = arith.mulf %286, %266 : vector<8x128xf32>
    %289 = arith.mulf %285, %284 : vector<8x128xf32>
    %290 = arith.addf %288, %289 : vector<8x128xf32>
    %291 = math.tanh %290 : vector<8x128xf32>
    %292 = arith.mulf %287, %291 : vector<8x128xf32>
    %c3_i32_100 = arith.constant 3 : i32
    %c8_i32_101 = arith.constant 8 : i32
    %293 = arith.muli %c3_i32_100, %c8_i32_101 : i32
    %294 = tpu.assume_multiple %293, 8 : i32
    %295 = arith.index_cast %294 : i32 to index
    %c0_102 = arith.constant 0 : index
    %296 = vector.load %arg8[%295, %c0_102] : memref<64x512xf32, #tpu.memory_space<vmem>>, vector<8x512xf32>
    %c1_103 = arith.constant 1 : index
    %c0_104 = arith.constant 0 : index
    %c0_105 = arith.constant 0 : index
    %297 = vector.load %arg1[%c1_103, %c0_104, %c0_105] : memref<2x128x512xf32, #tpu.memory_space<vmem>>, vector<1x128x512xf32>
    %298 = vector.shape_cast %297 : vector<1x128x512xf32> to vector<128x512xf32>
    %cst_106 = arith.constant dense<0.000000e+00> : vector<8x512xf32>
    %299 = tpu.matmul %292, %298, %cst_106 {dimension_numbers = #tpu.dot_dimension_numbers<[1], [0], [0], [1], [0, 0, 1, 1], [], []>} : vector<8x128xf32>, vector<128x512xf32>, vector<8x512xf32> -> vector<8x512xf32>
    %300 = arith.addf %296, %299 : vector<8x512xf32>
    %301 = vector.extract_strided_slice %300 {offsets = [0, 0], sizes = [8, 384], strides = [1, 1]} : vector<8x512xf32> to vector<8x384xf32>
    %302 = arith.negf %301 : vector<8x384xf32>
    %303 = math.exp %302 : vector<8x384xf32>
    %cst_107 = arith.constant 1.000000e+00 : f32
    %304 = vector.broadcast %cst_107 : f32 to vector<8x384xf32>
    %305 = arith.addf %304, %303 : vector<8x384xf32>
    %306 = arith.divf %304, %305 : vector<8x384xf32>
    %307 = vector.extract_strided_slice %300 {offsets = [0, 384], sizes = [8, 128], strides = [1, 1]} : vector<8x512xf32> to vector<8x128xf32>
    %308 = math.tanh %307 : vector<8x128xf32>
    %309 = vector.extract_strided_slice %306 {offsets = [0, 0], sizes = [8, 128], strides = [1, 1]} : vector<8x384xf32> to vector<8x128xf32>
    %310 = vector.extract_strided_slice %306 {offsets = [0, 128], sizes = [8, 128], strides = [1, 1]} : vector<8x384xf32> to vector<8x128xf32>
    %311 = vector.extract_strided_slice %306 {offsets = [0, 256], sizes = [8, 128], strides = [1, 1]} : vector<8x384xf32> to vector<8x128xf32>
    %312 = arith.mulf %310, %290 : vector<8x128xf32>
    %313 = arith.mulf %309, %308 : vector<8x128xf32>
    %314 = arith.addf %312, %313 : vector<8x128xf32>
    %315 = math.tanh %314 : vector<8x128xf32>
    %316 = arith.mulf %311, %315 : vector<8x128xf32>
    %c4_i32_108 = arith.constant 4 : i32
    %c8_i32_109 = arith.constant 8 : i32
    %317 = arith.muli %c4_i32_108, %c8_i32_109 : i32
    %318 = tpu.assume_multiple %317, 8 : i32
    %319 = arith.index_cast %318 : i32 to index
    %c0_110 = arith.constant 0 : index
    %320 = vector.load %arg8[%319, %c0_110] : memref<64x512xf32, #tpu.memory_space<vmem>>, vector<8x512xf32>
    %c1_111 = arith.constant 1 : index
    %c0_112 = arith.constant 0 : index
    %c0_113 = arith.constant 0 : index
    %321 = vector.load %arg1[%c1_111, %c0_112, %c0_113] : memref<2x128x512xf32, #tpu.memory_space<vmem>>, vector<1x128x512xf32>
    %322 = vector.shape_cast %321 : vector<1x128x512xf32> to vector<128x512xf32>
    %cst_114 = arith.constant dense<0.000000e+00> : vector<8x512xf32>
    %323 = tpu.matmul %316, %322, %cst_114 {dimension_numbers = #tpu.dot_dimension_numbers<[1], [0], [0], [1], [0, 0, 1, 1], [], []>} : vector<8x128xf32>, vector<128x512xf32>, vector<8x512xf32> -> vector<8x512xf32>
    %324 = arith.addf %320, %323 : vector<8x512xf32>
    %325 = vector.extract_strided_slice %324 {offsets = [0, 0], sizes = [8, 384], strides = [1, 1]} : vector<8x512xf32> to vector<8x384xf32>
    %326 = arith.negf %325 : vector<8x384xf32>
    %327 = math.exp %326 : vector<8x384xf32>
    %cst_115 = arith.constant 1.000000e+00 : f32
    %328 = vector.broadcast %cst_115 : f32 to vector<8x384xf32>
    %329 = arith.addf %328, %327 : vector<8x384xf32>
    %330 = arith.divf %328, %329 : vector<8x384xf32>
    %331 = vector.extract_strided_slice %324 {offsets = [0, 384], sizes = [8, 128], strides = [1, 1]} : vector<8x512xf32> to vector<8x128xf32>
    %332 = math.tanh %331 : vector<8x128xf32>
    %333 = vector.extract_strided_slice %330 {offsets = [0, 0], sizes = [8, 128], strides = [1, 1]} : vector<8x384xf32> to vector<8x128xf32>
    %334 = vector.extract_strided_slice %330 {offsets = [0, 128], sizes = [8, 128], strides = [1, 1]} : vector<8x384xf32> to vector<8x128xf32>
    %335 = vector.extract_strided_slice %330 {offsets = [0, 256], sizes = [8, 128], strides = [1, 1]} : vector<8x384xf32> to vector<8x128xf32>
    %336 = arith.mulf %334, %314 : vector<8x128xf32>
    %337 = arith.mulf %333, %332 : vector<8x128xf32>
    %338 = arith.addf %336, %337 : vector<8x128xf32>
    %339 = math.tanh %338 : vector<8x128xf32>
    %340 = arith.mulf %335, %339 : vector<8x128xf32>
    %c5_i32_116 = arith.constant 5 : i32
    %c8_i32_117 = arith.constant 8 : i32
    %341 = arith.muli %c5_i32_116, %c8_i32_117 : i32
    %342 = tpu.assume_multiple %341, 8 : i32
    %343 = arith.index_cast %342 : i32 to index
    %c0_118 = arith.constant 0 : index
    %344 = vector.load %arg8[%343, %c0_118] : memref<64x512xf32, #tpu.memory_space<vmem>>, vector<8x512xf32>
    %c1_119 = arith.constant 1 : index
    %c0_120 = arith.constant 0 : index
    %c0_121 = arith.constant 0 : index
    %345 = vector.load %arg1[%c1_119, %c0_120, %c0_121] : memref<2x128x512xf32, #tpu.memory_space<vmem>>, vector<1x128x512xf32>
    %346 = vector.shape_cast %345 : vector<1x128x512xf32> to vector<128x512xf32>
    %cst_122 = arith.constant dense<0.000000e+00> : vector<8x512xf32>
    %347 = tpu.matmul %340, %346, %cst_122 {dimension_numbers = #tpu.dot_dimension_numbers<[1], [0], [0], [1], [0, 0, 1, 1], [], []>} : vector<8x128xf32>, vector<128x512xf32>, vector<8x512xf32> -> vector<8x512xf32>
    %348 = arith.addf %344, %347 : vector<8x512xf32>
    %349 = vector.extract_strided_slice %348 {offsets = [0, 0], sizes = [8, 384], strides = [1, 1]} : vector<8x512xf32> to vector<8x384xf32>
    %350 = arith.negf %349 : vector<8x384xf32>
    %351 = math.exp %350 : vector<8x384xf32>
    %cst_123 = arith.constant 1.000000e+00 : f32
    %352 = vector.broadcast %cst_123 : f32 to vector<8x384xf32>
    %353 = arith.addf %352, %351 : vector<8x384xf32>
    %354 = arith.divf %352, %353 : vector<8x384xf32>
    %355 = vector.extract_strided_slice %348 {offsets = [0, 384], sizes = [8, 128], strides = [1, 1]} : vector<8x512xf32> to vector<8x128xf32>
    %356 = math.tanh %355 : vector<8x128xf32>
    %357 = vector.extract_strided_slice %354 {offsets = [0, 0], sizes = [8, 128], strides = [1, 1]} : vector<8x384xf32> to vector<8x128xf32>
    %358 = vector.extract_strided_slice %354 {offsets = [0, 128], sizes = [8, 128], strides = [1, 1]} : vector<8x384xf32> to vector<8x128xf32>
    %359 = vector.extract_strided_slice %354 {offsets = [0, 256], sizes = [8, 128], strides = [1, 1]} : vector<8x384xf32> to vector<8x128xf32>
    %360 = arith.mulf %358, %338 : vector<8x128xf32>
    %361 = arith.mulf %357, %356 : vector<8x128xf32>
    %362 = arith.addf %360, %361 : vector<8x128xf32>
    %363 = math.tanh %362 : vector<8x128xf32>
    %364 = arith.mulf %359, %363 : vector<8x128xf32>
    %c6_i32_124 = arith.constant 6 : i32
    %c8_i32_125 = arith.constant 8 : i32
    %365 = arith.muli %c6_i32_124, %c8_i32_125 : i32
    %366 = tpu.assume_multiple %365, 8 : i32
    %367 = arith.index_cast %366 : i32 to index
    %c0_126 = arith.constant 0 : index
    %368 = vector.load %arg8[%367, %c0_126] : memref<64x512xf32, #tpu.memory_space<vmem>>, vector<8x512xf32>
    %c1_127 = arith.constant 1 : index
    %c0_128 = arith.constant 0 : index
    %c0_129 = arith.constant 0 : index
    %369 = vector.load %arg1[%c1_127, %c0_128, %c0_129] : memref<2x128x512xf32, #tpu.memory_space<vmem>>, vector<1x128x512xf32>
    %370 = vector.shape_cast %369 : vector<1x128x512xf32> to vector<128x512xf32>
    %cst_130 = arith.constant dense<0.000000e+00> : vector<8x512xf32>
    %371 = tpu.matmul %364, %370, %cst_130 {dimension_numbers = #tpu.dot_dimension_numbers<[1], [0], [0], [1], [0, 0, 1, 1], [], []>} : vector<8x128xf32>, vector<128x512xf32>, vector<8x512xf32> -> vector<8x512xf32>
    %372 = arith.addf %368, %371 : vector<8x512xf32>
    %373 = vector.extract_strided_slice %372 {offsets = [0, 0], sizes = [8, 384], strides = [1, 1]} : vector<8x512xf32> to vector<8x384xf32>
    %374 = arith.negf %373 : vector<8x384xf32>
    %375 = math.exp %374 : vector<8x384xf32>
    %cst_131 = arith.constant 1.000000e+00 : f32
    %376 = vector.broadcast %cst_131 : f32 to vector<8x384xf32>
    %377 = arith.addf %376, %375 : vector<8x384xf32>
    %378 = arith.divf %376, %377 : vector<8x384xf32>
    %379 = vector.extract_strided_slice %372 {offsets = [0, 384], sizes = [8, 128], strides = [1, 1]} : vector<8x512xf32> to vector<8x128xf32>
    %380 = math.tanh %379 : vector<8x128xf32>
    %381 = vector.extract_strided_slice %378 {offsets = [0, 0], sizes = [8, 128], strides = [1, 1]} : vector<8x384xf32> to vector<8x128xf32>
    %382 = vector.extract_strided_slice %378 {offsets = [0, 128], sizes = [8, 128], strides = [1, 1]} : vector<8x384xf32> to vector<8x128xf32>
    %383 = vector.extract_strided_slice %378 {offsets = [0, 256], sizes = [8, 128], strides = [1, 1]} : vector<8x384xf32> to vector<8x128xf32>
    %384 = arith.mulf %382, %362 : vector<8x128xf32>
    %385 = arith.mulf %381, %380 : vector<8x128xf32>
    %386 = arith.addf %384, %385 : vector<8x128xf32>
    %387 = math.tanh %386 : vector<8x128xf32>
    %388 = arith.mulf %383, %387 : vector<8x128xf32>
    %c7_i32_132 = arith.constant 7 : i32
    %c8_i32_133 = arith.constant 8 : i32
    %389 = arith.muli %c7_i32_132, %c8_i32_133 : i32
    %390 = tpu.assume_multiple %389, 8 : i32
    %391 = arith.index_cast %390 : i32 to index
    %c0_134 = arith.constant 0 : index
    %392 = vector.load %arg8[%391, %c0_134] : memref<64x512xf32, #tpu.memory_space<vmem>>, vector<8x512xf32>
    %c1_135 = arith.constant 1 : index
    %c0_136 = arith.constant 0 : index
    %c0_137 = arith.constant 0 : index
    %393 = vector.load %arg1[%c1_135, %c0_136, %c0_137] : memref<2x128x512xf32, #tpu.memory_space<vmem>>, vector<1x128x512xf32>
    %394 = vector.shape_cast %393 : vector<1x128x512xf32> to vector<128x512xf32>
    %cst_138 = arith.constant dense<0.000000e+00> : vector<8x512xf32>
    %395 = tpu.matmul %388, %394, %cst_138 {dimension_numbers = #tpu.dot_dimension_numbers<[1], [0], [0], [1], [0, 0, 1, 1], [], []>} : vector<8x128xf32>, vector<128x512xf32>, vector<8x512xf32> -> vector<8x512xf32>
    %396 = arith.addf %392, %395 : vector<8x512xf32>
    %397 = vector.extract_strided_slice %396 {offsets = [0, 0], sizes = [8, 384], strides = [1, 1]} : vector<8x512xf32> to vector<8x384xf32>
    %398 = arith.negf %397 : vector<8x384xf32>
    %399 = math.exp %398 : vector<8x384xf32>
    %cst_139 = arith.constant 1.000000e+00 : f32
    %400 = vector.broadcast %cst_139 : f32 to vector<8x384xf32>
    %401 = arith.addf %400, %399 : vector<8x384xf32>
    %402 = arith.divf %400, %401 : vector<8x384xf32>
    %403 = vector.extract_strided_slice %396 {offsets = [0, 384], sizes = [8, 128], strides = [1, 1]} : vector<8x512xf32> to vector<8x128xf32>
    %404 = math.tanh %403 : vector<8x128xf32>
    %405 = vector.extract_strided_slice %402 {offsets = [0, 0], sizes = [8, 128], strides = [1, 1]} : vector<8x384xf32> to vector<8x128xf32>
    %406 = vector.extract_strided_slice %402 {offsets = [0, 128], sizes = [8, 128], strides = [1, 1]} : vector<8x384xf32> to vector<8x128xf32>
    %407 = vector.extract_strided_slice %402 {offsets = [0, 256], sizes = [8, 128], strides = [1, 1]} : vector<8x384xf32> to vector<8x128xf32>
    %408 = arith.mulf %406, %386 : vector<8x128xf32>
    %409 = arith.mulf %405, %404 : vector<8x128xf32>
    %410 = arith.addf %408, %409 : vector<8x128xf32>
    %411 = math.tanh %410 : vector<8x128xf32>
    %412 = arith.mulf %407, %411 : vector<8x128xf32>
    %c8_i32_140 = arith.constant 8 : i32
    %c0_141 = arith.constant 0 : index
    %c0_142 = arith.constant 0 : index
    %413 = vector.load %arg4[%c0_141, %c0_142] : memref<1x128xf32, #tpu.memory_space<vmem>>, vector<1x128xf32>
    %414 = vector.broadcast %413 : vector<1x128xf32> to vector<8x128xf32>
    %415 = arith.mulf %412, %414 : vector<8x128xf32>
    %cst_143 = arith.constant dense<0.000000e+00> : vector<8xf32>
    %416 = vector.multi_reduction <add>, %415, %cst_143 [1] : vector<8x128xf32> to vector<8xf32>
    %417 = vector.shape_cast %416 : vector<8xf32> to vector<8x1xf32>
    %c0_144 = arith.constant 0 : index
    %c0_145 = arith.constant 0 : index
    %418 = vector.load %arg5[%c0_144, %c0_145] : memref<1x1xf32, #tpu.memory_space<vmem>>, vector<1x1xf32>
    %419 = vector.broadcast %418 : vector<1x1xf32> to vector<8x1xf32>
    %420 = arith.addf %417, %419 : vector<8x1xf32>
    %c0_146 = arith.constant 0 : index
    %c0_147 = arith.constant 0 : index
    %421 = vector.load %arg6[%c0_146, %c0_147] : memref<8x1xf32, #tpu.memory_space<vmem>>, vector<8x1xf32>
    tpu.vector_store %arg6[%c0_146, %c0_147], %420 {strides = array<i32>} : memref<8x1xf32, #tpu.memory_space<vmem>>, vector<8x1xf32>,
    return
  }
}

</mosaic_0001>

<llo_original>
// kernel: lstm_forward.1
$region0: #{lstm_forward.1}
  #allocation0 [shape = 'u32[]', space=smem, size = 0x4, offset = 0x4, fixed_abs, tag = 'smem constant byte address 0x4 - core index']
  #allocation1 [shape = 'u32[144,128]{1,0:T(1,128)}', space=vmem, size = 0x12000, scoped, tag = 'internal scratch']
  #allocation2 [shape = 'f32[64,128]{1,0:T(8,128)}', space=vmem, size = 0x8000, scoped, tag = 'scratch operand']
  #allocation3 [shape = 'f32[64,512]{1,0:T(8,128)}', space=vmem, size = 0x20000, scoped, tag = 'scratch operand']
  #allocation4 [shape = 'f32[1,1]{1,0:T(1,128)S(1)}', space=vmem, size = 0x200, scoped, tag = 'scoped memory for lstm_forward.1']
  %s0 = inlined_call_operand.vmem [shape: f32[64,512], index: 0, kind: input, shape index: {}]
  %s1 = inlined_call_operand.hbm [shape: f32[2,128,512], index: 1, kind: input, shape index: {}]
  %s2 = inlined_call_operand.vmem [shape: f32[1,128,512], index: 2, kind: input, shape index: {}]
  %s3 = inlined_call_operand.vmem [shape: f32[1,1,512], index: 3, kind: input, shape index: {}]
  %s4 = inlined_call_operand.vmem [shape: f32[1,128], index: 4, kind: input, shape index: {}]
  %s5 = inlined_call_operand.<no memory space> [shape: f32[1,1], index: 5, kind: input, shape index: {}]
  %s6 = inlined_call_operand.vmem [shape: f32[8,1], index: 6, kind: output, shape index: {}]
  %s7 = sld [smem:[#allocation0]]
  $region38: #{lstm_forward.1} parent=0
    _
  %s9 = ssub.s32 1, %s7
  %s10 = scalar_select 0, %s9, %s7
  %v11 = vstv %s5
  %12 = vst [vmem:[#allocation4] sm:$0x1] %v11
  $region1: #{lstm_forward.1} parent=0
    #allocation5 [shape = 'u8[524288]{0}', space=vmem, size = 0x80000, scoped, tag = 'input window, operand 1, single buffered']
    #allocation6 [shape = 's32[1]{0}', space=sflag, size = 0x4, scoped, tag = 'scoped memory for lstm_forward.1']
    %13 = vsyncpa [#allocation6], 0
    // Predicated region
    $region2: #{lstm_forward.1} parent=1 // pred_check
      _
    $region3: #{lstm_forward.1} parent=1 // pred_check_branch
      %15 = sbr.rel (0) target = $region5
    $region4: #{lstm_forward.1} parent=1 // pred_region
      _
    $region5: #{lstm_forward.1} parent=1 // pred_fallthru
      _
    // Predicated region
    $region6: #{lstm_forward.1} parent=1 // pred_check
      _
    $region7: #{lstm_forward.1} parent=1 // pred_check_branch
      %17 = sbr.rel (0) target = $region9
    $region8: #{lstm_forward.1} parent=1 // pred_region
      %s19 = ssub.s32 16384, 16384
      %20 = vsyncadd [#allocation6], %s19
      %s21 = sshll.u32 [#allocation5], 4
      %s22 = int_to_ptr.vmem [resolvable:$true] %s21
      %27 = dma.hbm_to_vmem [thread:$0]  %s1, 16384, %s22, [#allocation6], 512, 512, 32
    $region9: #{lstm_forward.1} parent=1 // pred_fallthru
      _
    // Predicated region
    $region10: #{lstm_forward.1} parent=1 // pred_check
      _
    $region11: #{lstm_forward.1} parent=1 // pred_check_branch
      %29 = sbr.rel (0) target = $region13
    $region12: #{lstm_forward.1} parent=1 // pred_region
      _
    $region13: #{lstm_forward.1} parent=1 // pred_fallthru
      _
    // Predicated region
    $region14: #{lstm_forward.1} parent=1 // pred_check
      _
    $region15: #{lstm_forward.1} parent=1 // pred_check_branch
      %31 = sbr.rel (0) target = $region17
    $region16: #{lstm_forward.1} parent=1 // pred_region
      _
    $region17: #{lstm_forward.1} parent=1 // pred_fallthru
      _
    // Predicated region
    $region18: #{lstm_forward.1} parent=1 // pred_check
      _
    $region19: #{lstm_forward.1} parent=1 // pred_check_branch
      %33 = sbr.rel (0) target = $region21
    $region20: #{lstm_forward.1} parent=1 // pred_region
      _
    $region21: #{lstm_forward.1} parent=1 // pred_fallthru
      _
    // Predicated region
    $region22: #{lstm_forward.1} parent=1 // pred_check
      _
    $region23: #{lstm_forward.1} parent=1 // pred_check_branch
      %35 = sbr.rel (0) target = $region25
    $region24: #{lstm_forward.1} parent=1 // pred_region
      _
    $region25: #{lstm_forward.1} parent=1 // pred_fallthru
      _
    // Predicated region
    $region26: #{lstm_forward.1} parent=1 // pred_check
      _
    $region27: #{lstm_forward.1} parent=1 // pred_check_branch
      %37 = sbr.rel (0) target = $region29
    $region28: #{lstm_forward.1} parent=1 // pred_region
      %38 = dma.done [#allocation6], 16384
    $region29: #{lstm_forward.1} parent=1 // pred_fallthru
      _
    %s39 = smul.u32 0, 4
    %s40 = smul.addr %s39, 8
    %s41 = scalar_lea.vmem %s0, %s40
    %v42 = vld [vmem:[%s41] sm:$0xff]
    %v43 = vld [vmem:[%s41 + $0x8] sm:$0xff]
    %v44 = vld [vmem:[%s41 + $0x10] sm:$0xff]
    %v45 = vld [vmem:[%s41 + $0x18] sm:$0xff]
    %v46 = vld [vmem:[#allocation5] sm:$0xff]
    %v47 = vld [vmem:[#allocation5 + $0x8] sm:$0xff]
    %v48 = vld [vmem:[#allocation5 + $0x10] sm:$0xff]
    %v49 = vld [vmem:[#allocation5 + $0x18] sm:$0xff]
    %v50 = vld [vmem:[#allocation5 + $0x20] sm:$0xff]
    %v51 = vld [vmem:[#allocation5 + $0x28] sm:$0xff]
    %v52 = vld [vmem:[#allocation5 + $0x30] sm:$0xff]
    %v53 = vld [vmem:[#allocation5 + $0x38] sm:$0xff]
    %v54 = vld [vmem:[#allocation5 + $0x40] sm:$0xff]
    %v55 = vld [vmem:[#allocation5 + $0x48] sm:$0xff]
    %v56 = vld [vmem:[#allocation5 + $0x50] sm:$0xff]
    %v57 = vld [vmem:[#allocation5 + $0x58] sm:$0xff]
    %v58 = vld [vmem:[#allocation5 + $0x60] sm:$0xff]
    %v59 = vld [vmem:[#allocation5 + $0x68] sm:$0xff]
    %v60 = vld [vmem:[#allocation5 + $0x70] sm:$0xff]
    %v61 = vld [vmem:[#allocation5 + $0x78] sm:$0xff]
    %v62 = vld [vmem:[#allocation5 + $0x80] sm:$0xff]
    %v63 = vld [vmem:[#allocation5 + $0x88] sm:$0xff]
    %v64 = vld [vmem:[#allocation5 + $0x90] sm:$0xff]
    %v65 = vld [vmem:[#allocation5 + $0x98] sm:$0xff]
    %v66 = vld [vmem:[#allocation5 + $0xa0] sm:$0xff]
    %v67 = vld [vmem:[#allocation5 + $0xa8] sm:$0xff]
    %v68 = vld [vmem:[#allocation5 + $0xb0] sm:$0xff]
    %v69 = vld [vmem:[#allocation5 + $0xb8] sm:$0xff]
    %v70 = vld [vmem:[#allocation5 + $0xc0] sm:$0xff]
    %v71 = vld [vmem:[#allocation5 + $0xc8] sm:$0xff]
    %v72 = vld [vmem:[#allocation5 + $0xd0] sm:$0xff]
    %v73 = vld [vmem:[#allocation5 + $0xd8] sm:$0xff]
    %v74 = vld [vmem:[#allocation5 + $0xe0] sm:$0xff]
    %v75 = vld [vmem:[#allocation5 + $0xe8] sm:$0xff]
    %v76 = vld [vmem:[#allocation5 + $0xf0] sm:$0xff]
    %v77 = vld [vmem:[#allocation5 + $0xf8] sm:$0xff]
    %v78 = vld [vmem:[#allocation5 + $0x100] sm:$0xff]
    %v79 = vld [vmem:[#allocation5 + $0x108] sm:$0xff]
    %v80 = vld [vmem:[#allocation5 + $0x110] sm:$0xff]
    %v81 = vld [vmem:[#allocation5 + $0x118] sm:$0xff]
    %v82 = vld [vmem:[#allocation5 + $0x120] sm:$0xff]
    %v83 = vld [vmem:[#allocation5 + $0x128] sm:$0xff]
    %v84 = vld [vmem:[#allocation5 + $0x130] sm:$0xff]
    %v85 = vld [vmem:[#allocation5 + $0x138] sm:$0xff]
    %v86 = vld [vmem:[#allocation5 + $0x140] sm:$0xff]
    %v87 = vld [vmem:[#allocation5 + $0x148] sm:$0xff]
    %v88 = vld [vmem:[#allocation5 + $0x150] sm:$0xff]
    %v89 = vld [vmem:[#allocation5 + $0x158] sm:$0xff]
    %v90 = vld [vmem:[#allocation5 + $0x160] sm:$0xff]
    %v91 = vld [vmem:[#allocation5 + $0x168] sm:$0xff]
    %v92 = vld [vmem:[#allocation5 + $0x170] sm:$0xff]
    %v93 = vld [vmem:[#allocation5 + $0x178] sm:$0xff]
    %v94 = vld [vmem:[#allocation5 + $0x180] sm:$0xff]
    %v95 = vld [vmem:[#allocation5 + $0x188] sm:$0xff]
    %v96 = vld [vmem:[#allocation5 + $0x190] sm:$0xff]
    %v97 = vld [vmem:[#allocation5 + $0x198] sm:$0xff]
    %v98 = vld [vmem:[#allocation5 + $0x1a0] sm:$0xff]
    %v99 = vld [vmem:[#allocation5 + $0x1a8] sm:$0xff]
    %v100 = vld [vmem:[#allocation5 + $0x1b0] sm:$0xff]
    %v101 = vld [vmem:[#allocation5 + $0x1b8] sm:$0xff]
    %v102 = vld [vmem:[#allocation5 + $0x1c0] sm:$0xff]
    %v103 = vld [vmem:[#allocation5 + $0x1c8] sm:$0xff]
    %v104 = vld [vmem:[#allocation5 + $0x1d0] sm:$0xff]
    %v105 = vld [vmem:[#allocation5 + $0x1d8] sm:$0xff]
    %v106 = vld [vmem:[#allocation5 + $0x1e0] sm:$0xff]
    %v107 = vld [vmem:[#allocation5 + $0x1e8] sm:$0xff]
    %v108 = vld [vmem:[#allocation5 + $0x1f0] sm:$0xff]
    %v109 = vld [vmem:[#allocation5 + $0x1f8] sm:$0xff]
    %110 = vmatprep.subr.mxu0 %v47
    %111 = vmatpush1.msra.mxu0 %v46
    %112 = vmatprep.subr.mxu0 %v51
    %113 = vmatpush1.msra.mxu0 %v50
    %114 = vmatprep.subr.mxu0 %v55
    %115 = vmatpush1.msra.mxu0 %v54
    %116 = vmatprep.subr.mxu0 %v59
    %117 = vmatpush1.msra.mxu0 %v58
    %118 = vmatprep.subr.mxu0 %v63
    %119 = vmatpush1.msra.mxu0 %v62
    %120 = vmatprep.subr.mxu0 %v67
    %121 = vmatpush1.msra.mxu0 %v66
    %122 = vmatprep.subr.mxu0 %v71
    %123 = vmatpush1.msra.mxu0 %v70
    %124 = vmatprep.subr.mxu0 %v75
    %125 = vmatpush1.msra.mxu0 %v74
    %126 = vmatprep.subr.mxu0 %v79
    %127 = vmatpush1.msra.mxu0 %v78
    %128 = vmatprep.subr.mxu0 %v83
    %129 = vmatpush1.msra.mxu0 %v82
    %130 = vmatprep.subr.mxu0 %v87
    %131 = vmatpush1.msra.mxu0 %v86
    %132 = vmatprep.subr.mxu0 %v91
    %133 = vmatpush1.msra.mxu0 %v90
    %134 = vmatprep.subr.mxu0 %v95
    %135 = vmatpush1.msra.mxu0 %v94
    %136 = vmatprep.subr.mxu0 %v99
    %137 = vmatpush1.msra.mxu0 %v98
    %138 = vmatprep.subr.mxu0 %v103
    %139 = vmatpush1.msra.mxu0 %v102
    %140 = vmatprep.subr.mxu0 %v107
    %141 = vmatpush1.msra.mxu0 %v106
    %142 = vmatprep.subr.mxu0 0.0
    %143 = vmatpush1.msra.mxu0 0.0
    %144 = vmatprep.subr.mxu0 0.0
    %145 = vmatpush1.msra.mxu0 0.0
    %146 = vmatprep.subr.mxu0 0.0
    %147 = vmatpush1.msra.mxu0 0.0
    %148 = vmatprep.subr.mxu0 0.0
    %149 = vmatpush1.msra.mxu0 0.0
    %150 = vmatprep.subr.mxu0 0.0
    %151 = vmatpush1.msra.mxu0 0.0
    %152 = vmatprep.subr.mxu0 0.0
    %153 = vmatpush1.msra.mxu0 0.0
    %154 = vmatprep.subr.mxu0 0.0
    %155 = vmatpush1.msra.mxu0 0.0
    %156 = vmatprep.subr.mxu0 0.0
    %157 = vmatpush1.msra.mxu0 0.0
    %158 = vmatprep.subr.mxu0 0.0
    %159 = vmatpush1.msra.mxu0 0.0
    %160 = vmatprep.subr.mxu0 0.0
    %161 = vmatpush1.msra.mxu0 0.0
    %162 = vmatprep.subr.mxu0 0.0
    %163 = vmatpush1.msra.mxu0 0.0
    %164 = vmatprep.subr.mxu0 0.0
    %165 = vmatpush1.msra.mxu0 0.0
    %166 = vmatprep.subr.mxu0 0.0
    %167 = vmatpush1.msra.mxu0 0.0
    %168 = vmatprep.subr.mxu0 0.0
    %169 = vmatpush1.msra.mxu0 0.0
    %170 = vmatprep.subr.mxu0 0.0
    %171 = vmatpush1.msra.mxu0 0.0
    %172 = vmatprep.subr.mxu0 0.0
    %173 = vmatpush1.msra.mxu0 0.0
    %174 = vmatprep.mubr.f32.mxu0 0.0
    %175 = vmatmul.mubr.f32.gmra.mrb[0].mxu0 0.0
    %v176 = vpop.f32.mrb[0].mxu0
    %v177 = vadd.f32 0.0, %v176
    %v178 = vpop.f32.mrb[0].mxu0
    %v179 = vadd.f32 0.0, %v178
    %180 = vdwg.mxu0
    %181 = vmatprep.subr.mxu0 %v49
    %182 = vmatpush1.msra.mxu0 %v48
    %183 = vmatprep.subr.mxu0 %v53
    %184 = vmatpush1.msra.mxu0 %v52
    %185 = vmatprep.subr.mxu0 %v57
    %186 = vmatpush1.msra.mxu0 %v56
    %187 = vmatprep.subr.mxu0 %v61
    %188 = vmatpush1.msra.mxu0 %v60
    %189 = vmatprep.subr.mxu0 %v65
    %190 = vmatpush1.msra.mxu0 %v64
    %191 = vmatprep.subr.mxu0 %v69
    %192 = vmatpush1.msra.mxu0 %v68
    %193 = vmatprep.subr.mxu0 %v73
    %194 = vmatpush1.msra.mxu0 %v72
    %195 = vmatprep.subr.mxu0 %v77
    %196 = vmatpush1.msra.mxu0 %v76
    %197 = vmatprep.subr.mxu0 %v81
    %198 = vmatpush1.msra.mxu0 %v80
    %199 = vmatprep.subr.mxu0 %v85
    %200 = vmatpush1.msra.mxu0 %v84
    %201 = vmatprep.subr.mxu0 %v89
    %202 = vmatpush1.msra.mxu0 %v88
    %203 = vmatprep.subr.mxu0 %v93
    %204 = vmatpush1.msra.mxu0 %v92
    %205 = vmatprep.subr.mxu0 %v97
    %206 = vmatpush1.msra.mxu0 %v96
    %207 = vmatprep.subr.mxu0 %v101
    %208 = vmatpush1.msra.mxu0 %v100
    %209 = vmatprep.subr.mxu0 %v105
    %210 = vmatpush1.msra.mxu0 %v104
    %211 = vmatprep.subr.mxu0 %v109
    %212 = vmatpush1.msra.mxu0 %v108
    %213 = vmatprep.subr.mxu0 0.0
    %214 = vmatpush1.msra.mxu0 0.0
    %215 = vmatprep.subr.mxu0 0.0
    %216 = vmatpush1.msra.mxu0 0.0
    %217 = vmatprep.subr.mxu0 0.0
    %218 = vmatpush1.msra.mxu0 0.0
    %219 = vmatprep.subr.mxu0 0.0
    %220 = vmatpush1.msra.mxu0 0.0
    %221 = vmatprep.subr.mxu0 0.0
    %222 = vmatpush1.msra.mxu0 0.0
    %223 = vmatprep.subr.mxu0 0.0
    %224 = vmatpush1.msra.mxu0 0.0
    %225 = vmatprep.subr.mxu0 0.0
    %226 = vmatpush1.msra.mxu0 0.0
    %227 = vmatprep.subr.mxu0 0.0
    %228 = vmatpush1.msra.mxu0 0.0
    %229 = vmatprep.subr.mxu0 0.0
    %230 = vmatpush1.msra.mxu0 0.0
    %231 = vmatprep.subr.mxu0 0.0
    %232 = vmatpush1.msra.mxu0 0.0
    %233 = vmatprep.subr.mxu0 0.0
    %234 = vmatpush1.msra.mxu0 0.0
    %235 = vmatprep.subr.mxu0 0.0
    %236 = vmatpush1.msra.mxu0 0.0
    %237 = vmatprep.subr.mxu0 0.0
    %238 = vmatpush1.msra.mxu0 0.0
    %239 = vmatprep.subr.mxu0 0.0
    %240 = vmatpush1.msra.mxu0 0.0
    %241 = vmatprep.subr.mxu0 0.0
    %242 = vmatpush1.msra.mxu0 0.0
    %243 = vmatprep.subr.mxu0 0.0
    %244 = vmatpush1.msra.mxu0 0.0
    %245 = vmatprep.mubr.f32.mxu0 0.0
    %246 = vmatmul.mubr.f32.gmra.mrb[0].mxu0 0.0
    %v247 = vpop.f32.mrb[0].mxu0
    %v248 = vadd.f32 0.0, %v247
    %v249 = vpop.f32.mrb[0].mxu0
    %v250 = vadd.f32 0.0, %v249
    %251 = vdwg.mxu0
    %v252 = vadd.f32 %v42, %v177
    %v253 = vadd.f32 %v43, %v179
    %v254 = vadd.f32 %v44, %v248
    %v255 = vadd.f32 %v45, %v250
    %v256 = vxor.u32 %v252, 2147483648
    %v257 = vxor.u32 %v253, 2147483648
    %v258 = vxor.u32 %v254, 2147483648
    %v259 = vmul.f32 %v256, 1.442695
    %v260 = vpow.pop %v259
    %v261 = vmul.f32 %v257, 1.442695
    %v262 = vpow.pop %v261
    %v263 = vmul.f32 %v258, 1.442695
    %v264 = vpow.pop %v263
    %v265 = vadd.f32 %v260, 1.0
    %v266 = vadd.f32 %v262, 1.0
    %v267 = vadd.f32 %v264, 1.0
    %v268 = vrcp.pop %v265
    %v269 = vmul.f32 1.0, %v268
    %v270 = vrcp.pop %v266
    %v271 = vmul.f32 1.0, %v270
    %v272 = vrcp.pop %v267
    %v273 = vmul.f32 1.0, %v272
    %v274 = vtanh.pop %v255
    %v275 = vmul.f32 %v271, 0.0
    %v276 = vmul.f32 %v269, %v274
    %v277 = vadd.f32 %v275, %v276
    %v278 = vtanh.pop %v277
    %v279 = vmul.f32 %v273, %v278
    %280 = vst [vmem:[#allocation2] sm:$0xff] %v279
    %s281 = smul.u32 1, 4
    %s282 = smul.addr %s281, 8
    %s283 = scalar_lea.vmem %s0, %s282
    %v284 = vld [vmem:[%s283] sm:$0xff]
    %v285 = vld [vmem:[%s283 + $0x8] sm:$0xff]
    %v286 = vld [vmem:[%s283 + $0x10] sm:$0xff]
    %v287 = vld [vmem:[%s283 + $0x18] sm:$0xff]
    %v288 = vld [vmem:[#allocation5] sm:$0xff]
    %v289 = vld [vmem:[#allocation5 + $0x8] sm:$0xff]
    %v290 = vld [vmem:[#allocation5 + $0x10] sm:$0xff]
    %v291 = vld [vmem:[#allocation5 + $0x18] sm:$0xff]
    %v292 = vld [vmem:[#allocation5 + $0x20] sm:$0xff]
    %v293 = vld [vmem:[#allocation5 + $0x28] sm:$0xff]
    %v294 = vld [vmem:[#allocation5 + $0x30] sm:$0xff]
    %v295 = vld [vmem:[#allocation5 + $0x38] sm:$0xff]
    %v296 = vld [vmem:[#allocation5 + $0x40] sm:$0xff]
    %v297 = vld [vmem:[#allocation5 + $0x48] sm:$0xff]
    %v298 = vld [vmem:[#allocation5 + $0x50] sm:$0xff]
    %v299 = vld [vmem:[#allocation5 + $0x58] sm:$0xff]
    %v300 = vld [vmem:[#allocation5 + $0x60] sm:$0xff]
    %v301 = vld [vmem:[#allocation5 + $0x68] sm:$0xff]
    %v302 = vld [vmem:[#allocation5 + $0x70] sm:$0xff]
    %v303 = vld [vmem:[#allocation5 + $0x78] sm:$0xff]
    %v304 = vld [vmem:[#allocation5 + $0x80] sm:$0xff]
    %v305 = vld [vmem:[#allocation5 + $0x88] sm:$0xff]
    %v306 = vld [vmem:[#allocation5 + $0x90] sm:$0xff]
    %v307 = vld [vmem:[#allocation5 + $0x98] sm:$0xff]
    %v308 = vld [vmem:[#allocation5 + $0xa0] sm:$0xff]
    %v309 = vld [vmem:[#allocation5 + $0xa8] sm:$0xff]
    %v310 = vld [vmem:[#allocation5 + $0xb0] sm:$0xff]
    %v311 = vld [vmem:[#allocation5 + $0xb8] sm:$0xff]
    %v312 = vld [vmem:[#allocation5 + $0xc0] sm:$0xff]
    %v313 = vld [vmem:[#allocation5 + $0xc8] sm:$0xff]
    %v314 = vld [vmem:[#allocation5 + $0xd0] sm:$0xff]
    %v315 = vld [vmem:[#allocation5 + $0xd8] sm:$0xff]
    %v316 = vld [vmem:[#allocation5 + $0xe0] sm:$0xff]
    %v317 = vld [vmem:[#allocation5 + $0xe8] sm:$0xff]
    %v318 = vld [vmem:[#allocation5 + $0xf0] sm:$0xff]
    %v319 = vld [vmem:[#allocation5 + $0xf8] sm:$0xff]
    %v320 = vld [vmem:[#allocation5 + $0x100] sm:$0xff]
    %v321 = vld [vmem:[#allocation5 + $0x108] sm:$0xff]
    %v322 = vld [vmem:[#allocation5 + $0x110] sm:$0xff]
    %v323 = vld [vmem:[#allocation5 + $0x118] sm:$0xff]
    %v324 = vld [vmem:[#allocation5 + $0x120] sm:$0xff]
    %v325 = vld [vmem:[#allocation5 + $0x128] sm:$0xff]
    %v326 = vld [vmem:[#allocation5 + $0x130] sm:$0xff]
    %v327 = vld [vmem:[#allocation5 + $0x138] sm:$0xff]
    %v328 = vld [vmem:[#allocation5 + $0x140] sm:$0xff]
    %v329 = vld [vmem:[#allocation5 + $0x148] sm:$0xff]
    %v330 = vld [vmem:[#allocation5 + $0x150] sm:$0xff]
    %v331 = vld [vmem:[#allocation5 + $0x158] sm:$0xff]
    %v332 = vld [vmem:[#allocation5 + $0x160] sm:$0xff]
    %v333 = vld [vmem:[#allocation5 + $0x168] sm:$0xff]
    %v334 = vld [vmem:[#allocation5 + $0x170] sm:$0xff]
    %v335 = vld [vmem:[#allocation5 + $0x178] sm:$0xff]
    %v336 = vld [vmem:[#allocation5 + $0x180] sm:$0xff]
    %v337 = vld [vmem:[#allocation5 + $0x188] sm:$0xff]
    %v338 = vld [vmem:[#allocation5 + $0x190] sm:$0xff]
    %v339 = vld [vmem:[#allocation5 + $0x198] sm:$0xff]
    %v340 = vld [vmem:[#allocation5 + $0x1a0] sm:$0xff]
    %v341 = vld [vmem:[#allocation5 + $0x1a8] sm:$0xff]
    %v342 = vld [vmem:[#allocation5 + $0x1b0] sm:$0xff]
    %v343 = vld [vmem:[#allocation5 + $0x1b8] sm:$0xff]
    %v344 = vld [vmem:[#allocation5 + $0x1c0] sm:$0xff]
    %v345 = vld [vmem:[#allocation5 + $0x1c8] sm:$0xff]
    %v346 = vld [vmem:[#allocation5 + $0x1d0] sm:$0xff]
    %v347 = vld [vmem:[#allocation5 + $0x1d8] sm:$0xff]
    %v348 = vld [vmem:[#allocation5 + $0x1e0] sm:$0xff]
    %v349 = vld [vmem:[#allocation5 + $0x1e8] sm:$0xff]
    %v350 = vld [vmem:[#allocation5 + $0x1f0] sm:$0xff]
    %v351 = vld [vmem:[#allocation5 + $0x1f8] sm:$0xff]
    %352 = vmatprep.subr.mxu0 %v289
    %353 = vmatpush1.msra.mxu0 %v288
    %354 = vmatprep.subr.mxu0 %v293
    %355 = vmatpush1.msra.mxu0 %v292
    %356 = vmatprep.subr.mxu0 %v297
    %357 = vmatpush1.msra.mxu0 %v296
    %358 = vmatprep.subr.mxu0 %v301
    %359 = vmatpush1.msra.mxu0 %v300
    %360 = vmatprep.subr.mxu0 %v305
    %361 = vmatpush1.msra.mxu0 %v304
    %362 = vmatprep.subr.mxu0 %v309
    %363 = vmatpush1.msra.mxu0 %v308
    %364 = vmatprep.subr.mxu0 %v313
    %365 = vmatpush1.msra.mxu0 %v312
    %366 = vmatprep.subr.mxu0 %v317
    %367 = vmatpush1.msra.mxu0 %v316
    %368 = vmatprep.subr.mxu0 %v321
    %369 = vmatpush1.msra.mxu0 %v320
    %370 = vmatprep.subr.mxu0 %v325
    %371 = vmatpush1.msra.mxu0 %v324
    %372 = vmatprep.subr.mxu0 %v329
    %373 = vmatpush1.msra.mxu0 %v328
    %374 = vmatprep.subr.mxu0 %v333
    %375 = vmatpush1.msra.mxu0 %v332
    %376 = vmatprep.subr.mxu0 %v337
    %377 = vmatpush1.msra.mxu0 %v336
    %378 = vmatprep.subr.mxu0 %v341
    %379 = vmatpush1.msra.mxu0 %v340
    %380 = vmatprep.subr.mxu0 %v345
    %381 = vmatpush1.msra.mxu0 %v344
    %382 = vmatprep.subr.mxu0 %v349
    %383 = vmatpush1.msra.mxu0 %v348
    %384 = vmatprep.subr.mxu0 0.0
    %385 = vmatpush1.msra.mxu0 0.0
    %386 = vmatprep.subr.mxu0 0.0
    %387 = vmatpush1.msra.mxu0 0.0
    %388 = vmatprep.subr.mxu0 0.0
    %389 = vmatpush1.msra.mxu0 0.0
    %390 = vmatprep.subr.mxu0 0.0
    %391 = vmatpush1.msra.mxu0 0.0
    %392 = vmatprep.subr.mxu0 0.0
    %393 = vmatpush1.msra.mxu0 0.0
    %394 = vmatprep.subr.mxu0 0.0
    %395 = vmatpush1.msra.mxu0 0.0
    %396 = vmatprep.subr.mxu0 0.0
    %397 = vmatpush1.msra.mxu0 0.0
    %398 = vmatprep.subr.mxu0 0.0
    %399 = vmatpush1.msra.mxu0 0.0
    %400 = vmatprep.subr.mxu0 0.0
    %401 = vmatpush1.msra.mxu0 0.0
    %402 = vmatprep.subr.mxu0 0.0
    %403 = vmatpush1.msra.mxu0 0.0
    %404 = vmatprep.subr.mxu0 0.0
    %405 = vmatpush1.msra.mxu0 0.0
    %406 = vmatprep.subr.mxu0 0.0
    %407 = vmatpush1.msra.mxu0 0.0
    %408 = vmatprep.subr.mxu0 0.0
    %409 = vmatpush1.msra.mxu0 0.0
    %410 = vmatprep.subr.mxu0 0.0
    %411 = vmatpush1.msra.mxu0 0.0
    %412 = vmatprep.subr.mxu0 0.0
    %413 = vmatpush1.msra.mxu0 0.0
    %414 = vmatprep.subr.mxu0 0.0
    %415 = vmatpush1.msra.mxu0 0.0
    %416 = vmatprep.mubr.f32.mxu0 0.0
    %417 = vmatmul.mubr.f32.gmra.mrb[0].mxu0 %v279
    %v418 = vpop.f32.mrb[0].mxu0
    %v419 = vadd.f32 0.0, %v418
    %v420 = vpop.f32.mrb[0].mxu0
    %v421 = vadd.f32 0.0, %v420
    %422 = vdwg.mxu0
    %423 = vmatprep.subr.mxu0 %v291
    %424 = vmatpush1.msra.mxu0 %v290
    %425 = vmatprep.subr.mxu0 %v295
    %426 = vmatpush1.msra.mxu0 %v294
    %427 = vmatprep.subr.mxu0 %v299
    %428 = vmatpush1.msra.mxu0 %v298
    %429 = vmatprep.subr.mxu0 %v303
    %430 = vmatpush1.msra.mxu0 %v302
    %431 = vmatprep.subr.mxu0 %v307
    %432 = vmatpush1.msra.mxu0 %v306
    %433 = vmatprep.subr.mxu0 %v311
    %434 = vmatpush1.msra.mxu0 %v310
    %435 = vmatprep.subr.mxu0 %v315
    %436 = vmatpush1.msra.mxu0 %v314
    %437 = vmatprep.subr.mxu0 %v319
    %438 = vmatpush1.msra.mxu0 %v318
    %439 = vmatprep.subr.mxu0 %v323
    %440 = vmatpush1.msra.mxu0 %v322
    %441 = vmatprep.subr.mxu0 %v327
    %442 = vmatpush1.msra.mxu0 %v326
    %443 = vmatprep.subr.mxu0 %v331
    %444 = vmatpush1.msra.mxu0 %v330
    %445 = vmatprep.subr.mxu0 %v335
    %446 = vmatpush1.msra.mxu0 %v334
    %447 = vmatprep.subr.mxu0 %v339
    %448 = vmatpush1.msra.mxu0 %v338
    %449 = vmatprep.subr.mxu0 %v343
    %450 = vmatpush1.msra.mxu0 %v342
    %451 = vmatprep.subr.mxu0 %v347
    %452 = vmatpush1.msra.mxu0 %v346
    %453 = vmatprep.subr.mxu0 %v351
    %454 = vmatpush1.msra.mxu0 %v350
    %455 = vmatprep.subr.mxu0 0.0
    %456 = vmatpush1.msra.mxu0 0.0
    %457 = vmatprep.subr.mxu0 0.0
    %458 = vmatpush1.msra.mxu0 0.0
    %459 = vmatprep.subr.mxu0 0.0
    %460 = vmatpush1.msra.mxu0 0.0
    %461 = vmatprep.subr.mxu0 0.0
    %462 = vmatpush1.msra.mxu0 0.0
    %463 = vmatprep.subr.mxu0 0.0
    %464 = vmatpush1.msra.mxu0 0.0
    %465 = vmatprep.subr.mxu0 0.0
    %466 = vmatpush1.msra.mxu0 0.0
    %467 = vmatprep.subr.mxu0 0.0
    %468 = vmatpush1.msra.mxu0 0.0
    %469 = vmatprep.subr.mxu0 0.0
    %470 = vmatpush1.msra.mxu0 0.0
    %471 = vmatprep.subr.mxu0 0.0
    %472 = vmatpush1.msra.mxu0 0.0
    %473 = vmatprep.subr.mxu0 0.0
    %474 = vmatpush1.msra.mxu0 0.0
    %475 = vmatprep.subr.mxu0 0.0
    %476 = vmatpush1.msra.mxu0 0.0
    %477 = vmatprep.subr.mxu0 0.0
    %478 = vmatpush1.msra.mxu0 0.0
    %479 = vmatprep.subr.mxu0 0.0
    %480 = vmatpush1.msra.mxu0 0.0
    %481 = vmatprep.subr.mxu0 0.0
    %482 = vmatpush1.msra.mxu0 0.0
    %483 = vmatprep.subr.mxu0 0.0
    %484 = vmatpush1.msra.mxu0 0.0
    %485 = vmatprep.subr.mxu0 0.0
    %486 = vmatpush1.msra.mxu0 0.0
    %487 = vmatprep.mubr.f32.mxu0 0.0
    %488 = vmatmul.mubr.f32.gmra.mrb[0].mxu0 %v279
    %v489 = vpop.f32.mrb[0].mxu0
    %v490 = vadd.f32 0.0, %v489
    %v491 = vpop.f32.mrb[0].mxu0
    %v492 = vadd.f32 0.0, %v491
    %493 = vdwg.mxu0
    %v494 = vadd.f32 %v284, %v419
    %v495 = vadd.f32 %v285, %v421
    %v496 = vadd.f32 %v286, %v490
    %v497 = vadd.f32 %v287, %v492
    %v498 = vxor.u32 %v494, 2147483648
    %v499 = vxor.u32 %v495, 2147483648
    %v500 = vxor.u32 %v496, 2147483648
    %v501 = vmul.f32 %v498, 1.442695
    %v502 = vpow.pop %v501
    %v503 = vmul.f32 %v499, 1.442695
    %v504 = vpow.pop %v503
    %v505 = vmul.f32 %v500, 1.442695
    %v506 = vpow.pop %v505
    %v507 = vadd.f32 %v502, 1.0
    %v508 = vadd.f32 %v504, 1.0
    %v509 = vadd.f32 %v506, 1.0
    %v510 = vrcp.pop %v507
    %v511 = vmul.f32 1.0, %v510
    %v512 = vrcp.pop %v508
    %v513 = vmul.f32 1.0, %v512
    %v514 = vrcp.pop %v509
    %v515 = vmul.f32 1.0, %v514
    %v516 = vtanh.pop %v497
    %v517 = vmul.f32 %v513, %v277
    %v518 = vmul.f32 %v511, %v516
    %v519 = vadd.f32 %v517, %v518
    %v520 = vtanh.pop %v519
    %v521 = vmul.f32 %v515, %v520
    %s522 = scalar_lea.vmem [#allocation2], 8
    %523 = vst [vmem:[%s522] sm:$0xff] %v521
    %s524 = smul.u32 2, 4
    %s525 = smul.addr %s524, 8
    %s526 = scalar_lea.vmem %s0, %s525
    %v527 = vld [vmem:[%s526] sm:$0xff]
    %v528 = vld [vmem:[%s526 + $0x8] sm:$0xff]
    %v529 = vld [vmem:[%s526 + $0x10] sm:$0xff]
    %v530 = vld [vmem:[%s526 + $0x18] sm:$0xff]
    %v531 = vld [vmem:[#allocation5] sm:$0xff]
    %v532 = vld [vmem:[#allocation5 + $0x8] sm:$0xff]
    %v533 = vld [vmem:[#allocation5 + $0x10] sm:$0xff]
    %v534 = vld [vmem:[#allocation5 + $0x18] sm:$0xff]
    %v535 = vld [vmem:[#allocation5 + $0x20] sm:$0xff]
    %v536 = vld [vmem:[#allocation5 + $0x28] sm:$0xff]
    %v537 = vld [vmem:[#allocation5 + $0x30] sm:$0xff]
    %v538 = vld [vmem:[#allocation5 + $0x38] sm:$0xff]
    %v539 = vld [vmem:[#allocation5 + $0x40] sm:$0xff]
    %v540 = vld [vmem:[#allocation5 + $0x48] sm:$0xff]
    %v541 = vld [vmem:[#allocation5 + $0x50] sm:$0xff]
    %v542 = vld [vmem:[#allocation5 + $0x58] sm:$0xff]
    %v543 = vld [vmem:[#allocation5 + $0x60] sm:$0xff]
    %v544 = vld [vmem:[#allocation5 + $0x68] sm:$0xff]
    %v545 = vld [vmem:[#allocation5 + $0x70] sm:$0xff]
    %v546 = vld [vmem:[#allocation5 + $0x78] sm:$0xff]
    %v547 = vld [vmem:[#allocation5 + $0x80] sm:$0xff]
    %v548 = vld [vmem:[#allocation5 + $0x88] sm:$0xff]
    %v549 = vld [vmem:[#allocation5 + $0x90] sm:$0xff]
    %v550 = vld [vmem:[#allocation5 + $0x98] sm:$0xff]
    %v551 = vld [vmem:[#allocation5 + $0xa0] sm:$0xff]
    %v552 = vld [vmem:[#allocation5 + $0xa8] sm:$0xff]
    %v553 = vld [vmem:[#allocation5 + $0xb0] sm:$0xff]
    %v554 = vld [vmem:[#allocation5 + $0xb8] sm:$0xff]
    %v555 = vld [vmem:[#allocation5 + $0xc0] sm:$0xff]
    %v556 = vld [vmem:[#allocation5 + $0xc8] sm:$0xff]
    %v557 = vld [vmem:[#allocation5 + $0xd0] sm:$0xff]
    %v558 = vld [vmem:[#allocation5 + $0xd8] sm:$0xff]
    %v559 = vld [vmem:[#allocation5 + $0xe0] sm:$0xff]
    %v560 = vld [vmem:[#allocation5 + $0xe8] sm:$0xff]
    %v561 = vld [vmem:[#allocation5 + $0xf0] sm:$0xff]
    %v562 = vld [vmem:[#allocation5 + $0xf8] sm:$0xff]
    %v563 = vld [vmem:[#allocation5 + $0x100] sm:$0xff]
    %v564 = vld [vmem:[#allocation5 + $0x108] sm:$0xff]
    %v565 = vld [vmem:[#allocation5 + $0x110] sm:$0xff]
    %v566 = vld [vmem:[#allocation5 + $0x118] sm:$0xff]
    %v567 = vld [vmem:[#allocation5 + $0x120] sm:$0xff]
    %v568 = vld [vmem:[#allocation5 + $0x128] sm:$0xff]
    %v569 = vld [vmem:[#allocation5 + $0x130] sm:$0xff]
    %v570 = vld [vmem:[#allocation5 + $0x138] sm:$0xff]
    %v571 = vld [vmem:[#allocation5 + $0x140] sm:$0xff]
    %v572 = vld [vmem:[#allocation5 + $0x148] sm:$0xff]
    %v573 = vld [vmem:[#allocation5 + $0x150] sm:$0xff]
    %v574 = vld [vmem:[#allocation5 + $0x158] sm:$0xff]
    %v575 = vld [vmem:[#allocation5 + $0x160] sm:$0xff]
    %v576 = vld [vmem:[#allocation5 + $0x168] sm:$0xff]
    %v577 = vld [vmem:[#allocation5 + $0x170] sm:$0xff]
    %v578 = vld [vmem:[#allocation5 + $0x178] sm:$0xff]
    %v579 = vld [vmem:[#allocation5 + $0x180] sm:$0xff]
    %v580 = vld [vmem:[#allocation5 + $0x188] sm:$0xff]
    %v581 = vld [vmem:[#allocation5 + $0x190] sm:$0xff]
    %v582 = vld [vmem:[#allocation5 + $0x198] sm:$0xff]
    %v583 = vld [vmem:[#allocation5 + $0x1a0] sm:$0xff]
    %v584 = vld [vmem:[#allocation5 + $0x1a8] sm:$0xff]
    %v585 = vld [vmem:[#allocation5 + $0x1b0] sm:$0xff]
    %v586 = vld [vmem:[#allocation5 + $0x1b8] sm:$0xff]
    %v587 = vld [vmem:[#allocation5 + $0x1c0] sm:$0xff]
    %v588 = vld [vmem:[#allocation5 + $0x1c8] sm:$0xff]
    %v589 = vld [vmem:[#allocation5 + $0x1d0] sm:$0xff]
    %v590 = vld [vmem:[#allocation5 + $0x1d8] sm:$0xff]
    %v591 = vld [vmem:[#allocation5 + $0x1e0] sm:$0xff]
    %v592 = vld [vmem:[#allocation5 + $0x1e8] sm:$0xff]
    %v593 = vld [vmem:[#allocation5 + $0x1f0] sm:$0xff]
    %v594 = vld [vmem:[#allocation5 + $0x1f8] sm:$0xff]
    %595 = vmatprep.subr.mxu0 %v532
    %596 = vmatpush1.msra.mxu0 %v531
    %597 = vmatprep.subr.mxu0 %v536
    %598 = vmatpush1.msra.mxu0 %v535
    %599 = vmatprep.subr.mxu0 %v540
    %600 = vmatpush1.msra.mxu0 %v539
    %601 = vmatprep.subr.mxu0 %v544
    %602 = vmatpush1.msra.mxu0 %v543
    %603 = vmatprep.subr.mxu0 %v548
    %604 = vmatpush1.msra.mxu0 %v547
    %605 = vmatprep.subr.mxu0 %v552
    %606 = vmatpush1.msra.mxu0 %v551
    %607 = vmatprep.subr.mxu0 %v556
    %608 = vmatpush1.msra.mxu0 %v555
    %609 = vmatprep.subr.mxu0 %v560
    %610 = vmatpush1.msra.mxu0 %v559
    %611 = vmatprep.subr.mxu0 %v564
    %612 = vmatpush1.msra.mxu0 %v563
    %613 = vmatprep.subr.mxu0 %v568
    %614 = vmatpush1.msra.mxu0 %v567
    %615 = vmatprep.subr.mxu0 %v572
    %616 = vmatpush1.msra.mxu0 %v571
    %617 = vmatprep.subr.mxu0 %v576
    %618 = vmatpush1.msra.mxu0 %v575
    %619 = vmatprep.subr.mxu0 %v580
    %620 = vmatpush1.msra.mxu0 %v579
    %621 = vmatprep.subr.mxu0 %v584
    %622 = vmatpush1.msra.mxu0 %v583
    %623 = vmatprep.subr.mxu0 %v588
    %624 = vmatpush1.msra.mxu0 %v587
    %625 = vmatprep.subr.mxu0 %v592
    %626 = vmatpush1.msra.mxu0 %v591
    %627 = vmatprep.subr.mxu0 0.0
    %628 = vmatpush1.msra.mxu0 0.0
    %629 = vmatprep.subr.mxu0 0.0
    %630 = vmatpush1.msra.mxu0 0.0
    %631 = vmatprep.subr.mxu0 0.0
    %632 = vmatpush1.msra.mxu0 0.0
    %633 = vmatprep.subr.mxu0 0.0
    %634 = vmatpush1.msra.mxu0 0.0
    %635 = vmatprep.subr.mxu0 0.0
    %636 = vmatpush1.msra.mxu0 0.0
    %637 = vmatprep.subr.mxu0 0.0
    %638 = vmatpush1.msra.mxu0 0.0
    %639 = vmatprep.subr.mxu0 0.0
    %640 = vmatpush1.msra.mxu0 0.0
    %641 = vmatprep.subr.mxu0 0.0
    %642 = vmatpush1.msra.mxu0 0.0
    %643 = vmatprep.subr.mxu0 0.0
    %644 = vmatpush1.msra.mxu0 0.0
    %645 = vmatprep.subr.mxu0 0.0
    %646 = vmatpush1.msra.mxu0 0.0
    %647 = vmatprep.subr.mxu0 0.0
    %648 = vmatpush1.msra.mxu0 0.0
    %649 = vmatprep.subr.mxu0 0.0
    %650 = vmatpush1.msra.mxu0 0.0
    %651 = vmatprep.subr.mxu0 0.0
    %652 = vmatpush1.msra.mxu0 0.0
    %653 = vmatprep.subr.mxu0 0.0
    %654 = vmatpush1.msra.mxu0 0.0
    %655 = vmatprep.subr.mxu0 0.0
    %656 = vmatpush1.msra.mxu0 0.0
    %657 = vmatprep.subr.mxu0 0.0
    %658 = vmatpush1.msra.mxu0 0.0
    %659 = vmatprep.mubr.f32.mxu0 0.0
    %660 = vmatmul.mubr.f32.gmra.mrb[0].mxu0 %v521
    %v661 = vpop.f32.mrb[0].mxu0
    %v662 = vadd.f32 0.0, %v661
    %v663 = vpop.f32.mrb[0].mxu0
    %v664 = vadd.f32 0.0, %v663
    %665 = vdwg.mxu0
    %666 = vmatprep.subr.mxu0 %v534
    %667 = vmatpush1.msra.mxu0 %v533
    %668 = vmatprep.subr.mxu0 %v538
    %669 = vmatpush1.msra.mxu0 %v537
    %670 = vmatprep.subr.mxu0 %v542
    %671 = vmatpush1.msra.mxu0 %v541
    %672 = vmatprep.subr.mxu0 %v546
    %673 = vmatpush1.msra.mxu0 %v545
    %674 = vmatprep.subr.mxu0 %v550
    %675 = vmatpush1.msra.mxu0 %v549
    %676 = vmatprep.subr.mxu0 %v554
    %677 = vmatpush1.msra.mxu0 %v553
    %678 = vmatprep.subr.mxu0 %v558
    %679 = vmatpush1.msra.mxu0 %v557
    %680 = vmatprep.subr.mxu0 %v562
    %681 = vmatpush1.msra.mxu0 %v561
    %682 = vmatprep.subr.mxu0 %v566
    %683 = vmatpush1.msra.mxu0 %v565
    %684 = vmatprep.subr.mxu0 %v570
    %685 = vmatpush1.msra.mxu0 %v569
    %686 = vmatprep.subr.mxu0 %v574
    %687 = vmatpush1.msra.mxu0 %v573
    %688 = vmatprep.subr.mxu0 %v578
    %689 = vmatpush1.msra.mxu0 %v577
    %690 = vmatprep.subr.mxu0 %v582
    %691 = vmatpush1.msra.mxu0 %v581
    %692 = vmatprep.subr.mxu0 %v586
    %693 = vmatpush1.msra.mxu0 %v585
    %694 = vmatprep.subr.mxu0 %v590
    %695 = vmatpush1.msra.mxu0 %v589
    %696 = vmatprep.subr.mxu0 %v594
    %697 = vmatpush1.msra.mxu0 %v593
    %698 = vmatprep.subr.mxu0 0.0
    %699 = vmatpush1.msra.mxu0 0.0
    %700 = vmatprep.subr.mxu0 0.0
    %701 = vmatpush1.msra.mxu0 0.0
    %702 = vmatprep.subr.mxu0 0.0
    %703 = vmatpush1.msra.mxu0 0.0
    %704 = vmatprep.subr.mxu0 0.0
    %705 = vmatpush1.msra.mxu0 0.0
    %706 = vmatprep.subr.mxu0 0.0
    %707 = vmatpush1.msra.mxu0 0.0
    %708 = vmatprep.subr.mxu0 0.0
    %709 = vmatpush1.msra.mxu0 0.0
    %710 = vmatprep.subr.mxu0 0.0
    %711 = vmatpush1.msra.mxu0 0.0
    %712 = vmatprep.subr.mxu0 0.0
    %713 = vmatpush1.msra.mxu0 0.0
    %714 = vmatprep.subr.mxu0 0.0
    %715 = vmatpush1.msra.mxu0 0.0
    %716 = vmatprep.subr.mxu0 0.0
    %717 = vmatpush1.msra.mxu0 0.0
    %718 = vmatprep.subr.mxu0 0.0
    %719 = vmatpush1.msra.mxu0 0.0
    %720 = vmatprep.subr.mxu0 0.0
    %721 = vmatpush1.msra.mxu0 0.0
    %722 = vmatprep.subr.mxu0 0.0
    %723 = vmatpush1.msra.mxu0 0.0
    %724 = vmatprep.subr.mxu0 0.0
    %725 = vmatpush1.msra.mxu0 0.0
    %726 = vmatprep.subr.mxu0 0.0
    %727 = vmatpush1.msra.mxu0 0.0
    %728 = vmatprep.subr.mxu0 0.0
    %729 = vmatpush1.msra.mxu0 0.0
    %730 = vmatprep.mubr.f32.mxu0 0.0
    %731 = vmatmul.mubr.f32.gmra.mrb[0].mxu0 %v521
    %v732 = vpop.f32.mrb[0].mxu0
    %v733 = vadd.f32 0.0, %v732
    %v734 = vpop.f32.mrb[0].mxu0
    %v735 = vadd.f32 0.0, %v734
    %736 = vdwg.mxu0
    %v737 = vadd.f32 %v527, %v662
    %v738 = vadd.f32 %v528, %v664
    %v739 = vadd.f32 %v529, %v733
    %v740 = vadd.f32 %v530, %v735
    %v741 = vxor.u32 %v737, 2147483648
    %v742 = vxor.u32 %v738, 2147483648
    %v743 = vxor.u32 %v739, 2147483648
    %v744 = vmul.f32 %v741, 1.442695
    %v745 = vpow.pop %v744
    %v746 = vmul.f32 %v742, 1.442695
    %v747 = vpow.pop %v746
    %v748 = vmul.f32 %v743, 1.442695
    %v749 = vpow.pop %v748
    %v750 = vadd.f32 %v745, 1.0
    %v751 = vadd.f32 %v747, 1.0
    %v752 = vadd.f32 %v749, 1.0
    %v753 = vrcp.pop %v750
    %v754 = vmul.f32 1.0, %v753
    %v755 = vrcp.pop %v751
    %v756 = vmul.f32 1.0, %v755
    %v757 = vrcp.pop %v752
    %v758 = vmul.f32 1.0, %v757
    %v759 = vtanh.pop %v740
    %v760 = vmul.f32 %v756, %v519
    %v761 = vmul.f32 %v754, %v759
    %v762 = vadd.f32 %v760, %v761
    %v763 = vtanh.pop %v762
    %v764 = vmul.f32 %v758, %v763
    %s765 = scalar_lea.vmem [#allocation2], 16
    %766 = vst [vmem:[%s765] sm:$0xff] %v764
    %s767 = smul.u32 3, 4
    %s768 = smul.addr %s767, 8
    %s769 = scalar_lea.vmem %s0, %s768
    %v770 = vld [vmem:[%s769] sm:$0xff]
    %v771 = vld [vmem:[%s769 + $0x8] sm:$0xff]
    %v772 = vld [vmem:[%s769 + $0x10] sm:$0xff]
    %v773 = vld [vmem:[%s769 + $0x18] sm:$0xff]
    %v774 = vld [vmem:[#allocation5] sm:$0xff]
    %v775 = vld [vmem:[#allocation5 + $0x8] sm:$0xff]
    %v776 = vld [vmem:[#allocation5 + $0x10] sm:$0xff]
    %v777 = vld [vmem:[#allocation5 + $0x18] sm:$0xff]
    %v778 = vld [vmem:[#allocation5 + $0x20] sm:$0xff]
    %v779 = vld [vmem:[#allocation5 + $0x28] sm:$0xff]
    %v780 = vld [vmem:[#allocation5 + $0x30] sm:$0xff]
    %v781 = vld [vmem:[#allocation5 + $0x38] sm:$0xff]
    %v782 = vld [vmem:[#allocation5 + $0x40] sm:$0xff]
    %v783 = vld [vmem:[#allocation5 + $0x48] sm:$0xff]
    %v784 = vld [vmem:[#allocation5 + $0x50] sm:$0xff]
    %v785 = vld [vmem:[#allocation5 + $0x58] sm:$0xff]
    %v786 = vld [vmem:[#allocation5 + $0x60] sm:$0xff]
    %v787 = vld [vmem:[#allocation5 + $0x68] sm:$0xff]
    %v788 = vld [vmem:[#allocation5 + $0x70] sm:$0xff]
    %v789 = vld [vmem:[#allocation5 + $0x78] sm:$0xff]
    %v790 = vld [vmem:[#allocation5 + $0x80] sm:$0xff]
    %v791 = vld [vmem:[#allocation5 + $0x88] sm:$0xff]
    %v792 = vld [vmem:[#allocation5 + $0x90] sm:$0xff]
    %v793 = vld [vmem:[#allocation5 + $0x98] sm:$0xff]
    %v794 = vld [vmem:[#allocation5 + $0xa0] sm:$0xff]
    %v795 = vld [vmem:[#allocation5 + $0xa8] sm:$0xff]
    %v796 = vld [vmem:[#allocation5 + $0xb0] sm:$0xff]
    %v797 = vld [vmem:[#allocation5 + $0xb8] sm:$0xff]
    %v798 = vld [vmem:[#allocation5 + $0xc0] sm:$0xff]
    %v799 = vld [vmem:[#allocation5 + $0xc8] sm:$0xff]
    %v800 = vld [vmem:[#allocation5 + $0xd0] sm:$0xff]
    %v801 = vld [vmem:[#allocation5 + $0xd8] sm:$0xff]
    %v802 = vld [vmem:[#allocation5 + $0xe0] sm:$0xff]
    %v803 = vld [vmem:[#allocation5 + $0xe8] sm:$0xff]
    %v804 = vld [vmem:[#allocation5 + $0xf0] sm:$0xff]
    %v805 = vld [vmem:[#allocation5 + $0xf8] sm:$0xff]
    %v806 = vld [vmem:[#allocation5 + $0x100] sm:$0xff]
    %v807 = vld [vmem:[#allocation5 + $0x108] sm:$0xff]
    %v808 = vld [vmem:[#allocation5 + $0x110] sm:$0xff]
    %v809 = vld [vmem:[#allocation5 + $0x118] sm:$0xff]
    %v810 = vld [vmem:[#allocation5 + $0x120] sm:$0xff]
    %v811 = vld [vmem:[#allocation5 + $0x128] sm:$0xff]
    %v812 = vld [vmem:[#allocation5 + $0x130] sm:$0xff]
    %v813 = vld [vmem:[#allocation5 + $0x138] sm:$0xff]
    %v814 = vld [vmem:[#allocation5 + $0x140] sm:$0xff]
    %v815 = vld [vmem:[#allocation5 + $0x148] sm:$0xff]
    %v816 = vld [vmem:[#allocation5 + $0x150] sm:$0xff]
    %v817 = vld [vmem:[#allocation5 + $0x158] sm:$0xff]
    %v818 = vld [vmem:[#allocation5 + $0x160] sm:$0xff]
    %v819 = vld [vmem:[#allocation5 + $0x168] sm:$0xff]
    %v820 = vld [vmem:[#allocation5 + $0x170] sm:$0xff]
    %v821 = vld [vmem:[#allocation5 + $0x178] sm:$0xff]
    %v822 = vld [vmem:[#allocation5 + $0x180] sm:$0xff]
    %v823 = vld [vmem:[#allocation5 + $0x188] sm:$0xff]
    %v824 = vld [vmem:[#allocation5 + $0x190] sm:$0xff]
    %v825 = vld [vmem:[#allocation5 + $0x198] sm:$0xff]
    %v826 = vld [vmem:[#allocation5 + $0x1a0] sm:$0xff]
    %v827 = vld [vmem:[#allocation5 + $0x1a8] sm:$0xff]
    %v828 = vld [vmem:[#allocation5 + $0x1b0] sm:$0xff]
    %v829 = vld [vmem:[#allocation5 + $0x1b8] sm:$0xff]
    %v830 = vld [vmem:[#allocation5 + $0x1c0] sm:$0xff]
    %v831 = vld [vmem:[#allocation5 + $0x1c8] sm:$0xff]
    %v832 = vld [vmem:[#allocation5 + $0x1d0] sm:$0xff]
    %v833 = vld [vmem:[#allocation5 + $0x1d8] sm:$0xff]
    %v834 = vld [vmem:[#allocation5 + $0x1e0] sm:$0xff]
    %v835 = vld [vmem:[#allocation5 + $0x1e8] sm:$0xff]
    %v836 = vld [vmem:[#allocation5 + $0x1f0] sm:$0xff]
    %v837 = vld [vmem:[#allocation5 + $0x1f8] sm:$0xff]
    %838 = vmatprep.subr.mxu0 %v775
    %839 = vmatpush1.msra.mxu0 %v774
    %840 = vmatprep.subr.mxu0 %v779
    %841 = vmatpush1.msra.mxu0 %v778
    %842 = vmatprep.subr.mxu0 %v783
    %843 = vmatpush1.msra.mxu0 %v782
    %844 = vmatprep.subr.mxu0 %v787
    %845 = vmatpush1.msra.mxu0 %v786
    %846 = vmatprep.subr.mxu0 %v791
    %847 = vmatpush1.msra.mxu0 %v790
    %848 = vmatprep.subr.mxu0 %v795
    %849 = vmatpush1.msra.mxu0 %v794
    %850 = vmatprep.subr.mxu0 %v799
    %851 = vmatpush1.msra.mxu0 %v798
    %852 = vmatprep.subr.mxu0 %v803
    %853 = vmatpush1.msra.mxu0 %v802
    %854 = vmatprep.subr.mxu0 %v807
    %855 = vmatpush1.msra.mxu0 %v806
    %856 = vmatprep.subr.mxu0 %v811
    %857 = vmatpush1.msra.mxu0 %v810
    %858 = vmatprep.subr.mxu0 %v815
    %859 = vmatpush1.msra.mxu0 %v814
    %860 = vmatprep.subr.mxu0 %v819
    %861 = vmatpush1.msra.mxu0 %v818
    %862 = vmatprep.subr.mxu0 %v823
    %863 = vmatpush1.msra.mxu0 %v822
    %864 = vmatprep.subr.mxu0 %v827
    %865 = vmatpush1.msra.mxu0 %v826
    %866 = vmatprep.subr.mxu0 %v831
    %867 = vmatpush1.msra.mxu0 %v830
    %868 = vmatprep.subr.mxu0 %v835
    %869 = vmatpush1.msra.mxu0 %v834
    %870 = vmatprep.subr.mxu0 0.0
    %871 = vmatpush1.msra.mxu0 0.0
    %872 = vmatprep.subr.mxu0 0.0
    %873 = vmatpush1.msra.mxu0 0.0
    %874 = vmatprep.subr.mxu0 0.0
    %875 = vmatpush1.msra.mxu0 0.0
    %876 = vmatprep.subr.mxu0 0.0
    %877 = vmatpush1.msra.mxu0 0.0
    %878 = vmatprep.subr.mxu0 0.0
    %879 = vmatpush1.msra.mxu0 0.0
    %880 = vmatprep.subr.mxu0 0.0
    %881 = vmatpush1.msra.mxu0 0.0
    %882 = vmatprep.subr.mxu0 0.0
    %883 = vmatpush1.msra.mxu0 0.0
    %884 = vmatprep.subr.mxu0 0.0
    %885 = vmatpush1.msra.mxu0 0.0
    %886 = vmatprep.subr.mxu0 0.0
    %887 = vmatpush1.msra.mxu0 0.0
    %888 = vmatprep.subr.mxu0 0.0
    %889 = vmatpush1.msra.mxu0 0.0
    %890 = vmatprep.subr.mxu0 0.0
    %891 = vmatpush1.msra.mxu0 0.0
    %892 = vmatprep.subr.mxu0 0.0
    %893 = vmatpush1.msra.mxu0 0.0
    %894 = vmatprep.subr.mxu0 0.0
    %895 = vmatpush1.msra.mxu0 0.0
    %896 = vmatprep.subr.mxu0 0.0
    %897 = vmatpush1.msra.mxu0 0.0
    %898 = vmatprep.subr.mxu0 0.0
    %899 = vmatpush1.msra.mxu0 0.0
    %900 = vmatprep.subr.mxu0 0.0
    %901 = vmatpush1.msra.mxu0 0.0
    %902 = vmatprep.mubr.f32.mxu0 0.0
    %903 = vmatmul.mubr.f32.gmra.mrb[0].mxu0 %v764
    %v904 = vpop.f32.mrb[0].mxu0
    %v905 = vadd.f32 0.0, %v904
    %v906 = vpop.f32.mrb[0].mxu0
    %v907 = vadd.f32 0.0, %v906
    %908 = vdwg.mxu0
    %909 = vmatprep.subr.mxu0 %v777
    %910 = vmatpush1.msra.mxu0 %v776
    %911 = vmatprep.subr.mxu0 %v781
    %912 = vmatpush1.msra.mxu0 %v780
    %913 = vmatprep.subr.mxu0 %v785
    %914 = vmatpush1.msra.mxu0 %v784
    %915 = vmatprep.subr.mxu0 %v789
    %916 = vmatpush1.msra.mxu0 %v788
    %917 = vmatprep.subr.mxu0 %v793
    %918 = vmatpush1.msra.mxu0 %v792
    %919 = vmatprep.subr.mxu0 %v797
    %920 = vmatpush1.msra.mxu0 %v796
    %921 = vmatprep.subr.mxu0 %v801
    %922 = vmatpush1.msra.mxu0 %v800
    %923 = vmatprep.subr.mxu0 %v805
    %924 = vmatpush1.msra.mxu0 %v804
    %925 = vmatprep.subr.mxu0 %v809
    %926 = vmatpush1.msra.mxu0 %v808
    %927 = vmatprep.subr.mxu0 %v813
    %928 = vmatpush1.msra.mxu0 %v812
    %929 = vmatprep.subr.mxu0 %v817
    %930 = vmatpush1.msra.mxu0 %v816
    %931 = vmatprep.subr.mxu0 %v821
    %932 = vmatpush1.msra.mxu0 %v820
    %933 = vmatprep.subr.mxu0 %v825
    %934 = vmatpush1.msra.mxu0 %v824
    %935 = vmatprep.subr.mxu0 %v829
    %936 = vmatpush1.msra.mxu0 %v828
    %937 = vmatprep.subr.mxu0 %v833
    %938 = vmatpush1.msra.mxu0 %v832
    %939 = vmatprep.subr.mxu0 %v837
    %940 = vmatpush1.msra.mxu0 %v836
    %941 = vmatprep.subr.mxu0 0.0
    %942 = vmatpush1.msra.mxu0 0.0
    %943 = vmatprep.subr.mxu0 0.0
    %944 = vmatpush1.msra.mxu0 0.0
    %945 = vmatprep.subr.mxu0 0.0
    %946 = vmatpush1.msra.mxu0 0.0
    %947 = vmatprep.subr.mxu0 0.0
    %948 = vmatpush1.msra.mxu0 0.0
    %949 = vmatprep.subr.mxu0 0.0
    %950 = vmatpush1.msra.mxu0 0.0
    %951 = vmatprep.subr.mxu0 0.0
    %952 = vmatpush1.msra.mxu0 0.0
    %953 = vmatprep.subr.mxu0 0.0
    %954 = vmatpush1.msra.mxu0 0.0
    %955 = vmatprep.subr.mxu0 0.0
    %956 = vmatpush1.msra.mxu0 0.0
    %957 = vmatprep.subr.mxu0 0.0
    %958 = vmatpush1.msra.mxu0 0.0
    %959 = vmatprep.subr.mxu0 0.0
    %960 = vmatpush1.msra.mxu0 0.0
    %961 = vmatprep.subr.mxu0 0.0
    %962 = vmatpush1.msra.mxu0 0.0
    %963 = vmatprep.subr.mxu0 0.0
    %964 = vmatpush1.msra.mxu0 0.0
    %965 = vmatprep.subr.mxu0 0.0
    %966 = vmatpush1.msra.mxu0 0.0
    %967 = vmatprep.subr.mxu0 0.0
    %968 = vmatpush1.msra.mxu0 0.0
    %969 = vmatprep.subr.mxu0 0.0
    %970 = vmatpush1.msra.mxu0 0.0
    %971 = vmatprep.subr.mxu0 0.0
    %972 = vmatpush1.msra.mxu0 0.0
    %973 = vmatprep.mubr.f32.mxu0 0.0
    %974 = vmatmul.mubr.f32.gmra.mrb[0].mxu0 %v764
    %v975 = vpop.f32.mrb[0].mxu0
    %v976 = vadd.f32 0.0, %v975
    %v977 = vpop.f32.mrb[0].mxu0
    %v978 = vadd.f32 0.0, %v977
    %979 = vdwg.mxu0
    %v980 = vadd.f32 %v770, %v905
    %v981 = vadd.f32 %v771, %v907
    %v982 = vadd.f32 %v772, %v976
    %v983 = vadd.f32 %v773, %v978
    %v984 = vxor.u32 %v980, 2147483648
    %v985 = vxor.u32 %v981, 2147483648
    %v986 = vxor.u32 %v982, 2147483648
    %v987 = vmul.f32 %v984, 1.442695
    %v988 = vpow.pop %v987
    %v989 = vmul.f32 %v985, 1.442695
    %v990 = vpow.pop %v989
    %v991 = vmul.f32 %v986, 1.442695
    %v992 = vpow.pop %v991
    %v993 = vadd.f32 %v988, 1.0
    %v994 = vadd.f32 %v990, 1.0
    %v995 = vadd.f32 %v992, 1.0
    %v996 = vrcp.pop %v993
    %v997 = vmul.f32 1.0, %v996
    %v998 = vrcp.pop %v994
    %v999 = vmul.f32 1.0, %v998
    %v1000 = vrcp.pop %v995
    %v1001 = vmul.f32 1.0, %v1000
    %v1002 = vtanh.pop %v983
    %v1003 = vmul.f32 %v999, %v762
    %v1004 = vmul.f32 %v997, %v1002
    %v1005 = vadd.f32 %v1003, %v1004
    %v1006 = vtanh.pop %v1005
    %v1007 = vmul.f32 %v1001, %v1006
    %s1008 = scalar_lea.vmem [#allocation2], 24
    %1009 = vst [vmem:[%s1008] sm:$0xff] %v1007
    %s1010 = smul.u32 4, 4
    %s1011 = smul.addr %s1010, 8
    %s1012 = scalar_lea.vmem %s0, %s1011
    %v1013 = vld [vmem:[%s1012] sm:$0xff]
    %v1014 = vld [vmem:[%s1012 + $0x8] sm:$0xff]
    %v1015 = vld [vmem:[%s1012 + $0x10] sm:$0xff]
    %v1016 = vld [vmem:[%s1012 + $0x18] sm:$0xff]
    %v1017 = vld [vmem:[#allocation5] sm:$0xff]
    %v1018 = vld [vmem:[#allocation5 + $0x8] sm:$0xff]
    %v1019 = vld [vmem:[#allocation5 + $0x10] sm:$0xff]
    %v1020 = vld [vmem:[#allocation5 + $0x18] sm:$0xff]
    %v1021 = vld [vmem:[#allocation5 + $0x20] sm:$0xff]
    %v1022 = vld [vmem:[#allocation5 + $0x28] sm:$0xff]
    %v1023 = vld [vmem:[#allocation5 + $0x30] sm:$0xff]
    %v1024 = vld [vmem:[#allocation5 + $0x38] sm:$0xff]
    %v1025 = vld [vmem:[#allocation5 + $0x40] sm:$0xff]
    %v1026 = vld [vmem:[#allocation5 + $0x48] sm:$0xff]
    %v1027 = vld [vmem:[#allocation5 + $0x50] sm:$0xff]
    %v1028 = vld [vmem:[#allocation5 + $0x58] sm:$0xff]
    %v1029 = vld [vmem:[#allocation5 + $0x60] sm:$0xff]
    %v1030 = vld [vmem:[#allocation5 + $0x68] sm:$0xff]
    %v1031 = vld [vmem:[#allocation5 + $0x70] sm:$0xff]
    %v1032 = vld [vmem:[#allocation5 + $0x78] sm:$0xff]
    %v1033 = vld [vmem:[#allocation5 + $0x80] sm:$0xff]
    %v1034 = vld [vmem:[#allocation5 + $0x88] sm:$0xff]
    %v1035 = vld [vmem:[#allocation5 + $0x90] sm:$0xff]
    %v1036 = vld [vmem:[#allocation5 + $0x98] sm:$0xff]
    %v1037 = vld [vmem:[#allocation5 + $0xa0] sm:$0xff]
    %v1038 = vld [vmem:[#allocation5 + $0xa8] sm:$0xff]
    %v1039 = vld [vmem:[#allocation5 + $0xb0] sm:$0xff]
    %v1040 = vld [vmem:[#allocation5 + $0xb8] sm:$0xff]
    %v1041 = vld [vmem:[#allocation5 + $0xc0] sm:$0xff]
    %v1042 = vld [vmem:[#allocation5 + $0xc8] sm:$0xff]
    %v1043 = vld [vmem:[#allocation5 + $0xd0] sm:$0xff]
    %v1044 = vld [vmem:[#allocation5 + $0xd8] sm:$0xff]
    %v1045 = vld [vmem:[#allocation5 + $0xe0] sm:$0xff]
    %v1046 = vld [vmem:[#allocation5 + $0xe8] sm:$0xff]
    %v1047 = vld [vmem:[#allocation5 + $0xf0] sm:$0xff]
    %v1048 = vld [vmem:[#allocation5 + $0xf8] sm:$0xff]
    %v1049 = vld [vmem:[#allocation5 + $0x100] sm:$0xff]
    %v1050 = vld [vmem:[#allocation5 + $0x108] sm:$0xff]
    %v1051 = vld [vmem:[#allocation5 + $0x110] sm:$0xff]
    %v1052 = vld [vmem:[#allocation5 + $0x118] sm:$0xff]
    %v1053 = vld [vmem:[#allocation5 + $0x120] sm:$0xff]
    %v1054 = vld [vmem:[#allocation5 + $0x128] sm:$0xff]
    %v1055 = vld [vmem:[#allocation5 + $0x130] sm:$0xff]
    %v1056 = vld [vmem:[#allocation5 + $0x138] sm:$0xff]
    %v1057 = vld [vmem:[#allocation5 + $0x140] sm:$0xff]
    %v1058 = vld [vmem:[#allocation5 + $0x148] sm:$0xff]
    %v1059 = vld [vmem:[#allocation5 + $0x150] sm:$0xff]
    %v1060 = vld [vmem:[#allocation5 + $0x158] sm:$0xff]
    %v1061 = vld [vmem:[#allocation5 + $0x160] sm:$0xff]
    %v1062 = vld [vmem:[#allocation5 + $0x168] sm:$0xff]
    %v1063 = vld [vmem:[#allocation5 + $0x170] sm:$0xff]
    %v1064 = vld [vmem:[#allocation5 + $0x178] sm:$0xff]
    %v1065 = vld [vmem:[#allocation5 + $0x180] sm:$0xff]
    %v1066 = vld [vmem:[#allocation5 + $0x188] sm:$0xff]
    %v1067 = vld [vmem:[#allocation5 + $0x190] sm:$0xff]
    %v1068 = vld [vmem:[#allocation5 + $0x198] sm:$0xff]
    %v1069 = vld [vmem:[#allocation5 + $0x1a0] sm:$0xff]
    %v1070 = vld [vmem:[#allocation5 + $0x1a8] sm:$0xff]
    %v1071 = vld [vmem:[#allocation5 + $0x1b0] sm:$0xff]
    %v1072 = vld [vmem:[#allocation5 + $0x1b8] sm:$0xff]
    %v1073 = vld [vmem:[#allocation5 + $0x1c0] sm:$0xff]
    %v1074 = vld [vmem:[#allocation5 + $0x1c8] sm:$0xff]
    %v1075 = vld [vmem:[#allocation5 + $0x1d0] sm:$0xff]
    %v1076 = vld [vmem:[#allocation5 + $0x1d8] sm:$0xff]
    %v1077 = vld [vmem:[#allocation5 + $0x1e0] sm:$0xff]
    %v1078 = vld [vmem:[#allocation5 + $0x1e8] sm:$0xff]
    %v1079 = vld [vmem:[#allocation5 + $0x1f0] sm:$0xff]
    %v1080 = vld [vmem:[#allocation5 + $0x1f8] sm:$0xff]
    %1081 = vmatprep.subr.mxu0 %v1018
    %1082 = vmatpush1.msra.mxu0 %v1017
    %1083 = vmatprep.subr.mxu0 %v1022
    %1084 = vmatpush1.msra.mxu0 %v1021
    %1085 = vmatprep.subr.mxu0 %v1026
    %1086 = vmatpush1.msra.mxu0 %v1025
    %1087 = vmatprep.subr.mxu0 %v1030
    %1088 = vmatpush1.msra.mxu0 %v1029
    %1089 = vmatprep.subr.mxu0 %v1034
    %1090 = vmatpush1.msra.mxu0 %v1033
    %1091 = vmatprep.subr.mxu0 %v1038
    %1092 = vmatpush1.msra.mxu0 %v1037
    %1093 = vmatprep.subr.mxu0 %v1042
    %1094 = vmatpush1.msra.mxu0 %v1041
    %1095 = vmatprep.subr.mxu0 %v1046
    %1096 = vmatpush1.msra.mxu0 %v1045
    %1097 = vmatprep.subr.mxu0 %v1050
    %1098 = vmatpush1.msra.mxu0 %v1049
    %1099 = vmatprep.subr.mxu0 %v1054
    %1100 = vmatpush1.msra.mxu0 %v1053
    %1101 = vmatprep.subr.mxu0 %v1058
    %1102 = vmatpush1.msra.mxu0 %v1057
    %1103 = vmatprep.subr.mxu0 %v1062
    %1104 = vmatpush1.msra.mxu0 %v1061
    %1105 = vmatprep.subr.mxu0 %v1066
    %1106 = vmatpush1.msra.mxu0 %v1065
    %1107 = vmatprep.subr.mxu0 %v1070
    %1108 = vmatpush1.msra.mxu0 %v1069
    %1109 = vmatprep.subr.mxu0 %v1074
    %1110 = vmatpush1.msra.mxu0 %v1073
    %1111 = vmatprep.subr.mxu0 %v1078
    %1112 = vmatpush1.msra.mxu0 %v1077
    %1113 = vmatprep.subr.mxu0 0.0
    %1114 = vmatpush1.msra.mxu0 0.0
    %1115 = vmatprep.subr.mxu0 0.0
    %1116 = vmatpush1.msra.mxu0 0.0
    %1117 = vmatprep.subr.mxu0 0.0
    %1118 = vmatpush1.msra.mxu0 0.0
    %1119 = vmatprep.subr.mxu0 0.0
    %1120 = vmatpush1.msra.mxu0 0.0
    %1121 = vmatprep.subr.mxu0 0.0
    %1122 = vmatpush1.msra.mxu0 0.0
    %1123 = vmatprep.subr.mxu0 0.0
    %1124 = vmatpush1.msra.mxu0 0.0
    %1125 = vmatprep.subr.mxu0 0.0
    %1126 = vmatpush1.msra.mxu0 0.0
    %1127 = vmatprep.subr.mxu0 0.0
    %1128 = vmatpush1.msra.mxu0 0.0
    %1129 = vmatprep.subr.mxu0 0.0
    %1130 = vmatpush1.msra.mxu0 0.0
    %1131 = vmatprep.subr.mxu0 0.0
    %1132 = vmatpush1.msra.mxu0 0.0
    %1133 = vmatprep.subr.mxu0 0.0
    %1134 = vmatpush1.msra.mxu0 0.0
    %1135 = vmatprep.subr.mxu0 0.0
    %1136 = vmatpush1.msra.mxu0 0.0
    %1137 = vmatprep.subr.mxu0 0.0
    %1138 = vmatpush1.msra.mxu0 0.0
    %1139 = vmatprep.subr.mxu0 0.0
    %1140 = vmatpush1.msra.mxu0 0.0
    %1141 = vmatprep.subr.mxu0 0.0
    %1142 = vmatpush1.msra.mxu0 0.0
    %1143 = vmatprep.subr.mxu0 0.0
    %1144 = vmatpush1.msra.mxu0 0.0
    %1145 = vmatprep.mubr.f32.mxu0 0.0
    %1146 = vmatmul.mubr.f32.gmra.mrb[0].mxu0 %v1007
    %v1147 = vpop.f32.mrb[0].mxu0
    %v1148 = vadd.f32 0.0, %v1147
    %v1149 = vpop.f32.mrb[0].mxu0
    %v1150 = vadd.f32 0.0, %v1149
    %1151 = vdwg.mxu0
    %1152 = vmatprep.subr.mxu0 %v1020
    %1153 = vmatpush1.msra.mxu0 %v1019
    %1154 = vmatprep.subr.mxu0 %v1024
    %1155 = vmatpush1.msra.mxu0 %v1023
    %1156 = vmatprep.subr.mxu0 %v1028
    %1157 = vmatpush1.msra.mxu0 %v1027
    %1158 = vmatprep.subr.mxu0 %v1032
    %1159 = vmatpush1.msra.mxu0 %v1031
    %1160 = vmatprep.subr.mxu0 %v1036
    %1161 = vmatpush1.msra.mxu0 %v1035
    %1162 = vmatprep.subr.mxu0 %v1040
    %1163 = vmatpush1.msra.mxu0 %v1039
    %1164 = vmatprep.subr.mxu0 %v1044
    %1165 = vmatpush1.msra.mxu0 %v1043
    %1166 = vmatprep.subr.mxu0 %v1048
    %1167 = vmatpush1.msra.mxu0 %v1047
    %1168 = vmatprep.subr.mxu0 %v1052
    %1169 = vmatpush1.msra.mxu0 %v1051
    %1170 = vmatprep.subr.mxu0 %v1056
    %1171 = vmatpush1.msra.mxu0 %v1055
    %1172 = vmatprep.subr.mxu0 %v1060
    %1173 = vmatpush1.msra.mxu0 %v1059
    %1174 = vmatprep.subr.mxu0 %v1064
    %1175 = vmatpush1.msra.mxu0 %v1063
    %1176 = vmatprep.subr.mxu0 %v1068
    %1177 = vmatpush1.msra.mxu0 %v1067
    %1178 = vmatprep.subr.mxu0 %v1072
    %1179 = vmatpush1.msra.mxu0 %v1071
    %1180 = vmatprep.subr.mxu0 %v1076
    %1181 = vmatpush1.msra.mxu0 %v1075
    %1182 = vmatprep.subr.mxu0 %v1080
    %1183 = vmatpush1.msra.mxu0 %v1079
    %1184 = vmatprep.subr.mxu0 0.0
    %1185 = vmatpush1.msra.mxu0 0.0
    %1186 = vmatprep.subr.mxu0 0.0
    %1187 = vmatpush1.msra.mxu0 0.0
    %1188 = vmatprep.subr.mxu0 0.0
    %1189 = vmatpush1.msra.mxu0 0.0
    %1190 = vmatprep.subr.mxu0 0.0
    %1191 = vmatpush1.msra.mxu0 0.0
    %1192 = vmatprep.subr.mxu0 0.0
    %1193 = vmatpush1.msra.mxu0 0.0
    %1194 = vmatprep.subr.mxu0 0.0
    %1195 = vmatpush1.msra.mxu0 0.0
    %1196 = vmatprep.subr.mxu0 0.0
    %1197 = vmatpush1.msra.mxu0 0.0
    %1198 = vmatprep.subr.mxu0 0.0
    %1199 = vmatpush1.msra.mxu0 0.0
    %1200 = vmatprep.subr.mxu0 0.0
    %1201 = vmatpush1.msra.mxu0 0.0
    %1202 = vmatprep.subr.mxu0 0.0
    %1203 = vmatpush1.msra.mxu0 0.0
    %1204 = vmatprep.subr.mxu0 0.0
    %1205 = vmatpush1.msra.mxu0 0.0
    %1206 = vmatprep.subr.mxu0 0.0
    %1207 = vmatpush1.msra.mxu0 0.0
    %1208 = vmatprep.subr.mxu0 0.0
    %1209 = vmatpush1.msra.mxu0 0.0
    %1210 = vmatprep.subr.mxu0 0.0
    %1211 = vmatpush1.msra.mxu0 0.0
    %1212 = vmatprep.subr.mxu0 0.0
    %1213 = vmatpush1.msra.mxu0 0.0
    %1214 = vmatprep.subr.mxu0 0.0
    %1215 = vmatpush1.msra.mxu0 0.0
    %1216 = vmatprep.mubr.f32.mxu0 0.0
    %1217 = vmatmul.mubr.f32.gmra.mrb[0].mxu0 %v1007
    %v1218 = vpop.f32.mrb[0].mxu0
    %v1219 = vadd.f32 0.0, %v1218
    %v1220 = vpop.f32.mrb[0].mxu0
    %v1221 = vadd.f32 0.0, %v1220
    %1222 = vdwg.mxu0
    %v1223 = vadd.f32 %v1013, %v1148
    %v1224 = vadd.f32 %v1014, %v1150
    %v1225 = vadd.f32 %v1015, %v1219
    %v1226 = vadd.f32 %v1016, %v1221
    %v1227 = vxor.u32 %v1223, 2147483648
    %v1228 = vxor.u32 %v1224, 2147483648
    %v1229 = vxor.u32 %v1225, 2147483648
    %v1230 = vmul.f32 %v1227, 1.442695
    %v1231 = vpow.pop %v1230
    %v1232 = vmul.f32 %v1228, 1.442695
    %v1233 = vpow.pop %v1232
    %v1234 = vmul.f32 %v1229, 1.442695
    %v1235 = vpow.pop %v1234
    %v1236 = vadd.f32 %v1231, 1.0
    %v1237 = vadd.f32 %v1233, 1.0
    %v1238 = vadd.f32 %v1235, 1.0
    %v1239 = vrcp.pop %v1236
    %v1240 = vmul.f32 1.0, %v1239
    %v1241 = vrcp.pop %v1237
    %v1242 = vmul.f32 1.0, %v1241
    %v1243 = vrcp.pop %v1238
    %v1244 = vmul.f32 1.0, %v1243
    %v1245 = vtanh.pop %v1226
    %v1246 = vmul.f32 %v1242, %v1005
    %v1247 = vmul.f32 %v1240, %v1245
    %v1248 = vadd.f32 %v1246, %v1247
    %v1249 = vtanh.pop %v1248
    %v1250 = vmul.f32 %v1244, %v1249
    %s1251 = scalar_lea.vmem [#allocation2], 32
    %1252 = vst [vmem:[%s1251] sm:$0xff] %v1250
    %s1253 = smul.u32 5, 4
    %s1254 = smul.addr %s1253, 8
    %s1255 = scalar_lea.vmem %s0, %s1254
    %v1256 = vld [vmem:[%s1255] sm:$0xff]
    %v1257 = vld [vmem:[%s1255 + $0x8] sm:$0xff]
    %v1258 = vld [vmem:[%s1255 + $0x10] sm:$0xff]
    %v1259 = vld [vmem:[%s1255 + $0x18] sm:$0xff]
    %v1260 = vld [vmem:[#allocation5] sm:$0xff]
    %v1261 = vld [vmem:[#allocation5 + $0x8] sm:$0xff]
    %v1262 = vld [vmem:[#allocation5 + $0x10] sm:$0xff]
    %v1263 = vld [vmem:[#allocation5 + $0x18] sm:$0xff]
    %v1264 = vld [vmem:[#allocation5 + $0x20] sm:$0xff]
    %v1265 = vld [vmem:[#allocation5 + $0x28] sm:$0xff]
    %v1266 = vld [vmem:[#allocation5 + $0x30] sm:$0xff]
    %v1267 = vld [vmem:[#allocation5 + $0x38] sm:$0xff]
    %v1268 = vld [vmem:[#allocation5 + $0x40] sm:$0xff]
    %v1269 = vld [vmem:[#allocation5 + $0x48] sm:$0xff]
    %v1270 = vld [vmem:[#allocation5 + $0x50] sm:$0xff]
    %v1271 = vld [vmem:[#allocation5 + $0x58] sm:$0xff]
    %v1272 = vld [vmem:[#allocation5 + $0x60] sm:$0xff]
    %v1273 = vld [vmem:[#allocation5 + $0x68] sm:$0xff]
    %v1274 = vld [vmem:[#allocation5 + $0x70] sm:$0xff]
    %v1275 = vld [vmem:[#allocation5 + $0x78] sm:$0xff]
    %v1276 = vld [vmem:[#allocation5 + $0x80] sm:$0xff]
    %v1277 = vld [vmem:[#allocation5 + $0x88] sm:$0xff]
    %v1278 = vld [vmem:[#allocation5 + $0x90] sm:$0xff]
    %v1279 = vld [vmem:[#allocation5 + $0x98] sm:$0xff]
    %v1280 = vld [vmem:[#allocation5 + $0xa0] sm:$0xff]
    %v1281 = vld [vmem:[#allocation5 + $0xa8] sm:$0xff]
    %v1282 = vld [vmem:[#allocation5 + $0xb0] sm:$0xff]
    %v1283 = vld [vmem:[#allocation5 + $0xb8] sm:$0xff]
    %v1284 = vld [vmem:[#allocation5 + $0xc0] sm:$0xff]
    %v1285 = vld [vmem:[#allocation5 + $0xc8] sm:$0xff]
    %v1286 = vld [vmem:[#allocation5 + $0xd0] sm:$0xff]
    %v1287 = vld [vmem:[#allocation5 + $0xd8] sm:$0xff]
    %v1288 = vld [vmem:[#allocation5 + $0xe0] sm:$0xff]
    %v1289 = vld [vmem:[#allocation5 + $0xe8] sm:$0xff]
    %v1290 = vld [vmem:[#allocation5 + $0xf0] sm:$0xff]
    %v1291 = vld [vmem:[#allocation5 + $0xf8] sm:$0xff]
    %v1292 = vld [vmem:[#allocation5 + $0x100] sm:$0xff]
    %v1293 = vld [vmem:[#allocation5 + $0x108] sm:$0xff]
    %v1294 = vld [vmem:[#allocation5 + $0x110] sm:$0xff]
    %v1295 = vld [vmem:[#allocation5 + $0x118] sm:$0xff]
    %v1296 = vld [vmem:[#allocation5 + $0x120] sm:$0xff]
    %v1297 = vld [vmem:[#allocation5 + $0x128] sm:$0xff]
    %v1298 = vld [vmem:[#allocation5 + $0x130] sm:$0xff]
    %v1299 = vld [vmem:[#allocation5 + $0x138] sm:$0xff]
    %v1300 = vld [vmem:[#allocation5 + $0x140] sm:$0xff]
    %v1301 = vld [vmem:[#allocation5 + $0x148] sm:$0xff]
    %v1302 = vld [vmem:[#allocation5 + $0x150] sm:$0xff]
    %v1303 = vld [vmem:[#allocation5 + $0x158] sm:$0xff]
    %v1304 = vld [vmem:[#allocation5 + $0x160] sm:$0xff]
    %v1305 = vld [vmem:[#allocation5 + $0x168] sm:$0xff]
    %v1306 = vld [vmem:[#allocation5 + $0x170] sm:$0xff]
    %v1307 = vld [vmem:[#allocation5 + $0x178] sm:$0xff]
    %v1308 = vld [vmem:[#allocation5 + $0x180] sm:$0xff]
    %v1309 = vld [vmem:[#allocation5 + $0x188] sm:$0xff]
    %v1310 = vld [vmem:[#allocation5 + $0x190] sm:$0xff]
    %v1311 = vld [vmem:[#allocation5 + $0x198] sm:$0xff]
    %v1312 = vld [vmem:[#allocation5 + $0x1a0] sm:$0xff]
    %v1313 = vld [vmem:[#allocation5 + $0x1a8] sm:$0xff]
    %v1314 = vld [vmem:[#allocation5 + $0x1b0] sm:$0xff]
    %v1315 = vld [vmem:[#allocation5 + $0x1b8] sm:$0xff]
    %v1316 = vld [vmem:[#allocation5 + $0x1c0] sm:$0xff]
    %v1317 = vld [vmem:[#allocation5 + $0x1c8] sm:$0xff]
    %v1318 = vld [vmem:[#allocation5 + $0x1d0] sm:$0xff]
    %v1319 = vld [vmem:[#allocation5 + $0x1d8] sm:$0xff]
    %v1320 = vld [vmem:[#allocation5 + $0x1e0] sm:$0xff]
    %v1321 = vld [vmem:[#allocation5 + $0x1e8] sm:$0xff]
    %v1322 = vld [vmem:[#allocation5 + $0x1f0] sm:$0xff]
    %v1323 = vld [vmem:[#allocation5 + $0x1f8] sm:$0xff]
    %1324 = vmatprep.subr.mxu0 %v1261
    %1325 = vmatpush1.msra.mxu0 %v1260
    %1326 = vmatprep.subr.mxu0 %v1265
    %1327 = vmatpush1.msra.mxu0 %v1264
    %1328 = vmatprep.subr.mxu0 %v1269
    %1329 = vmatpush1.msra.mxu0 %v1268
    %1330 = vmatprep.subr.mxu0 %v1273
    %1331 = vmatpush1.msra.mxu0 %v1272
    %1332 = vmatprep.subr.mxu0 %v1277
    %1333 = vmatpush1.msra.mxu0 %v1276
    %1334 = vmatprep.subr.mxu0 %v1281
    %1335 = vmatpush1.msra.mxu0 %v1280
    %1336 = vmatprep.subr.mxu0 %v1285
    %1337 = vmatpush1.msra.mxu0 %v1284
    %1338 = vmatprep.subr.mxu0 %v1289
    %1339 = vmatpush1.msra.mxu0 %v1288
    %1340 = vmatprep.subr.mxu0 %v1293
    %1341 = vmatpush1.msra.mxu0 %v1292
    %1342 = vmatprep.subr.mxu0 %v1297
    %1343 = vmatpush1.msra.mxu0 %v1296
    %1344 = vmatprep.subr.mxu0 %v1301
    %1345 = vmatpush1.msra.mxu0 %v1300
    %1346 = vmatprep.subr.mxu0 %v1305
    %1347 = vmatpush1.msra.mxu0 %v1304
    %1348 = vmatprep.subr.mxu0 %v1309
    %1349 = vmatpush1.msra.mxu0 %v1308
    %1350 = vmatprep.subr.mxu0 %v1313
    %1351 = vmatpush1.msra.mxu0 %v1312
    %1352 = vmatprep.subr.mxu0 %v1317
    %1353 = vmatpush1.msra.mxu0 %v1316
    %1354 = vmatprep.subr.mxu0 %v1321
    %1355 = vmatpush1.msra.mxu0 %v1320
    %1356 = vmatprep.subr.mxu0 0.0
    %1357 = vmatpush1.msra.mxu0 0.0
    %1358 = vmatprep.subr.mxu0 0.0
    %1359 = vmatpush1.msra.mxu0 0.0
    %1360 = vmatprep.subr.mxu0 0.0
    %1361 = vmatpush1.msra.mxu0 0.0
    %1362 = vmatprep.subr.mxu0 0.0
    %1363 = vmatpush1.msra.mxu0 0.0
    %1364 = vmatprep.subr.mxu0 0.0
    %1365 = vmatpush1.msra.mxu0 0.0
    %1366 = vmatprep.subr.mxu0 0.0
    %1367 = vmatpush1.msra.mxu0 0.0
    %1368 = vmatprep.subr.mxu0 0.0
    %1369 = vmatpush1.msra.mxu0 0.0
    %1370 = vmatprep.subr.mxu0 0.0
    %1371 = vmatpush1.msra.mxu0 0.0
    %1372 = vmatprep.subr.mxu0 0.0
    %1373 = vmatpush1.msra.mxu0 0.0
    %1374 = vmatprep.subr.mxu0 0.0
    %1375 = vmatpush1.msra.mxu0 0.0
    %1376 = vmatprep.subr.mxu0 0.0
    %1377 = vmatpush1.msra.mxu0 0.0
    %1378 = vmatprep.subr.mxu0 0.0
    %1379 = vmatpush1.msra.mxu0 0.0
    %1380 = vmatprep.subr.mxu0 0.0
    %1381 = vmatpush1.msra.mxu0 0.0
    %1382 = vmatprep.subr.mxu0 0.0
    %1383 = vmatpush1.msra.mxu0 0.0
    %1384 = vmatprep.subr.mxu0 0.0
    %1385 = vmatpush1.msra.mxu0 0.0
    %1386 = vmatprep.subr.mxu0 0.0
    %1387 = vmatpush1.msra.mxu0 0.0
    %1388 = vmatprep.mubr.f32.mxu0 0.0
    %1389 = vmatmul.mubr.f32.gmra.mrb[0].mxu0 %v1250
    %v1390 = vpop.f32.mrb[0].mxu0
    %v1391 = vadd.f32 0.0, %v1390
    %v1392 = vpop.f32.mrb[0].mxu0
    %v1393 = vadd.f32 0.0, %v1392
    %1394 = vdwg.mxu0
    %1395 = vmatprep.subr.mxu0 %v1263
    %1396 = vmatpush1.msra.mxu0 %v1262
    %1397 = vmatprep.subr.mxu0 %v1267
    %1398 = vmatpush1.msra.mxu0 %v1266
    %1399 = vmatprep.subr.mxu0 %v1271
    %1400 = vmatpush1.msra.mxu0 %v1270
    %1401 = vmatprep.subr.mxu0 %v1275
    %1402 = vmatpush1.msra.mxu0 %v1274
    %1403 = vmatprep.subr.mxu0 %v1279
    %1404 = vmatpush1.msra.mxu0 %v1278
    %1405 = vmatprep.subr.mxu0 %v1283
    %1406 = vmatpush1.msra.mxu0 %v1282
    %1407 = vmatprep.subr.mxu0 %v1287
    %1408 = vmatpush1.msra.mxu0 %v1286
    %1409 = vmatprep.subr.mxu0 %v1291
    %1410 = vmatpush1.msra.mxu0 %v1290
    %1411 = vmatprep.subr.mxu0 %v1295
    %1412 = vmatpush1.msra.mxu0 %v1294
    %1413 = vmatprep.subr.mxu0 %v1299
    %1414 = vmatpush1.msra.mxu0 %v1298
    %1415 = vmatprep.subr.mxu0 %v1303
    %1416 = vmatpush1.msra.mxu0 %v1302
    %1417 = vmatprep.subr.mxu0 %v1307
    %1418 = vmatpush1.msra.mxu0 %v1306
    %1419 = vmatprep.subr.mxu0 %v1311
    %1420 = vmatpush1.msra.mxu0 %v1310
    %1421 = vmatprep.subr.mxu0 %v1315
    %1422 = vmatpush1.msra.mxu0 %v1314
    %1423 = vmatprep.subr.mxu0 %v1319
    %1424 = vmatpush1.msra.mxu0 %v1318
    %1425 = vmatprep.subr.mxu0 %v1323
    %1426 = vmatpush1.msra.mxu0 %v1322
    %1427 = vmatprep.subr.mxu0 0.0
    %1428 = vmatpush1.msra.mxu0 0.0
    %1429 = vmatprep.subr.mxu0 0.0
    %1430 = vmatpush1.msra.mxu0 0.0
    %1431 = vmatprep.subr.mxu0 0.0
    %1432 = vmatpush1.msra.mxu0 0.0
    %1433 = vmatprep.subr.mxu0 0.0
    %1434 = vmatpush1.msra.mxu0 0.0
    %1435 = vmatprep.subr.mxu0 0.0
    %1436 = vmatpush1.msra.mxu0 0.0
    %1437 = vmatprep.subr.mxu0 0.0
    %1438 = vmatpush1.msra.mxu0 0.0
    %1439 = vmatprep.subr.mxu0 0.0
    %1440 = vmatpush1.msra.mxu0 0.0
    %1441 = vmatprep.subr.mxu0 0.0
    %1442 = vmatpush1.msra.mxu0 0.0
    %1443 = vmatprep.subr.mxu0 0.0
    %1444 = vmatpush1.msra.mxu0 0.0
    %1445 = vmatprep.subr.mxu0 0.0
    %1446 = vmatpush1.msra.mxu0 0.0
    %1447 = vmatprep.subr.mxu0 0.0
    %1448 = vmatpush1.msra.mxu0 0.0
    %1449 = vmatprep.subr.mxu0 0.0
    %1450 = vmatpush1.msra.mxu0 0.0
    %1451 = vmatprep.subr.mxu0 0.0
    %1452 = vmatpush1.msra.mxu0 0.0
    %1453 = vmatprep.subr.mxu0 0.0
    %1454 = vmatpush1.msra.mxu0 0.0
    %1455 = vmatprep.subr.mxu0 0.0
    %1456 = vmatpush1.msra.mxu0 0.0
    %1457 = vmatprep.subr.mxu0 0.0
    %1458 = vmatpush1.msra.mxu0 0.0
    %1459 = vmatprep.mubr.f32.mxu0 0.0
    %1460 = vmatmul.mubr.f32.gmra.mrb[0].mxu0 %v1250
    %v1461 = vpop.f32.mrb[0].mxu0
    %v1462 = vadd.f32 0.0, %v1461
    %v1463 = vpop.f32.mrb[0].mxu0
    %v1464 = vadd.f32 0.0, %v1463
    %1465 = vdwg.mxu0
    %v1466 = vadd.f32 %v1256, %v1391
    %v1467 = vadd.f32 %v1257, %v1393
    %v1468 = vadd.f32 %v1258, %v1462
    %v1469 = vadd.f32 %v1259, %v1464
    %v1470 = vxor.u32 %v1466, 2147483648
    %v1471 = vxor.u32 %v1467, 2147483648
    %v1472 = vxor.u32 %v1468, 2147483648
    %v1473 = vmul.f32 %v1470, 1.442695
    %v1474 = vpow.pop %v1473
    %v1475 = vmul.f32 %v1471, 1.442695
    %v1476 = vpow.pop %v1475
    %v1477 = vmul.f32 %v1472, 1.442695
    %v1478 = vpow.pop %v1477
    %v1479 = vadd.f32 %v1474, 1.0
    %v1480 = vadd.f32 %v1476, 1.0
    %v1481 = vadd.f32 %v1478, 1.0
    %v1482 = vrcp.pop %v1479
    %v1483 = vmul.f32 1.0, %v1482
    %v1484 = vrcp.pop %v1480
    %v1485 = vmul.f32 1.0, %v1484
    %v1486 = vrcp.pop %v1481
    %v1487 = vmul.f32 1.0, %v1486
    %v1488 = vtanh.pop %v1469
    %v1489 = vmul.f32 %v1485, %v1248
    %v1490 = vmul.f32 %v1483, %v1488
    %v1491 = vadd.f32 %v1489, %v1490
    %v1492 = vtanh.pop %v1491
    %v1493 = vmul.f32 %v1487, %v1492
    %s1494 = scalar_lea.vmem [#allocation2], 40
    %1495 = vst [vmem:[%s1494] sm:$0xff] %v1493
    %s1496 = smul.u32 6, 4
    %s1497 = smul.addr %s1496, 8
    %s1498 = scalar_lea.vmem %s0, %s1497
    %v1499 = vld [vmem:[%s1498] sm:$0xff]
    %v1500 = vld [vmem:[%s1498 + $0x8] sm:$0xff]
    %v1501 = vld [vmem:[%s1498 + $0x10] sm:$0xff]
    %v1502 = vld [vmem:[%s1498 + $0x18] sm:$0xff]
    %v1503 = vld [vmem:[#allocation5] sm:$0xff]
    %v1504 = vld [vmem:[#allocation5 + $0x8] sm:$0xff]
    %v1505 = vld [vmem:[#allocation5 + $0x10] sm:$0xff]
    %v1506 = vld [vmem:[#allocation5 + $0x18] sm:$0xff]
    %v1507 = vld [vmem:[#allocation5 + $0x20] sm:$0xff]
    %v1508 = vld [vmem:[#allocation5 + $0x28] sm:$0xff]
    %v1509 = vld [vmem:[#allocation5 + $0x30] sm:$0xff]
    %v1510 = vld [vmem:[#allocation5 + $0x38] sm:$0xff]
    %v1511 = vld [vmem:[#allocation5 + $0x40] sm:$0xff]
    %v1512 = vld [vmem:[#allocation5 + $0x48] sm:$0xff]
    %v1513 = vld [vmem:[#allocation5 + $0x50] sm:$0xff]
    %v1514 = vld [vmem:[#allocation5 + $0x58] sm:$0xff]
    %v1515 = vld [vmem:[#allocation5 + $0x60] sm:$0xff]
    %v1516 = vld [vmem:[#allocation5 + $0x68] sm:$0xff]
    %v1517 = vld [vmem:[#allocation5 + $0x70] sm:$0xff]
    %v1518 = vld [vmem:[#allocation5 + $0x78] sm:$0xff]
    %v1519 = vld [vmem:[#allocation5 + $0x80] sm:$0xff]
    %v1520 = vld [vmem:[#allocation5 + $0x88] sm:$0xff]
    %v1521 = vld [vmem:[#allocation5 + $0x90] sm:$0xff]
    %v1522 = vld [vmem:[#allocation5 + $0x98] sm:$0xff]
    %v1523 = vld [vmem:[#allocation5 + $0xa0] sm:$0xff]
    %v1524 = vld [vmem:[#allocation5 + $0xa8] sm:$0xff]
    %v1525 = vld [vmem:[#allocation5 + $0xb0] sm:$0xff]
    %v1526 = vld [vmem:[#allocation5 + $0xb8] sm:$0xff]
    %v1527 = vld [vmem:[#allocation5 + $0xc0] sm:$0xff]
    %v1528 = vld [vmem:[#allocation5 + $0xc8] sm:$0xff]
    %v1529 = vld [vmem:[#allocation5 + $0xd0] sm:$0xff]
    %v1530 = vld [vmem:[#allocation5 + $0xd8] sm:$0xff]
    %v1531 = vld [vmem:[#allocation5 + $0xe0] sm:$0xff]
    %v1532 = vld [vmem:[#allocation5 + $0xe8] sm:$0xff]
    %v1533 = vld [vmem:[#allocation5 + $0xf0] sm:$0xff]
    %v1534 = vld [vmem:[#allocation5 + $0xf8] sm:$0xff]
    %v1535 = vld [vmem:[#allocation5 + $0x100] sm:$0xff]
    %v1536 = vld [vmem:[#allocation5 + $0x108] sm:$0xff]
    %v1537 = vld [vmem:[#allocation5 + $0x110] sm:$0xff]
    %v1538 = vld [vmem:[#allocation5 + $0x118] sm:$0xff]
    %v1539 = vld [vmem:[#allocation5 + $0x120] sm:$0xff]
    %v1540 = vld [vmem:[#allocation5 + $0x128] sm:$0xff]
    %v1541 = vld [vmem:[#allocation5 + $0x130] sm:$0xff]
    %v1542 = vld [vmem:[#allocation5 + $0x138] sm:$0xff]
    %v1543 = vld [vmem:[#allocation5 + $0x140] sm:$0xff]
    %v1544 = vld [vmem:[#allocation5 + $0x148] sm:$0xff]
    %v1545 = vld [vmem:[#allocation5 + $0x150] sm:$0xff]
    %v1546 = vld [vmem:[#allocation5 + $0x158] sm:$0xff]
    %v1547 = vld [vmem:[#allocation5 + $0x160] sm:$0xff]
    %v1548 = vld [vmem:[#allocation5 + $0x168] sm:$0xff]
    %v1549 = vld [vmem:[#allocation5 + $0x170] sm:$0xff]
    %v1550 = vld [vmem:[#allocation5 + $0x178] sm:$0xff]
    %v1551 = vld [vmem:[#allocation5 + $0x180] sm:$0xff]
    %v1552 = vld [vmem:[#allocation5 + $0x188] sm:$0xff]
    %v1553 = vld [vmem:[#allocation5 + $0x190] sm:$0xff]
    %v1554 = vld [vmem:[#allocation5 + $0x198] sm:$0xff]
    %v1555 = vld [vmem:[#allocation5 + $0x1a0] sm:$0xff]
    %v1556 = vld [vmem:[#allocation5 + $0x1a8] sm:$0xff]
    %v1557 = vld [vmem:[#allocation5 + $0x1b0] sm:$0xff]
    %v1558 = vld [vmem:[#allocation5 + $0x1b8] sm:$0xff]
    %v1559 = vld [vmem:[#allocation5 + $0x1c0] sm:$0xff]
    %v1560 = vld [vmem:[#allocation5 + $0x1c8] sm:$0xff]
    %v1561 = vld [vmem:[#allocation5 + $0x1d0] sm:$0xff]
    %v1562 = vld [vmem:[#allocation5 + $0x1d8] sm:$0xff]
    %v1563 = vld [vmem:[#allocation5 + $0x1e0] sm:$0xff]
    %v1564 = vld [vmem:[#allocation5 + $0x1e8] sm:$0xff]
    %v1565 = vld [vmem:[#allocation5 + $0x1f0] sm:$0xff]
    %v1566 = vld [vmem:[#allocation5 + $0x1f8] sm:$0xff]
    %1567 = vmatprep.subr.mxu0 %v1504
    %1568 = vmatpush1.msra.mxu0 %v1503
    %1569 = vmatprep.subr.mxu0 %v1508
    %1570 = vmatpush1.msra.mxu0 %v1507
    %1571 = vmatprep.subr.mxu0 %v1512
    %1572 = vmatpush1.msra.mxu0 %v1511
    %1573 = vmatprep.subr.mxu0 %v1516
    %1574 = vmatpush1.msra.mxu0 %v1515
    %1575 = vmatprep.subr.mxu0 %v1520
    %1576 = vmatpush1.msra.mxu0 %v1519
    %1577 = vmatprep.subr.mxu0 %v1524
    %1578 = vmatpush1.msra.mxu0 %v1523
    %1579 = vmatprep.subr.mxu0 %v1528
    %1580 = vmatpush1.msra.mxu0 %v1527
    %1581 = vmatprep.subr.mxu0 %v1532
    %1582 = vmatpush1.msra.mxu0 %v1531
    %1583 = vmatprep.subr.mxu0 %v1536
    %1584 = vmatpush1.msra.mxu0 %v1535
    %1585 = vmatprep.subr.mxu0 %v1540
    %1586 = vmatpush1.msra.mxu0 %v1539
    %1587 = vmatprep.subr.mxu0 %v1544
    %1588 = vmatpush1.msra.mxu0 %v1543
    %1589 = vmatprep.subr.mxu0 %v1548
    %1590 = vmatpush1.msra.mxu0 %v1547
    %1591 = vmatprep.subr.mxu0 %v1552
    %1592 = vmatpush1.msra.mxu0 %v1551
    %1593 = vmatprep.subr.mxu0 %v1556
    %1594 = vmatpush1.msra.mxu0 %v1555
    %1595 = vmatprep.subr.mxu0 %v1560
    %1596 = vmatpush1.msra.mxu0 %v1559
    %1597 = vmatprep.subr.mxu0 %v1564
    %1598 = vmatpush1.msra.mxu0 %v1563
    %1599 = vmatprep.subr.mxu0 0.0
    %1600 = vmatpush1.msra.mxu0 0.0
    %1601 = vmatprep.subr.mxu0 0.0
    %1602 = vmatpush1.msra.mxu0 0.0
    %1603 = vmatprep.subr.mxu0 0.0
    %1604 = vmatpush1.msra.mxu0 0.0
    %1605 = vmatprep.subr.mxu0 0.0
    %1606 = vmatpush1.msra.mxu0 0.0
    %1607 = vmatprep.subr.mxu0 0.0
    %1608 = vmatpush1.msra.mxu0 0.0
    %1609 = vmatprep.subr.mxu0 0.0
    %1610 = vmatpush1.msra.mxu0 0.0
    %1611 = vmatprep.subr.mxu0 0.0
    %1612 = vmatpush1.msra.mxu0 0.0
    %1613 = vmatprep.subr.mxu0 0.0
    %1614 = vmatpush1.msra.mxu0 0.0
    %1615 = vmatprep.subr.mxu0 0.0
    %1616 = vmatpush1.msra.mxu0 0.0
    %1617 = vmatprep.subr.mxu0 0.0
    %1618 = vmatpush1.msra.mxu0 0.0
    %1619 = vmatprep.subr.mxu0 0.0
    %1620 = vmatpush1.msra.mxu0 0.0
    %1621 = vmatprep.subr.mxu0 0.0
    %1622 = vmatpush1.msra.mxu0 0.0
    %1623 = vmatprep.subr.mxu0 0.0
    %1624 = vmatpush1.msra.mxu0 0.0
    %1625 = vmatprep.subr.mxu0 0.0
    %1626 = vmatpush1.msra.mxu0 0.0
    %1627 = vmatprep.subr.mxu0 0.0
    %1628 = vmatpush1.msra.mxu0 0.0
    %1629 = vmatprep.subr.mxu0 0.0
    %1630 = vmatpush1.msra.mxu0 0.0
    %1631 = vmatprep.mubr.f32.mxu0 0.0
    %1632 = vmatmul.mubr.f32.gmra.mrb[0].mxu0 %v1493
    %v1633 = vpop.f32.mrb[0].mxu0
    %v1634 = vadd.f32 0.0, %v1633
    %v1635 = vpop.f32.mrb[0].mxu0
    %v1636 = vadd.f32 0.0, %v1635
    %1637 = vdwg.mxu0
    %1638 = vmatprep.subr.mxu0 %v1506
    %1639 = vmatpush1.msra.mxu0 %v1505
    %1640 = vmatprep.subr.mxu0 %v1510
    %1641 = vmatpush1.msra.mxu0 %v1509
    %1642 = vmatprep.subr.mxu0 %v1514
    %1643 = vmatpush1.msra.mxu0 %v1513
    %1644 = vmatprep.subr.mxu0 %v1518
    %1645 = vmatpush1.msra.mxu0 %v1517
    %1646 = vmatprep.subr.mxu0 %v1522
    %1647 = vmatpush1.msra.mxu0 %v1521
    %1648 = vmatprep.subr.mxu0 %v1526
    %1649 = vmatpush1.msra.mxu0 %v1525
    %1650 = vmatprep.subr.mxu0 %v1530
    %1651 = vmatpush1.msra.mxu0 %v1529
    %1652 = vmatprep.subr.mxu0 %v1534
    %1653 = vmatpush1.msra.mxu0 %v1533
    %1654 = vmatprep.subr.mxu0 %v1538
    %1655 = vmatpush1.msra.mxu0 %v1537
    %1656 = vmatprep.subr.mxu0 %v1542
    %1657 = vmatpush1.msra.mxu0 %v1541
    %1658 = vmatprep.subr.mxu0 %v1546
    %1659 = vmatpush1.msra.mxu0 %v1545
    %1660 = vmatprep.subr.mxu0 %v1550
    %1661 = vmatpush1.msra.mxu0 %v1549
    %1662 = vmatprep.subr.mxu0 %v1554
    %1663 = vmatpush1.msra.mxu0 %v1553
    %1664 = vmatprep.subr.mxu0 %v1558
    %1665 = vmatpush1.msra.mxu0 %v1557
    %1666 = vmatprep.subr.mxu0 %v1562
    %1667 = vmatpush1.msra.mxu0 %v1561
    %1668 = vmatprep.subr.mxu0 %v1566
    %1669 = vmatpush1.msra.mxu0 %v1565
    %1670 = vmatprep.subr.mxu0 0.0
    %1671 = vmatpush1.msra.mxu0 0.0
    %1672 = vmatprep.subr.mxu0 0.0
    %1673 = vmatpush1.msra.mxu0 0.0
    %1674 = vmatprep.subr.mxu0 0.0
    %1675 = vmatpush1.msra.mxu0 0.0
    %1676 = vmatprep.subr.mxu0 0.0
    %1677 = vmatpush1.msra.mxu0 0.0
    %1678 = vmatprep.subr.mxu0 0.0
    %1679 = vmatpush1.msra.mxu0 0.0
    %1680 = vmatprep.subr.mxu0 0.0
    %1681 = vmatpush1.msra.mxu0 0.0
    %1682 = vmatprep.subr.mxu0 0.0
    %1683 = vmatpush1.msra.mxu0 0.0
    %1684 = vmatprep.subr.mxu0 0.0
    %1685 = vmatpush1.msra.mxu0 0.0
    %1686 = vmatprep.subr.mxu0 0.0
    %1687 = vmatpush1.msra.mxu0 0.0
    %1688 = vmatprep.subr.mxu0 0.0
    %1689 = vmatpush1.msra.mxu0 0.0
    %1690 = vmatprep.subr.mxu0 0.0
    %1691 = vmatpush1.msra.mxu0 0.0
    %1692 = vmatprep.subr.mxu0 0.0
    %1693 = vmatpush1.msra.mxu0 0.0
    %1694 = vmatprep.subr.mxu0 0.0
    %1695 = vmatpush1.msra.mxu0 0.0
    %1696 = vmatprep.subr.mxu0 0.0
    %1697 = vmatpush1.msra.mxu0 0.0
    %1698 = vmatprep.subr.mxu0 0.0
    %1699 = vmatpush1.msra.mxu0 0.0
    %1700 = vmatprep.subr.mxu0 0.0
    %1701 = vmatpush1.msra.mxu0 0.0
    %1702 = vmatprep.mubr.f32.mxu0 0.0
    %1703 = vmatmul.mubr.f32.gmra.mrb[0].mxu0 %v1493
    %v1704 = vpop.f32.mrb[0].mxu0
    %v1705 = vadd.f32 0.0, %v1704
    %v1706 = vpop.f32.mrb[0].mxu0
    %v1707 = vadd.f32 0.0, %v1706
    %1708 = vdwg.mxu0
    %v1709 = vadd.f32 %v1499, %v1634
    %v1710 = vadd.f32 %v1500, %v1636
    %v1711 = vadd.f32 %v1501, %v1705
    %v1712 = vadd.f32 %v1502, %v1707
    %v1713 = vxor.u32 %v1709, 2147483648
    %v1714 = vxor.u32 %v1710, 2147483648
    %v1715 = vxor.u32 %v1711, 2147483648
    %v1716 = vmul.f32 %v1713, 1.442695
    %v1717 = vpow.pop %v1716
    %v1718 = vmul.f32 %v1714, 1.442695
    %v1719 = vpow.pop %v1718
    %v1720 = vmul.f32 %v1715, 1.442695
    %v1721 = vpow.pop %v1720
    %v1722 = vadd.f32 %v1717, 1.0
    %v1723 = vadd.f32 %v1719, 1.0
    %v1724 = vadd.f32 %v1721, 1.0
    %v1725 = vrcp.pop %v1722
    %v1726 = vmul.f32 1.0, %v1725
    %v1727 = vrcp.pop %v1723
    %v1728 = vmul.f32 1.0, %v1727
    %v1729 = vrcp.pop %v1724
    %v1730 = vmul.f32 1.0, %v1729
    %v1731 = vtanh.pop %v1712
    %v1732 = vmul.f32 %v1728, %v1491
    %v1733 = vmul.f32 %v1726, %v1731
    %v1734 = vadd.f32 %v1732, %v1733
    %v1735 = vtanh.pop %v1734
    %v1736 = vmul.f32 %v1730, %v1735
    %s1737 = scalar_lea.vmem [#allocation2], 48
    %1738 = vst [vmem:[%s1737] sm:$0xff] %v1736
    %s1739 = smul.u32 7, 4
    %s1740 = smul.addr %s1739, 8
    %s1741 = scalar_lea.vmem %s0, %s1740
    %v1742 = vld [vmem:[%s1741] sm:$0xff]
    %v1743 = vld [vmem:[%s1741 + $0x8] sm:$0xff]
    %v1744 = vld [vmem:[%s1741 + $0x10] sm:$0xff]
    %v1745 = vld [vmem:[%s1741 + $0x18] sm:$0xff]
    %v1746 = vld [vmem:[#allocation5] sm:$0xff]
    %v1747 = vld [vmem:[#allocation5 + $0x8] sm:$0xff]
    %v1748 = vld [vmem:[#allocation5 + $0x10] sm:$0xff]
    %v1749 = vld [vmem:[#allocation5 + $0x18] sm:$0xff]
    %v1750 = vld [vmem:[#allocation5 + $0x20] sm:$0xff]
    %v1751 = vld [vmem:[#allocation5 + $0x28] sm:$0xff]
    %v1752 = vld [vmem:[#allocation5 + $0x30] sm:$0xff]
    %v1753 = vld [vmem:[#allocation5 + $0x38] sm:$0xff]
    %v1754 = vld [vmem:[#allocation5 + $0x40] sm:$0xff]
    %v1755 = vld [vmem:[#allocation5 + $0x48] sm:$0xff]
    %v1756 = vld [vmem:[#allocation5 + $0x50] sm:$0xff]
    %v1757 = vld [vmem:[#allocation5 + $0x58] sm:$0xff]
    %v1758 = vld [vmem:[#allocation5 + $0x60] sm:$0xff]
    %v1759 = vld [vmem:[#allocation5 + $0x68] sm:$0xff]
    %v1760 = vld [vmem:[#allocation5 + $0x70] sm:$0xff]
    %v1761 = vld [vmem:[#allocation5 + $0x78] sm:$0xff]
    %v1762 = vld [vmem:[#allocation5 + $0x80] sm:$0xff]
    %v1763 = vld [vmem:[#allocation5 + $0x88] sm:$0xff]
    %v1764 = vld [vmem:[#allocation5 + $0x90] sm:$0xff]
    %v1765 = vld [vmem:[#allocation5 + $0x98] sm:$0xff]
    %v1766 = vld [vmem:[#allocation5 + $0xa0] sm:$0xff]
    %v1767 = vld [vmem:[#allocation5 + $0xa8] sm:$0xff]
    %v1768 = vld [vmem:[#allocation5 + $0xb0] sm:$0xff]
    %v1769 = vld [vmem:[#allocation5 + $0xb8] sm:$0xff]
    %v1770 = vld [vmem:[#allocation5 + $0xc0] sm:$0xff]
    %v1771 = vld [vmem:[#allocation5 + $0xc8] sm:$0xff]
    %v1772 = vld [vmem:[#allocation5 + $0xd0] sm:$0xff]
    %v1773 = vld [vmem:[#allocation5 + $0xd8] sm:$0xff]
    %v1774 = vld [vmem:[#allocation5 + $0xe0] sm:$0xff]
    %v1775 = vld [vmem:[#allocation5 + $0xe8] sm:$0xff]
    %v1776 = vld [vmem:[#allocation5 + $0xf0] sm:$0xff]
    %v1777 = vld [vmem:[#allocation5 + $0xf8] sm:$0xff]
    %v1778 = vld [vmem:[#allocation5 + $0x100] sm:$0xff]
    %v1779 = vld [vmem:[#allocation5 + $0x108] sm:$0xff]
    %v1780 = vld [vmem:[#allocation5 + $0x110] sm:$0xff]
    %v1781 = vld [vmem:[#allocation5 + $0x118] sm:$0xff]
    %v1782 = vld [vmem:[#allocation5 + $0x120] sm:$0xff]
    %v1783 = vld [vmem:[#allocation5 + $0x128] sm:$0xff]
    %v1784 = vld [vmem:[#allocation5 + $0x130] sm:$0xff]
    %v1785 = vld [vmem:[#allocation5 + $0x138] sm:$0xff]
    %v1786 = vld [vmem:[#allocation5 + $0x140] sm:$0xff]
    %v1787 = vld [vmem:[#allocation5 + $0x148] sm:$0xff]
    %v1788 = vld [vmem:[#allocation5 + $0x150] sm:$0xff]
    %v1789 = vld [vmem:[#allocation5 + $0x158] sm:$0xff]
    %v1790 = vld [vmem:[#allocation5 + $0x160] sm:$0xff]
    %v1791 = vld [vmem:[#allocation5 + $0x168] sm:$0xff]
    %v1792 = vld [vmem:[#allocation5 + $0x170] sm:$0xff]
    %v1793 = vld [vmem:[#allocation5 + $0x178] sm:$0xff]
    %v1794 = vld [vmem:[#allocation5 + $0x180] sm:$0xff]
    %v1795 = vld [vmem:[#allocation5 + $0x188] sm:$0xff]
    %v1796 = vld [vmem:[#allocation5 + $0x190] sm:$0xff]
    %v1797 = vld [vmem:[#allocation5 + $0x198] sm:$0xff]
    %v1798 = vld [vmem:[#allocation5 + $0x1a0] sm:$0xff]
    %v1799 = vld [vmem:[#allocation5 + $0x1a8] sm:$0xff]
    %v1800 = vld [vmem:[#allocation5 + $0x1b0] sm:$0xff]
    %v1801 = vld [vmem:[#allocation5 + $0x1b8] sm:$0xff]
    %v1802 = vld [vmem:[#allocation5 + $0x1c0] sm:$0xff]
    %v1803 = vld [vmem:[#allocation5 + $0x1c8] sm:$0xff]
    %v1804 = vld [vmem:[#allocation5 + $0x1d0] sm:$0xff]
    %v1805 = vld [vmem:[#allocation5 + $0x1d8] sm:$0xff]
    %v1806 = vld [vmem:[#allocation5 + $0x1e0] sm:$0xff]
    %v1807 = vld [vmem:[#allocation5 + $0x1e8] sm:$0xff]
    %v1808 = vld [vmem:[#allocation5 + $0x1f0] sm:$0xff]
    %v1809 = vld [vmem:[#allocation5 + $0x1f8] sm:$0xff]
    %1810 = vmatprep.subr.mxu0 %v1747
    %1811 = vmatpush1.msra.mxu0 %v1746
    %1812 = vmatprep.subr.mxu0 %v1751
    %1813 = vmatpush1.msra.mxu0 %v1750
    %1814 = vmatprep.subr.mxu0 %v1755
    %1815 = vmatpush1.msra.mxu0 %v1754
    %1816 = vmatprep.subr.mxu0 %v1759
    %1817 = vmatpush1.msra.mxu0 %v1758
    %1818 = vmatprep.subr.mxu0 %v1763
    %1819 = vmatpush1.msra.mxu0 %v1762
    %1820 = vmatprep.subr.mxu0 %v1767
    %1821 = vmatpush1.msra.mxu0 %v1766
    %1822 = vmatprep.subr.mxu0 %v1771
    %1823 = vmatpush1.msra.mxu0 %v1770
    %1824 = vmatprep.subr.mxu0 %v1775
    %1825 = vmatpush1.msra.mxu0 %v1774
    %1826 = vmatprep.subr.mxu0 %v1779
    %1827 = vmatpush1.msra.mxu0 %v1778
    %1828 = vmatprep.subr.mxu0 %v1783
    %1829 = vmatpush1.msra.mxu0 %v1782
    %1830 = vmatprep.subr.mxu0 %v1787
    %1831 = vmatpush1.msra.mxu0 %v1786
    %1832 = vmatprep.subr.mxu0 %v1791
    %1833 = vmatpush1.msra.mxu0 %v1790
    %1834 = vmatprep.subr.mxu0 %v1795
    %1835 = vmatpush1.msra.mxu0 %v1794
    %1836 = vmatprep.subr.mxu0 %v1799
    %1837 = vmatpush1.msra.mxu0 %v1798
    %1838 = vmatprep.subr.mxu0 %v1803
    %1839 = vmatpush1.msra.mxu0 %v1802
    %1840 = vmatprep.subr.mxu0 %v1807
    %1841 = vmatpush1.msra.mxu0 %v1806
    %1842 = vmatprep.subr.mxu0 0.0
    %1843 = vmatpush1.msra.mxu0 0.0
    %1844 = vmatprep.subr.mxu0 0.0
    %1845 = vmatpush1.msra.mxu0 0.0
    %1846 = vmatprep.subr.mxu0 0.0
    %1847 = vmatpush1.msra.mxu0 0.0
    %1848 = vmatprep.subr.mxu0 0.0
    %1849 = vmatpush1.msra.mxu0 0.0
    %1850 = vmatprep.subr.mxu0 0.0
    %1851 = vmatpush1.msra.mxu0 0.0
    %1852 = vmatprep.subr.mxu0 0.0
    %1853 = vmatpush1.msra.mxu0 0.0
    %1854 = vmatprep.subr.mxu0 0.0
    %1855 = vmatpush1.msra.mxu0 0.0
    %1856 = vmatprep.subr.mxu0 0.0
    %1857 = vmatpush1.msra.mxu0 0.0
    %1858 = vmatprep.subr.mxu0 0.0
    %1859 = vmatpush1.msra.mxu0 0.0
    %1860 = vmatprep.subr.mxu0 0.0
    %1861 = vmatpush1.msra.mxu0 0.0
    %1862 = vmatprep.subr.mxu0 0.0
    %1863 = vmatpush1.msra.mxu0 0.0
    %1864 = vmatprep.subr.mxu0 0.0
    %1865 = vmatpush1.msra.mxu0 0.0
    %1866 = vmatprep.subr.mxu0 0.0
    %1867 = vmatpush1.msra.mxu0 0.0
    %1868 = vmatprep.subr.mxu0 0.0
    %1869 = vmatpush1.msra.mxu0 0.0
    %1870 = vmatprep.subr.mxu0 0.0
    %1871 = vmatpush1.msra.mxu0 0.0
    %1872 = vmatprep.subr.mxu0 0.0
    %1873 = vmatpush1.msra.mxu0 0.0
    %1874 = vmatprep.mubr.f32.mxu0 0.0
    %1875 = vmatmul.mubr.f32.gmra.mrb[0].mxu0 %v1736
    %v1876 = vpop.f32.mrb[0].mxu0
    %v1877 = vadd.f32 0.0, %v1876
    %v1878 = vpop.f32.mrb[0].mxu0
    %v1879 = vadd.f32 0.0, %v1878
    %1880 = vdwg.mxu0
    %1881 = vmatprep.subr.mxu0 %v1749
    %1882 = vmatpush1.msra.mxu0 %v1748
    %1883 = vmatprep.subr.mxu0 %v1753
    %1884 = vmatpush1.msra.mxu0 %v1752
    %1885 = vmatprep.subr.mxu0 %v1757
    %1886 = vmatpush1.msra.mxu0 %v1756
    %1887 = vmatprep.subr.mxu0 %v1761
    %1888 = vmatpush1.msra.mxu0 %v1760
    %1889 = vmatprep.subr.mxu0 %v1765
    %1890 = vmatpush1.msra.mxu0 %v1764
    %1891 = vmatprep.subr.mxu0 %v1769
    %1892 = vmatpush1.msra.mxu0 %v1768
    %1893 = vmatprep.subr.mxu0 %v1773
    %1894 = vmatpush1.msra.mxu0 %v1772
    %1895 = vmatprep.subr.mxu0 %v1777
    %1896 = vmatpush1.msra.mxu0 %v1776
    %1897 = vmatprep.subr.mxu0 %v1781
    %1898 = vmatpush1.msra.mxu0 %v1780
    %1899 = vmatprep.subr.mxu0 %v1785
    %1900 = vmatpush1.msra.mxu0 %v1784
    %1901 = vmatprep.subr.mxu0 %v1789
    %1902 = vmatpush1.msra.mxu0 %v1788
    %1903 = vmatprep.subr.mxu0 %v1793
    %1904 = vmatpush1.msra.mxu0 %v1792
    %1905 = vmatprep.subr.mxu0 %v1797
    %1906 = vmatpush1.msra.mxu0 %v1796
    %1907 = vmatprep.subr.mxu0 %v1801
    %1908 = vmatpush1.msra.mxu0 %v1800
    %1909 = vmatprep.subr.mxu0 %v1805
    %1910 = vmatpush1.msra.mxu0 %v1804
    %1911 = vmatprep.subr.mxu0 %v1809
    %1912 = vmatpush1.msra.mxu0 %v1808
    %1913 = vmatprep.subr.mxu0 0.0
    %1914 = vmatpush1.msra.mxu0 0.0
    %1915 = vmatprep.subr.mxu0 0.0
    %1916 = vmatpush1.msra.mxu0 0.0
    %1917 = vmatprep.subr.mxu0 0.0
    %1918 = vmatpush1.msra.mxu0 0.0
    %1919 = vmatprep.subr.mxu0 0.0
    %1920 = vmatpush1.msra.mxu0 0.0
    %1921 = vmatprep.subr.mxu0 0.0
    %1922 = vmatpush1.msra.mxu0 0.0
    %1923 = vmatprep.subr.mxu0 0.0
    %1924 = vmatpush1.msra.mxu0 0.0
    %1925 = vmatprep.subr.mxu0 0.0
    %1926 = vmatpush1.msra.mxu0 0.0
    %1927 = vmatprep.subr.mxu0 0.0
    %1928 = vmatpush1.msra.mxu0 0.0
    %1929 = vmatprep.subr.mxu0 0.0
    %1930 = vmatpush1.msra.mxu0 0.0
    %1931 = vmatprep.subr.mxu0 0.0
    %1932 = vmatpush1.msra.mxu0 0.0
    %1933 = vmatprep.subr.mxu0 0.0
    %1934 = vmatpush1.msra.mxu0 0.0
    %1935 = vmatprep.subr.mxu0 0.0
    %1936 = vmatpush1.msra.mxu0 0.0
    %1937 = vmatprep.subr.mxu0 0.0
    %1938 = vmatpush1.msra.mxu0 0.0
    %1939 = vmatprep.subr.mxu0 0.0
    %1940 = vmatpush1.msra.mxu0 0.0
    %1941 = vmatprep.subr.mxu0 0.0
    %1942 = vmatpush1.msra.mxu0 0.0
    %1943 = vmatprep.subr.mxu0 0.0
    %1944 = vmatpush1.msra.mxu0 0.0
    %1945 = vmatprep.mubr.f32.mxu0 0.0
    %1946 = vmatmul.mubr.f32.gmra.mrb[0].mxu0 %v1736
    %v1947 = vpop.f32.mrb[0].mxu0
    %v1948 = vadd.f32 0.0, %v1947
    %v1949 = vpop.f32.mrb[0].mxu0
    %v1950 = vadd.f32 0.0, %v1949
    %1951 = vdwg.mxu0
    %v1952 = vadd.f32 %v1742, %v1877
    %v1953 = vadd.f32 %v1743, %v1879
    %v1954 = vadd.f32 %v1744, %v1948
    %v1955 = vadd.f32 %v1745, %v1950
    %v1956 = vxor.u32 %v1952, 2147483648
    %v1957 = vxor.u32 %v1953, 2147483648
    %v1958 = vxor.u32 %v1954, 2147483648
    %v1959 = vmul.f32 %v1956, 1.442695
    %v1960 = vpow.pop %v1959
    %v1961 = vmul.f32 %v1957, 1.442695
    %v1962 = vpow.pop %v1961
    %v1963 = vmul.f32 %v1958, 1.442695
    %v1964 = vpow.pop %v1963
    %v1965 = vadd.f32 %v1960, 1.0
    %v1966 = vadd.f32 %v1962, 1.0
    %v1967 = vadd.f32 %v1964, 1.0
    %v1968 = vrcp.pop %v1965
    %v1969 = vmul.f32 1.0, %v1968
    %v1970 = vrcp.pop %v1966
    %v1971 = vmul.f32 1.0, %v1970
    %v1972 = vrcp.pop %v1967
    %v1973 = vmul.f32 1.0, %v1972
    %v1974 = vtanh.pop %v1955
    %v1975 = vmul.f32 %v1971, %v1734
    %v1976 = vmul.f32 %v1969, %v1974
    %v1977 = vadd.f32 %v1975, %v1976
    %v1978 = vtanh.pop %v1977
    %v1979 = vmul.f32 %v1973, %v1978
    %s1980 = scalar_lea.vmem [#allocation2], 56
    %1981 = vst [vmem:[%s1980] sm:$0xff] %v1979
    %v1982 = vld [vmem:[#allocation2] sm:$0xff]
    %v1983 = vld [vmem:[#allocation2 + $0x8] sm:$0xff]
    %v1984 = vld [vmem:[#allocation2 + $0x10] sm:$0xff]
    %v1985 = vld [vmem:[#allocation2 + $0x18] sm:$0xff]
    %v1986 = vld [vmem:[#allocation2 + $0x20] sm:$0xff]
    %v1987 = vld [vmem:[#allocation2 + $0x28] sm:$0xff]
    %v1988 = vld [vmem:[#allocation2 + $0x30] sm:$0xff]
    %v1989 = vld [vmem:[#allocation2 + $0x38] sm:$0xff]
    %v1990 = vld [vmem:[%s2] sm:$0xff]
    %v1991 = vld [vmem:[%s2 + $0x8] sm:$0xff]
    %v1992 = vld [vmem:[%s2 + $0x10] sm:$0xff]
    %v1993 = vld [vmem:[%s2 + $0x18] sm:$0xff]
    %v1994 = vld [vmem:[%s2 + $0x20] sm:$0xff]
    %v1995 = vld [vmem:[%s2 + $0x28] sm:$0xff]
    %v1996 = vld [vmem:[%s2 + $0x30] sm:$0xff]
    %v1997 = vld [vmem:[%s2 + $0x38] sm:$0xff]
    %v1998 = vld [vmem:[%s2 + $0x40] sm:$0xff]
    %v1999 = vld [vmem:[%s2 + $0x48] sm:$0xff]
    %v2000 = vld [vmem:[%s2 + $0x50] sm:$0xff]
    %v2001 = vld [vmem:[%s2 + $0x58] sm:$0xff]
    %v2002 = vld [vmem:[%s2 + $0x60] sm:$0xff]
    %v2003 = vld [vmem:[%s2 + $0x68] sm:$0xff]
    %v2004 = vld [vmem:[%s2 + $0x70] sm:$0xff]
    %v2005 = vld [vmem:[%s2 + $0x78] sm:$0xff]
    %v2006 = vld [vmem:[%s2 + $0x80] sm:$0xff]
    %v2007 = vld [vmem:[%s2 + $0x88] sm:$0xff]
    %v2008 = vld [vmem:[%s2 + $0x90] sm:$0xff]
    %v2009 = vld [vmem:[%s2 + $0x98] sm:$0xff]
    %v2010 = vld [vmem:[%s2 + $0xa0] sm:$0xff]
    %v2011 = vld [vmem:[%s2 + $0xa8] sm:$0xff]
    %v2012 = vld [vmem:[%s2 + $0xb0] sm:$0xff]
    %v2013 = vld [vmem:[%s2 + $0xb8] sm:$0xff]
    %v2014 = vld [vmem:[%s2 + $0xc0] sm:$0xff]
    %v2015 = vld [vmem:[%s2 + $0xc8] sm:$0xff]
    %v2016 = vld [vmem:[%s2 + $0xd0] sm:$0xff]
    %v2017 = vld [vmem:[%s2 + $0xd8] sm:$0xff]
    %v2018 = vld [vmem:[%s2 + $0xe0] sm:$0xff]
    %v2019 = vld [vmem:[%s2 + $0xe8] sm:$0xff]
    %v2020 = vld [vmem:[%s2 + $0xf0] sm:$0xff]
    %v2021 = vld [vmem:[%s2 + $0xf8] sm:$0xff]
    %v2022 = vld [vmem:[%s2 + $0x100] sm:$0xff]
    %v2023 = vld [vmem:[%s2 + $0x108] sm:$0xff]
    %v2024 = vld [vmem:[%s2 + $0x110] sm:$0xff]
    %v2025 = vld [vmem:[%s2 + $0x118] sm:$0xff]
    %v2026 = vld [vmem:[%s2 + $0x120] sm:$0xff]
    %v2027 = vld [vmem:[%s2 + $0x128] sm:$0xff]
    %v2028 = vld [vmem:[%s2 + $0x130] sm:$0xff]
    %v2029 = vld [vmem:[%s2 + $0x138] sm:$0xff]
    %v2030 = vld [vmem:[%s2 + $0x140] sm:$0xff]
    %v2031 = vld [vmem:[%s2 + $0x148] sm:$0xff]
    %v2032 = vld [vmem:[%s2 + $0x150] sm:$0xff]
    %v2033 = vld [vmem:[%s2 + $0x158] sm:$0xff]
    %v2034 = vld [vmem:[%s2 + $0x160] sm:$0xff]
    %v2035 = vld [vmem:[%s2 + $0x168] sm:$0xff]
    %v2036 = vld [vmem:[%s2 + $0x170] sm:$0xff]
    %v2037 = vld [vmem:[%s2 + $0x178] sm:$0xff]
    %v2038 = vld [vmem:[%s2 + $0x180] sm:$0xff]
    %v2039 = vld [vmem:[%s2 + $0x188] sm:$0xff]
    %v2040 = vld [vmem:[%s2 + $0x190] sm:$0xff]
    %v2041 = vld [vmem:[%s2 + $0x198] sm:$0xff]
    %v2042 = vld [vmem:[%s2 + $0x1a0] sm:$0xff]
    %v2043 = vld [vmem:[%s2 + $0x1a8] sm:$0xff]
    %v2044 = vld [vmem:[%s2 + $0x1b0] sm:$0xff]
    %v2045 = vld [vmem:[%s2 + $0x1b8] sm:$0xff]
    %v2046 = vld [vmem:[%s2 + $0x1c0] sm:$0xff]
    %v2047 = vld [vmem:[%s2 + $0x1c8] sm:$0xff]
    %v2048 = vld [vmem:[%s2 + $0x1d0] sm:$0xff]
    %v2049 = vld [vmem:[%s2 + $0x1d8] sm:$0xff]
    %v2050 = vld [vmem:[%s2 + $0x1e0] sm:$0xff]
    %v2051 = vld [vmem:[%s2 + $0x1e8] sm:$0xff]
    %v2052 = vld [vmem:[%s2 + $0x1f0] sm:$0xff]
    %v2053 = vld [vmem:[%s2 + $0x1f8] sm:$0xff]
    %v2054 = vld [vmem:[%s3] sm:$0xf]
    %v2056 = vlaneseq
    %v2057 = vshrl.u32 %v2056, 7
    %v2058 = vsub.s32 0, %v2057
    %v2059 = vrot.slane %v2054, %v2058
    %v2060 = vlaneseq
    %v2061 = vshrl.u32 %v2060, 7
    %v2062 = vsub.s32 1, %v2061
    %v2063 = vrot.slane %v2054, %v2062
    %v2064 = vlaneseq
    %v2065 = vshrl.u32 %v2064, 7
    %v2066 = vsub.s32 2, %v2065
    %v2067 = vrot.slane %v2054, %v2066
    %v2068 = vlaneseq
    %v2069 = vshrl.u32 %v2068, 7
    %v2070 = vsub.s32 3, %v2069
    %v2071 = vrot.slane %v2054, %v2070
    %2076 = vmatprep.subr.mxu0 %v1991
    %2077 = vmatpush1.msra.mxu0 %v1990
    %2078 = vmatprep.subr.mxu0 %v1995
    %2079 = vmatpush1.msra.mxu0 %v1994
    %2080 = vmatprep.subr.mxu0 %v1999
    %2081 = vmatpush1.msra.mxu0 %v1998
    %2082 = vmatprep.subr.mxu0 %v2003
    %2083 = vmatpush1.msra.mxu0 %v2002
    %2084 = vmatprep.subr.mxu0 %v2007
    %2085 = vmatpush1.msra.mxu0 %v2006
    %2086 = vmatprep.subr.mxu0 %v2011
    %2087 = vmatpush1.msra.mxu0 %v2010
    %2088 = vmatprep.subr.mxu0 %v2015
    %2089 = vmatpush1.msra.mxu0 %v2014
    %2090 = vmatprep.subr.mxu0 %v2019
    %2091 = vmatpush1.msra.mxu0 %v2018
    %2092 = vmatprep.subr.mxu0 %v2023
    %2093 = vmatpush1.msra.mxu0 %v2022
    %2094 = vmatprep.subr.mxu0 %v2027
    %2095 = vmatpush1.msra.mxu0 %v2026
    %2096 = vmatprep.subr.mxu0 %v2031
    %2097 = vmatpush1.msra.mxu0 %v2030
    %2098 = vmatprep.subr.mxu0 %v2035
    %2099 = vmatpush1.msra.mxu0 %v2034
    %2100 = vmatprep.subr.mxu0 %v2039
    %2101 = vmatpush1.msra.mxu0 %v2038
    %2102 = vmatprep.subr.mxu0 %v2043
    %2103 = vmatpush1.msra.mxu0 %v2042
    %2104 = vmatprep.subr.mxu0 %v2047
    %2105 = vmatpush1.msra.mxu0 %v2046
    %2106 = vmatprep.subr.mxu0 %v2051
    %2107 = vmatpush1.msra.mxu0 %v2050
    %2108 = vmatprep.subr.mxu0 0.0
    %2109 = vmatpush1.msra.mxu0 0.0
    %2110 = vmatprep.subr.mxu0 0.0
    %2111 = vmatpush1.msra.mxu0 0.0
    %2112 = vmatprep.subr.mxu0 0.0
    %2113 = vmatpush1.msra.mxu0 0.0
    %2114 = vmatprep.subr.mxu0 0.0
    %2115 = vmatpush1.msra.mxu0 0.0
    %2116 = vmatprep.subr.mxu0 0.0
    %2117 = vmatpush1.msra.mxu0 0.0
    %2118 = vmatprep.subr.mxu0 0.0
    %2119 = vmatpush1.msra.mxu0 0.0
    %2120 = vmatprep.subr.mxu0 0.0
    %2121 = vmatpush1.msra.mxu0 0.0
    %2122 = vmatprep.subr.mxu0 0.0
    %2123 = vmatpush1.msra.mxu0 0.0
    %2124 = vmatprep.subr.mxu0 0.0
    %2125 = vmatpush1.msra.mxu0 0.0
    %2126 = vmatprep.subr.mxu0 0.0
    %2127 = vmatpush1.msra.mxu0 0.0
    %2128 = vmatprep.subr.mxu0 0.0
    %2129 = vmatpush1.msra.mxu0 0.0
    %2130 = vmatprep.subr.mxu0 0.0
    %2131 = vmatpush1.msra.mxu0 0.0
    %2132 = vmatprep.subr.mxu0 0.0
    %2133 = vmatpush1.msra.mxu0 0.0
    %2134 = vmatprep.subr.mxu0 0.0
    %2135 = vmatpush1.msra.mxu0 0.0
    %2136 = vmatprep.subr.mxu0 0.0
    %2137 = vmatpush1.msra.mxu0 0.0
    %2138 = vmatprep.subr.mxu0 0.0
    %2139 = vmatpush1.msra.mxu0 0.0
    %2140 = vmatprep.mubr.f32.mxu0 0.0
    %2141 = vmatmul.mubr.f32.gmra.mrb[0].mxu0 %v1982
    %v2142 = vpop.f32.mrb[0].mxu0
    %v2143 = vadd.f32 %v2059, %v2142
    %v2144 = vpop.f32.mrb[0].mxu0
    %v2145 = vadd.f32 %v2063, %v2144
    %2146 = vmatprep.mubr.f32.mxu0 0.0
    %2147 = vmatmul.mubr.f32.gmra.mrb[0].mxu0 %v1983
    %v2148 = vpop.f32.mrb[0].mxu0
    %v2149 = vadd.f32 %v2059, %v2148
    %v2150 = vpop.f32.mrb[0].mxu0
    %v2151 = vadd.f32 %v2063, %v2150
    %2152 = vmatprep.mubr.f32.mxu0 0.0
    %2153 = vmatmul.mubr.f32.gmra.mrb[0].mxu0 %v1984
    %v2154 = vpop.f32.mrb[0].mxu0
    %v2155 = vadd.f32 %v2059, %v2154
    %v2156 = vpop.f32.mrb[0].mxu0
    %v2157 = vadd.f32 %v2063, %v2156
    %2158 = vmatprep.mubr.f32.mxu0 0.0
    %2159 = vmatmul.mubr.f32.gmra.mrb[0].mxu0 %v1985
    %v2160 = vpop.f32.mrb[0].mxu0
    %v2161 = vadd.f32 %v2059, %v2160
    %v2162 = vpop.f32.mrb[0].mxu0
    %v2163 = vadd.f32 %v2063, %v2162
    %2164 = vmatprep.mubr.f32.mxu0 0.0
    %2165 = vmatmul.mubr.f32.gmra.mrb[0].mxu0 %v1986
    %v2166 = vpop.f32.mrb[0].mxu0
    %v2167 = vadd.f32 %v2059, %v2166
    %v2168 = vpop.f32.mrb[0].mxu0
    %v2169 = vadd.f32 %v2063, %v2168
    %2170 = vmatprep.mubr.f32.mxu0 0.0
    %2171 = vmatmul.mubr.f32.gmra.mrb[0].mxu0 %v1987
    %v2172 = vpop.f32.mrb[0].mxu0
    %v2173 = vadd.f32 %v2059, %v2172
    %v2174 = vpop.f32.mrb[0].mxu0
    %v2175 = vadd.f32 %v2063, %v2174
    %2176 = vmatprep.mubr.f32.mxu0 0.0
    %2177 = vmatmul.mubr.f32.gmra.mrb[0].mxu0 %v1988
    %v2178 = vpop.f32.mrb[0].mxu0
    %v2179 = vadd.f32 %v2059, %v2178
    %v2180 = vpop.f32.mrb[0].mxu0
    %v2181 = vadd.f32 %v2063, %v2180
    %2182 = vmatprep.mubr.f32.mxu0 0.0
    %2183 = vmatmul.mubr.f32.gmra.mrb[0].mxu0 %v1989
    %v2184 = vpop.f32.mrb[0].mxu0
    %v2185 = vadd.f32 %v2059, %v2184
    %v2186 = vpop.f32.mrb[0].mxu0
    %v2187 = vadd.f32 %v2063, %v2186
    %2188 = vdwg.mxu0
    %2189 = vmatprep.subr.mxu0 %v1993
    %2190 = vmatpush1.msra.mxu0 %v1992
    %2191 = vmatprep.subr.mxu0 %v1997
    %2192 = vmatpush1.msra.mxu0 %v1996
    %2193 = vmatprep.subr.mxu0 %v2001
    %2194 = vmatpush1.msra.mxu0 %v2000
    %2195 = vmatprep.subr.mxu0 %v2005
    %2196 = vmatpush1.msra.mxu0 %v2004
    %2197 = vmatprep.subr.mxu0 %v2009
    %2198 = vmatpush1.msra.mxu0 %v2008
    %2199 = vmatprep.subr.mxu0 %v2013
    %2200 = vmatpush1.msra.mxu0 %v2012
    %2201 = vmatprep.subr.mxu0 %v2017
    %2202 = vmatpush1.msra.mxu0 %v2016
    %2203 = vmatprep.subr.mxu0 %v2021
    %2204 = vmatpush1.msra.mxu0 %v2020
    %2205 = vmatprep.subr.mxu0 %v2025
    %2206 = vmatpush1.msra.mxu0 %v2024
    %2207 = vmatprep.subr.mxu0 %v2029
    %2208 = vmatpush1.msra.mxu0 %v2028
    %2209 = vmatprep.subr.mxu0 %v2033
    %2210 = vmatpush1.msra.mxu0 %v2032
    %2211 = vmatprep.subr.mxu0 %v2037
    %2212 = vmatpush1.msra.mxu0 %v2036
    %2213 = vmatprep.subr.mxu0 %v2041
    %2214 = vmatpush1.msra.mxu0 %v2040
    %2215 = vmatprep.subr.mxu0 %v2045
    %2216 = vmatpush1.msra.mxu0 %v2044
    %2217 = vmatprep.subr.mxu0 %v2049
    %2218 = vmatpush1.msra.mxu0 %v2048
    %2219 = vmatprep.subr.mxu0 %v2053
    %2220 = vmatpush1.msra.mxu0 %v2052
    %2221 = vmatprep.subr.mxu0 0.0
    %2222 = vmatpush1.msra.mxu0 0.0
    %2223 = vmatprep.subr.mxu0 0.0
    %2224 = vmatpush1.msra.mxu0 0.0
    %2225 = vmatprep.subr.mxu0 0.0
    %2226 = vmatpush1.msra.mxu0 0.0
    %2227 = vmatprep.subr.mxu0 0.0
    %2228 = vmatpush1.msra.mxu0 0.0
    %2229 = vmatprep.subr.mxu0 0.0
    %2230 = vmatpush1.msra.mxu0 0.0
    %2231 = vmatprep.subr.mxu0 0.0
    %2232 = vmatpush1.msra.mxu0 0.0
    %2233 = vmatprep.subr.mxu0 0.0
    %2234 = vmatpush1.msra.mxu0 0.0
    %2235 = vmatprep.subr.mxu0 0.0
    %2236 = vmatpush1.msra.mxu0 0.0
    %2237 = vmatprep.subr.mxu0 0.0
    %2238 = vmatpush1.msra.mxu0 0.0
    %2239 = vmatprep.subr.mxu0 0.0
    %2240 = vmatpush1.msra.mxu0 0.0
    %2241 = vmatprep.subr.mxu0 0.0
    %2242 = vmatpush1.msra.mxu0 0.0
    %2243 = vmatprep.subr.mxu0 0.0
    %2244 = vmatpush1.msra.mxu0 0.0
    %2245 = vmatprep.subr.mxu0 0.0
    %2246 = vmatpush1.msra.mxu0 0.0
    %2247 = vmatprep.subr.mxu0 0.0
    %2248 = vmatpush1.msra.mxu0 0.0
    %2249 = vmatprep.subr.mxu0 0.0
    %2250 = vmatpush1.msra.mxu0 0.0
    %2251 = vmatprep.subr.mxu0 0.0
    %2252 = vmatpush1.msra.mxu0 0.0
    %2253 = vmatprep.mubr.f32.mxu0 0.0
    %2254 = vmatmul.mubr.f32.gmra.mrb[0].mxu0 %v1982
    %v2255 = vpop.f32.mrb[0].mxu0
    %v2256 = vadd.f32 %v2067, %v2255
    %v2257 = vpop.f32.mrb[0].mxu0
    %v2258 = vadd.f32 %v2071, %v2257
    %2259 = vmatprep.mubr.f32.mxu0 0.0
    %2260 = vmatmul.mubr.f32.gmra.mrb[0].mxu0 %v1983
    %v2261 = vpop.f32.mrb[0].mxu0
    %v2262 = vadd.f32 %v2067, %v2261
    %v2263 = vpop.f32.mrb[0].mxu0
    %v2264 = vadd.f32 %v2071, %v2263
    %2265 = vmatprep.mubr.f32.mxu0 0.0
    %2266 = vmatmul.mubr.f32.gmra.mrb[0].mxu0 %v1984
    %v2267 = vpop.f32.mrb[0].mxu0
    %v2268 = vadd.f32 %v2067, %v2267
    %v2269 = vpop.f32.mrb[0].mxu0
    %v2270 = vadd.f32 %v2071, %v2269
    %2271 = vmatprep.mubr.f32.mxu0 0.0
    %2272 = vmatmul.mubr.f32.gmra.mrb[0].mxu0 %v1985
    %v2273 = vpop.f32.mrb[0].mxu0
    %v2274 = vadd.f32 %v2067, %v2273
    %v2275 = vpop.f32.mrb[0].mxu0
    %v2276 = vadd.f32 %v2071, %v2275
    %2277 = vmatprep.mubr.f32.mxu0 0.0
    %2278 = vmatmul.mubr.f32.gmra.mrb[0].mxu0 %v1986
    %v2279 = vpop.f32.mrb[0].mxu0
    %v2280 = vadd.f32 %v2067, %v2279
    %v2281 = vpop.f32.mrb[0].mxu0
    %v2282 = vadd.f32 %v2071, %v2281
    %2283 = vmatprep.mubr.f32.mxu0 0.0
    %2284 = vmatmul.mubr.f32.gmra.mrb[0].mxu0 %v1987
    %v2285 = vpop.f32.mrb[0].mxu0
    %v2286 = vadd.f32 %v2067, %v2285
    %v2287 = vpop.f32.mrb[0].mxu0
    %v2288 = vadd.f32 %v2071, %v2287
    %2289 = vmatprep.mubr.f32.mxu0 0.0
    %2290 = vmatmul.mubr.f32.gmra.mrb[0].mxu0 %v1988
    %v2291 = vpop.f32.mrb[0].mxu0
    %v2292 = vadd.f32 %v2067, %v2291
    %v2293 = vpop.f32.mrb[0].mxu0
    %v2294 = vadd.f32 %v2071, %v2293
    %2295 = vmatprep.mubr.f32.mxu0 0.0
    %2296 = vmatmul.mubr.f32.gmra.mrb[0].mxu0 %v1989
    %v2297 = vpop.f32.mrb[0].mxu0
    %v2298 = vadd.f32 %v2067, %v2297
    %v2299 = vpop.f32.mrb[0].mxu0
    %v2300 = vadd.f32 %v2071, %v2299
    %2301 = vdwg.mxu0
    %2302 = vst [vmem:[#allocation3] sm:$0xff] %v2143
    %2303 = vst [vmem:[#allocation3 + $0x8] sm:$0xff] %v2145
    %2304 = vst [vmem:[#allocation3 + $0x10] sm:$0xff] %v2256
    %2305 = vst [vmem:[#allocation3 + $0x18] sm:$0xff] %v2258
    %2306 = vst [vmem:[#allocation3 + $0x20] sm:$0xff] %v2149
    %2307 = vst [vmem:[#allocation3 + $0x28] sm:$0xff] %v2151
    %2308 = vst [vmem:[#allocation3 + $0x30] sm:$0xff] %v2262
    %2309 = vst [vmem:[#allocation3 + $0x38] sm:$0xff] %v2264
    %2310 = vst [vmem:[#allocation3 + $0x40] sm:$0xff] %v2155
    %2311 = vst [vmem:[#allocation3 + $0x48] sm:$0xff] %v2157
    %2312 = vst [vmem:[#allocation3 + $0x50] sm:$0xff] %v2268
    %2313 = vst [vmem:[#allocation3 + $0x58] sm:$0xff] %v2270
    %2314 = vst [vmem:[#allocation3 + $0x60] sm:$0xff] %v2161
    %2315 = vst [vmem:[#allocation3 + $0x68] sm:$0xff] %v2163
    %2316 = vst [vmem:[#allocation3 + $0x70] sm:$0xff] %v2274
    %2317 = vst [vmem:[#allocation3 + $0x78] sm:$0xff] %v2276
    %2318 = vst [vmem:[#allocation3 + $0x80] sm:$0xff] %v2167
    %2319 = vst [vmem:[#allocation3 + $0x88] sm:$0xff] %v2169
    %2320 = vst [vmem:[#allocation3 + $0x90] sm:$0xff] %v2280
    %2321 = vst [vmem:[#allocation3 + $0x98] sm:$0xff] %v2282
    %2322 = vst [vmem:[#allocation3 + $0xa0] sm:$0xff] %v2173
    %2323 = vst [vmem:[#allocation3 + $0xa8] sm:$0xff] %v2175
    %2324 = vst [vmem:[#allocation3 + $0xb0] sm:$0xff] %v2286
    %2325 = vst [vmem:[#allocation3 + $0xb8] sm:$0xff] %v2288
    %2326 = vst [vmem:[#allocation3 + $0xc0] sm:$0xff] %v2179
    %2327 = vst [vmem:[#allocation3 + $0xc8] sm:$0xff] %v2181
    %2328 = vst [vmem:[#allocation3 + $0xd0] sm:$0xff] %v2292
    %2329 = vst [vmem:[#allocation3 + $0xd8] sm:$0xff] %v2294
    %2330 = vst [vmem:[#allocation3 + $0xe0] sm:$0xff] %v2185
    %2331 = vst [vmem:[#allocation3 + $0xe8] sm:$0xff] %v2187
    %2332 = vst [vmem:[#allocation3 + $0xf0] sm:$0xff] %v2298
    %2333 = vst [vmem:[#allocation3 + $0xf8] sm:$0xff] %v2300
    %s2334 = smul.addr %s39, 8
    %s2335 = scalar_lea.vmem [#allocation3], %s2334
    %v2336 = vld [vmem:[%s2335] sm:$0xff]
    %v2337 = vld [vmem:[%s2335 + $0x8] sm:$0xff]
    %v2338 = vld [vmem:[%s2335 + $0x10] sm:$0xff]
    %v2339 = vld [vmem:[%s2335 + $0x18] sm:$0xff]
    %s2340 = scalar_lea.vmem [#allocation5], 512
    %v2341 = vld [vmem:[%s2340] sm:$0xff]
    %v2342 = vld [vmem:[%s2340 + $0x8] sm:$0xff]
    %v2343 = vld [vmem:[%s2340 + $0x10] sm:$0xff]
    %v2344 = vld [vmem:[%s2340 + $0x18] sm:$0xff]
    %v2345 = vld [vmem:[%s2340 + $0x20] sm:$0xff]
    %v2346 = vld [vmem:[%s2340 + $0x28] sm:$0xff]
    %v2347 = vld [vmem:[%s2340 + $0x30] sm:$0xff]
    %v2348 = vld [vmem:[%s2340 + $0x38] sm:$0xff]
    %v2349 = vld [vmem:[%s2340 + $0x40] sm:$0xff]
    %v2350 = vld [vmem:[%s2340 + $0x48] sm:$0xff]
    %v2351 = vld [vmem:[%s2340 + $0x50] sm:$0xff]
    %v2352 = vld [vmem:[%s2340 + $0x58] sm:$0xff]
    %v2353 = vld [vmem:[%s2340 + $0x60] sm:$0xff]
    %v2354 = vld [vmem:[%s2340 + $0x68] sm:$0xff]
    %v2355 = vld [vmem:[%s2340 + $0x70] sm:$0xff]
    %v2356 = vld [vmem:[%s2340 + $0x78] sm:$0xff]
    %v2357 = vld [vmem:[%s2340 + $0x80] sm:$0xff]
    %v2358 = vld [vmem:[%s2340 + $0x88] sm:$0xff]
    %v2359 = vld [vmem:[%s2340 + $0x90] sm:$0xff]
    %v2360 = vld [vmem:[%s2340 + $0x98] sm:$0xff]
    %v2361 = vld [vmem:[%s2340 + $0xa0] sm:$0xff]
    %v2362 = vld [vmem:[%s2340 + $0xa8] sm:$0xff]
    %v2363 = vld [vmem:[%s2340 + $0xb0] sm:$0xff]
    %v2364 = vld [vmem:[%s2340 + $0xb8] sm:$0xff]
    %v2365 = vld [vmem:[%s2340 + $0xc0] sm:$0xff]
    %v2366 = vld [vmem:[%s2340 + $0xc8] sm:$0xff]
    %v2367 = vld [vmem:[%s2340 + $0xd0] sm:$0xff]
    %v2368 = vld [vmem:[%s2340 + $0xd8] sm:$0xff]
    %v2369 = vld [vmem:[%s2340 + $0xe0] sm:$0xff]
    %v2370 = vld [vmem:[%s2340 + $0xe8] sm:$0xff]
    %v2371 = vld [vmem:[%s2340 + $0xf0] sm:$0xff]
    %v2372 = vld [vmem:[%s2340 + $0xf8] sm:$0xff]
    %v2373 = vld [vmem:[%s2340 + $0x100] sm:$0xff]
    %v2374 = vld [vmem:[%s2340 + $0x108] sm:$0xff]
    %v2375 = vld [vmem:[%s2340 + $0x110] sm:$0xff]
    %v2376 = vld [vmem:[%s2340 + $0x118] sm:$0xff]
    %v2377 = vld [vmem:[%s2340 + $0x120] sm:$0xff]
    %v2378 = vld [vmem:[%s2340 + $0x128] sm:$0xff]
    %v2379 = vld [vmem:[%s2340 + $0x130] sm:$0xff]
    %v2380 = vld [vmem:[%s2340 + $0x138] sm:$0xff]
    %v2381 = vld [vmem:[%s2340 + $0x140] sm:$0xff]
    %v2382 = vld [vmem:[%s2340 + $0x148] sm:$0xff]
    %v2383 = vld [vmem:[%s2340 + $0x150] sm:$0xff]
    %v2384 = vld [vmem:[%s2340 + $0x158] sm:$0xff]
    %v2385 = vld [vmem:[%s2340 + $0x160] sm:$0xff]
    %v2386 = vld [vmem:[%s2340 + $0x168] sm:$0xff]
    %v2387 = vld [vmem:[%s2340 + $0x170] sm:$0xff]
    %v2388 = vld [vmem:[%s2340 + $0x178] sm:$0xff]
    %v2389 = vld [vmem:[%s2340 + $0x180] sm:$0xff]
    %v2390 = vld [vmem:[%s2340 + $0x188] sm:$0xff]
    %v2391 = vld [vmem:[%s2340 + $0x190] sm:$0xff]
    %v2392 = vld [vmem:[%s2340 + $0x198] sm:$0xff]
    %v2393 = vld [vmem:[%s2340 + $0x1a0] sm:$0xff]
    %v2394 = vld [vmem:[%s2340 + $0x1a8] sm:$0xff]
    %v2395 = vld [vmem:[%s2340 + $0x1b0] sm:$0xff]
    %v2396 = vld [vmem:[%s2340 + $0x1b8] sm:$0xff]
    %v2397 = vld [vmem:[%s2340 + $0x1c0] sm:$0xff]
    %v2398 = vld [vmem:[%s2340 + $0x1c8] sm:$0xff]
    %v2399 = vld [vmem:[%s2340 + $0x1d0] sm:$0xff]
    %v2400 = vld [vmem:[%s2340 + $0x1d8] sm:$0xff]
    %v2401 = vld [vmem:[%s2340 + $0x1e0] sm:$0xff]
    %v2402 = vld [vmem:[%s2340 + $0x1e8] sm:$0xff]
    %v2403 = vld [vmem:[%s2340 + $0x1f0] sm:$0xff]
    %v2404 = vld [vmem:[%s2340 + $0x1f8] sm:$0xff]
    %2405 = vmatprep.subr.mxu0 %v2342
    %2406 = vmatpush1.msra.mxu0 %v2341
    %2407 = vmatprep.subr.mxu0 %v2346
    %2408 = vmatpush1.msra.mxu0 %v2345
    %2409 = vmatprep.subr.mxu0 %v2350
    %2410 = vmatpush1.msra.mxu0 %v2349
    %2411 = vmatprep.subr.mxu0 %v2354
    %2412 = vmatpush1.msra.mxu0 %v2353
    %2413 = vmatprep.subr.mxu0 %v2358
    %2414 = vmatpush1.msra.mxu0 %v2357
    %2415 = vmatprep.subr.mxu0 %v2362
    %2416 = vmatpush1.msra.mxu0 %v2361
    %2417 = vmatprep.subr.mxu0 %v2366
    %2418 = vmatpush1.msra.mxu0 %v2365
    %2419 = vmatprep.subr.mxu0 %v2370
    %2420 = vmatpush1.msra.mxu0 %v2369
    %2421 = vmatprep.subr.mxu0 %v2374
    %2422 = vmatpush1.msra.mxu0 %v2373
    %2423 = vmatprep.subr.mxu0 %v2378
    %2424 = vmatpush1.msra.mxu0 %v2377
    %2425 = vmatprep.subr.mxu0 %v2382
    %2426 = vmatpush1.msra.mxu0 %v2381
    %2427 = vmatprep.subr.mxu0 %v2386
    %2428 = vmatpush1.msra.mxu0 %v2385
    %2429 = vmatprep.subr.mxu0 %v2390
    %2430 = vmatpush1.msra.mxu0 %v2389
    %2431 = vmatprep.subr.mxu0 %v2394
    %2432 = vmatpush1.msra.mxu0 %v2393
    %2433 = vmatprep.subr.mxu0 %v2398
    %2434 = vmatpush1.msra.mxu0 %v2397
    %2435 = vmatprep.subr.mxu0 %v2402
    %2436 = vmatpush1.msra.mxu0 %v2401
    %2437 = vmatprep.subr.mxu0 0.0
    %2438 = vmatpush1.msra.mxu0 0.0
    %2439 = vmatprep.subr.mxu0 0.0
    %2440 = vmatpush1.msra.mxu0 0.0
    %2441 = vmatprep.subr.mxu0 0.0
    %2442 = vmatpush1.msra.mxu0 0.0
    %2443 = vmatprep.subr.mxu0 0.0
    %2444 = vmatpush1.msra.mxu0 0.0
    %2445 = vmatprep.subr.mxu0 0.0
    %2446 = vmatpush1.msra.mxu0 0.0
    %2447 = vmatprep.subr.mxu0 0.0
    %2448 = vmatpush1.msra.mxu0 0.0
    %2449 = vmatprep.subr.mxu0 0.0
    %2450 = vmatpush1.msra.mxu0 0.0
    %2451 = vmatprep.subr.mxu0 0.0
    %2452 = vmatpush1.msra.mxu0 0.0
    %2453 = vmatprep.subr.mxu0 0.0
    %2454 = vmatpush1.msra.mxu0 0.0
    %2455 = vmatprep.subr.mxu0 0.0
    %2456 = vmatpush1.msra.mxu0 0.0
    %2457 = vmatprep.subr.mxu0 0.0
    %2458 = vmatpush1.msra.mxu0 0.0
    %2459 = vmatprep.subr.mxu0 0.0
    %2460 = vmatpush1.msra.mxu0 0.0
    %2461 = vmatprep.subr.mxu0 0.0
    %2462 = vmatpush1.msra.mxu0 0.0
    %2463 = vmatprep.subr.mxu0 0.0
    %2464 = vmatpush1.msra.mxu0 0.0
    %2465 = vmatprep.subr.mxu0 0.0
    %2466 = vmatpush1.msra.mxu0 0.0
    %2467 = vmatprep.subr.mxu0 0.0
    %2468 = vmatpush1.msra.mxu0 0.0
    %2469 = vmatprep.mubr.f32.mxu0 0.0
    %2470 = vmatmul.mubr.f32.gmra.mrb[0].mxu0 0.0
    %v2471 = vpop.f32.mrb[0].mxu0
    %v2472 = vadd.f32 0.0, %v2471
    %v2473 = vpop.f32.mrb[0].mxu0
    %v2474 = vadd.f32 0.0, %v2473
    %2475 = vdwg.mxu0
    %2476 = vmatprep.subr.mxu0 %v2344
    %2477 = vmatpush1.msra.mxu0 %v2343
    %2478 = vmatprep.subr.mxu0 %v2348
    %2479 = vmatpush1.msra.mxu0 %v2347
    %2480 = vmatprep.subr.mxu0 %v2352
    %2481 = vmatpush1.msra.mxu0 %v2351
    %2482 = vmatprep.subr.mxu0 %v2356
    %2483 = vmatpush1.msra.mxu0 %v2355
    %2484 = vmatprep.subr.mxu0 %v2360
    %2485 = vmatpush1.msra.mxu0 %v2359
    %2486 = vmatprep.subr.mxu0 %v2364
    %2487 = vmatpush1.msra.mxu0 %v2363
    %2488 = vmatprep.subr.mxu0 %v2368
    %2489 = vmatpush1.msra.mxu0 %v2367
    %2490 = vmatprep.subr.mxu0 %v2372
    %2491 = vmatpush1.msra.mxu0 %v2371
    %2492 = vmatprep.subr.mxu0 %v2376
    %2493 = vmatpush1.msra.mxu0 %v2375
    %2494 = vmatprep.subr.mxu0 %v2380
    %2495 = vmatpush1.msra.mxu0 %v2379
    %2496 = vmatprep.subr.mxu0 %v2384
    %2497 = vmatpush1.msra.mxu0 %v2383
    %2498 = vmatprep.subr.mxu0 %v2388
    %2499 = vmatpush1.msra.mxu0 %v2387
    %2500 = vmatprep.subr.mxu0 %v2392
    %2501 = vmatpush1.msra.mxu0 %v2391
    %2502 = vmatprep.subr.mxu0 %v2396
    %2503 = vmatpush1.msra.mxu0 %v2395
    %2504 = vmatprep.subr.mxu0 %v2400
    %2505 = vmatpush1.msra.mxu0 %v2399
    %2506 = vmatprep.subr.mxu0 %v2404
    %2507 = vmatpush1.msra.mxu0 %v2403
    %2508 = vmatprep.subr.mxu0 0.0
    %2509 = vmatpush1.msra.mxu0 0.0
    %2510 = vmatprep.subr.mxu0 0.0
    %2511 = vmatpush1.msra.mxu0 0.0
    %2512 = vmatprep.subr.mxu0 0.0
    %2513 = vmatpush1.msra.mxu0 0.0
    %2514 = vmatprep.subr.mxu0 0.0
    %2515 = vmatpush1.msra.mxu0 0.0
    %2516 = vmatprep.subr.mxu0 0.0
    %2517 = vmatpush1.msra.mxu0 0.0
    %2518 = vmatprep.subr.mxu0 0.0
    %2519 = vmatpush1.msra.mxu0 0.0
    %2520 = vmatprep.subr.mxu0 0.0
    %2521 = vmatpush1.msra.mxu0 0.0
    %2522 = vmatprep.subr.mxu0 0.0
    %2523 = vmatpush1.msra.mxu0 0.0
    %2524 = vmatprep.subr.mxu0 0.0
    %2525 = vmatpush1.msra.mxu0 0.0
    %2526 = vmatprep.subr.mxu0 0.0
    %2527 = vmatpush1.msra.mxu0 0.0
    %2528 = vmatprep.subr.mxu0 0.0
    %2529 = vmatpush1.msra.mxu0 0.0
    %2530 = vmatprep.subr.mxu0 0.0
    %2531 = vmatpush1.msra.mxu0 0.0
    %2532 = vmatprep.subr.mxu0 0.0
    %2533 = vmatpush1.msra.mxu0 0.0
    %2534 = vmatprep.subr.mxu0 0.0
    %2535 = vmatpush1.msra.mxu0 0.0
    %2536 = vmatprep.subr.mxu0 0.0
    %2537 = vmatpush1.msra.mxu0 0.0
    %2538 = vmatprep.subr.mxu0 0.0
    %2539 = vmatpush1.msra.mxu0 0.0
    %2540 = vmatprep.mubr.f32.mxu0 0.0
    %2541 = vmatmul.mubr.f32.gmra.mrb[0].mxu0 0.0
    %v2542 = vpop.f32.mrb[0].mxu0
    %v2543 = vadd.f32 0.0, %v2542
    %v2544 = vpop.f32.mrb[0].mxu0
    %v2545 = vadd.f32 0.0, %v2544
    %2546 = vdwg.mxu0
    %v2547 = vadd.f32 %v2336, %v2472
    %v2548 = vadd.f32 %v2337, %v2474
    %v2549 = vadd.f32 %v2338, %v2543
    %v2550 = vadd.f32 %v2339, %v2545
    %v2551 = vxor.u32 %v2547, 2147483648
    %v2552 = vxor.u32 %v2548, 2147483648
    %v2553 = vxor.u32 %v2549, 2147483648
    %v2554 = vmul.f32 %v2551, 1.442695
    %v2555 = vpow.pop %v2554
    %v2556 = vmul.f32 %v2552, 1.442695
    %v2557 = vpow.pop %v2556
    %v2558 = vmul.f32 %v2553, 1.442695
    %v2559 = vpow.pop %v2558
    %v2560 = vadd.f32 %v2555, 1.0
    %v2561 = vadd.f32 %v2557, 1.0
    %v2562 = vadd.f32 %v2559, 1.0
    %v2563 = vrcp.pop %v2560
    %v2564 = vmul.f32 1.0, %v2563
    %v2565 = vrcp.pop %v2561
    %v2566 = vmul.f32 1.0, %v2565
    %v2567 = vrcp.pop %v2562
    %v2568 = vmul.f32 1.0, %v2567
    %v2569 = vtanh.pop %v2550
    %v2570 = vmul.f32 %v2566, 0.0
    %v2571 = vmul.f32 %v2564, %v2569
    %v2572 = vadd.f32 %v2570, %v2571
    %v2573 = vtanh.pop %v2572
    %v2574 = vmul.f32 %v2568, %v2573
    %s2575 = smul.addr %s281, 8
    %s2576 = scalar_lea.vmem [#allocation3], %s2575
    %v2577 = vld [vmem:[%s2576] sm:$0xff]
    %v2578 = vld [vmem:[%s2576 + $0x8] sm:$0xff]
    %v2579 = vld [vmem:[%s2576 + $0x10] sm:$0xff]
    %v2580 = vld [vmem:[%s2576 + $0x18] sm:$0xff]
    %2581 = vmatprep.subr.mxu0 %v2342
    %2582 = vmatpush1.msra.mxu0 %v2341
    %2583 = vmatprep.subr.mxu0 %v2346
    %2584 = vmatpush1.msra.mxu0 %v2345
    %2585 = vmatprep.subr.mxu0 %v2350
    %2586 = vmatpush1.msra.mxu0 %v2349
    %2587 = vmatprep.subr.mxu0 %v2354
    %2588 = vmatpush1.msra.mxu0 %v2353
    %2589 = vmatprep.subr.mxu0 %v2358
    %2590 = vmatpush1.msra.mxu0 %v2357
    %2591 = vmatprep.subr.mxu0 %v2362
    %2592 = vmatpush1.msra.mxu0 %v2361
    %2593 = vmatprep.subr.mxu0 %v2366
    %2594 = vmatpush1.msra.mxu0 %v2365
    %2595 = vmatprep.subr.mxu0 %v2370
    %2596 = vmatpush1.msra.mxu0 %v2369
    %2597 = vmatprep.subr.mxu0 %v2374
    %2598 = vmatpush1.msra.mxu0 %v2373
    %2599 = vmatprep.subr.mxu0 %v2378
    %2600 = vmatpush1.msra.mxu0 %v2377
    %2601 = vmatprep.subr.mxu0 %v2382
    %2602 = vmatpush1.msra.mxu0 %v2381
    %2603 = vmatprep.subr.mxu0 %v2386
    %2604 = vmatpush1.msra.mxu0 %v2385
    %2605 = vmatprep.subr.mxu0 %v2390
    %2606 = vmatpush1.msra.mxu0 %v2389
    %2607 = vmatprep.subr.mxu0 %v2394
    %2608 = vmatpush1.msra.mxu0 %v2393
    %2609 = vmatprep.subr.mxu0 %v2398
    %2610 = vmatpush1.msra.mxu0 %v2397
    %2611 = vmatprep.subr.mxu0 %v2402
    %2612 = vmatpush1.msra.mxu0 %v2401
    %2613 = vmatprep.subr.mxu0 0.0
    %2614 = vmatpush1.msra.mxu0 0.0
    %2615 = vmatprep.subr.mxu0 0.0
    %2616 = vmatpush1.msra.mxu0 0.0
    %2617 = vmatprep.subr.mxu0 0.0
    %2618 = vmatpush1.msra.mxu0 0.0
    %2619 = vmatprep.subr.mxu0 0.0
    %2620 = vmatpush1.msra.mxu0 0.0
    %2621 = vmatprep.subr.mxu0 0.0
    %2622 = vmatpush1.msra.mxu0 0.0
    %2623 = vmatprep.subr.mxu0 0.0
    %2624 = vmatpush1.msra.mxu0 0.0
    %2625 = vmatprep.subr.mxu0 0.0
    %2626 = vmatpush1.msra.mxu0 0.0
    %2627 = vmatprep.subr.mxu0 0.0
    %2628 = vmatpush1.msra.mxu0 0.0
    %2629 = vmatprep.subr.mxu0 0.0
    %2630 = vmatpush1.msra.mxu0 0.0
    %2631 = vmatprep.subr.mxu0 0.0
    %2632 = vmatpush1.msra.mxu0 0.0
    %2633 = vmatprep.subr.mxu0 0.0
    %2634 = vmatpush1.msra.mxu0 0.0
    %2635 = vmatprep.subr.mxu0 0.0
    %2636 = vmatpush1.msra.mxu0 0.0
    %2637 = vmatprep.subr.mxu0 0.0
    %2638 = vmatpush1.msra.mxu0 0.0
    %2639 = vmatprep.subr.mxu0 0.0
    %2640 = vmatpush1.msra.mxu0 0.0
    %2641 = vmatprep.subr.mxu0 0.0
    %2642 = vmatpush1.msra.mxu0 0.0
    %2643 = vmatprep.subr.mxu0 0.0
    %2644 = vmatpush1.msra.mxu0 0.0
    %2645 = vmatprep.mubr.f32.mxu0 0.0
    %2646 = vmatmul.mubr.f32.gmra.mrb[0].mxu0 %v2574
    %v2647 = vpop.f32.mrb[0].mxu0
    %v2648 = vadd.f32 0.0, %v2647
    %v2649 = vpop.f32.mrb[0].mxu0
    %v2650 = vadd.f32 0.0, %v2649
    %2651 = vdwg.mxu0
    %2652 = vmatprep.subr.mxu0 %v2344
    %2653 = vmatpush1.msra.mxu0 %v2343
    %2654 = vmatprep.subr.mxu0 %v2348
    %2655 = vmatpush1.msra.mxu0 %v2347
    %2656 = vmatprep.subr.mxu0 %v2352
    %2657 = vmatpush1.msra.mxu0 %v2351
    %2658 = vmatprep.subr.mxu0 %v2356
    %2659 = vmatpush1.msra.mxu0 %v2355
    %2660 = vmatprep.subr.mxu0 %v2360
    %2661 = vmatpush1.msra.mxu0 %v2359
    %2662 = vmatprep.subr.mxu0 %v2364
    %2663 = vmatpush1.msra.mxu0 %v2363
    %2664 = vmatprep.subr.mxu0 %v2368
    %2665 = vmatpush1.msra.mxu0 %v2367
    %2666 = vmatprep.subr.mxu0 %v2372
    %2667 = vmatpush1.msra.mxu0 %v2371
    %2668 = vmatprep.subr.mxu0 %v2376
    %2669 = vmatpush1.msra.mxu0 %v2375
    %2670 = vmatprep.subr.mxu0 %v2380
    %2671 = vmatpush1.msra.mxu0 %v2379
    %2672 = vmatprep.subr.mxu0 %v2384
    %2673 = vmatpush1.msra.mxu0 %v2383
    %2674 = vmatprep.subr.mxu0 %v2388
    %2675 = vmatpush1.msra.mxu0 %v2387
    %2676 = vmatprep.subr.mxu0 %v2392
    %2677 = vmatpush1.msra.mxu0 %v2391
    %2678 = vmatprep.subr.mxu0 %v2396
    %2679 = vmatpush1.msra.mxu0 %v2395
    %2680 = vmatprep.subr.mxu0 %v2400
    %2681 = vmatpush1.msra.mxu0 %v2399
    %2682 = vmatprep.subr.mxu0 %v2404
    %2683 = vmatpush1.msra.mxu0 %v2403
    %2684 = vmatprep.subr.mxu0 0.0
    %2685 = vmatpush1.msra.mxu0 0.0
    %2686 = vmatprep.subr.mxu0 0.0
    %2687 = vmatpush1.msra.mxu0 0.0
    %2688 = vmatprep.subr.mxu0 0.0
    %2689 = vmatpush1.msra.mxu0 0.0
    %2690 = vmatprep.subr.mxu0 0.0
    %2691 = vmatpush1.msra.mxu0 0.0
    %2692 = vmatprep.subr.mxu0 0.0
    %2693 = vmatpush1.msra.mxu0 0.0
    %2694 = vmatprep.subr.mxu0 0.0
    %2695 = vmatpush1.msra.mxu0 0.0
    %2696 = vmatprep.subr.mxu0 0.0
    %2697 = vmatpush1.msra.mxu0 0.0
    %2698 = vmatprep.subr.mxu0 0.0
    %2699 = vmatpush1.msra.mxu0 0.0
    %2700 = vmatprep.subr.mxu0 0.0
    %2701 = vmatpush1.msra.mxu0 0.0
    %2702 = vmatprep.subr.mxu0 0.0
    %2703 = vmatpush1.msra.mxu0 0.0
    %2704 = vmatprep.subr.mxu0 0.0
    %2705 = vmatpush1.msra.mxu0 0.0
    %2706 = vmatprep.subr.mxu0 0.0
    %2707 = vmatpush1.msra.mxu0 0.0
    %2708 = vmatprep.subr.mxu0 0.0
    %2709 = vmatpush1.msra.mxu0 0.0
    %2710 = vmatprep.subr.mxu0 0.0
    %2711 = vmatpush1.msra.mxu0 0.0
    %2712 = vmatprep.subr.mxu0 0.0
    %2713 = vmatpush1.msra.mxu0 0.0
    %2714 = vmatprep.subr.mxu0 0.0
    %2715 = vmatpush1.msra.mxu0 0.0
    %2716 = vmatprep.mubr.f32.mxu0 0.0
    %2717 = vmatmul.mubr.f32.gmra.mrb[0].mxu0 %v2574
    %v2718 = vpop.f32.mrb[0].mxu0
    %v2719 = vadd.f32 0.0, %v2718
    %v2720 = vpop.f32.mrb[0].mxu0
    %v2721 = vadd.f32 0.0, %v2720
    %2722 = vdwg.mxu0
    %v2723 = vadd.f32 %v2577, %v2648
    %v2724 = vadd.f32 %v2578, %v2650
    %v2725 = vadd.f32 %v2579, %v2719
    %v2726 = vadd.f32 %v2580, %v2721
    %v2727 = vxor.u32 %v2723, 2147483648
    %v2728 = vxor.u32 %v2724, 2147483648
    %v2729 = vxor.u32 %v2725, 2147483648
    %v2730 = vmul.f32 %v2727, 1.442695
    %v2731 = vpow.pop %v2730
    %v2732 = vmul.f32 %v2728, 1.442695
    %v2733 = vpow.pop %v2732
    %v2734 = vmul.f32 %v2729, 1.442695
    %v2735 = vpow.pop %v2734
    %v2736 = vadd.f32 %v2731, 1.0
    %v2737 = vadd.f32 %v2733, 1.0
    %v2738 = vadd.f32 %v2735, 1.0
    %v2739 = vrcp.pop %v2736
    %v2740 = vmul.f32 1.0, %v2739
    %v2741 = vrcp.pop %v2737
    %v2742 = vmul.f32 1.0, %v2741
    %v2743 = vrcp.pop %v2738
    %v2744 = vmul.f32 1.0, %v2743
    %v2745 = vtanh.pop %v2726
    %v2746 = vmul.f32 %v2742, %v2572
    %v2747 = vmul.f32 %v2740, %v2745
    %v2748 = vadd.f32 %v2746, %v2747
    %v2749 = vtanh.pop %v2748
    %v2750 = vmul.f32 %v2744, %v2749
    %s2751 = smul.addr %s524, 8
    %s2752 = scalar_lea.vmem [#allocation3], %s2751
    %v2753 = vld [vmem:[%s2752] sm:$0xff]
    %v2754 = vld [vmem:[%s2752 + $0x8] sm:$0xff]
    %v2755 = vld [vmem:[%s2752 + $0x10] sm:$0xff]
    %v2756 = vld [vmem:[%s2752 + $0x18] sm:$0xff]
    %2757 = vmatprep.subr.mxu0 %v2342
    %2758 = vmatpush1.msra.mxu0 %v2341
    %2759 = vmatprep.subr.mxu0 %v2346
    %2760 = vmatpush1.msra.mxu0 %v2345
    %2761 = vmatprep.subr.mxu0 %v2350
    %2762 = vmatpush1.msra.mxu0 %v2349
    %2763 = vmatprep.subr.mxu0 %v2354
    %2764 = vmatpush1.msra.mxu0 %v2353
    %2765 = vmatprep.subr.mxu0 %v2358
    %2766 = vmatpush1.msra.mxu0 %v2357
    %2767 = vmatprep.subr.mxu0 %v2362
    %2768 = vmatpush1.msra.mxu0 %v2361
    %2769 = vmatprep.subr.mxu0 %v2366
    %2770 = vmatpush1.msra.mxu0 %v2365
    %2771 = vmatprep.subr.mxu0 %v2370
    %2772 = vmatpush1.msra.mxu0 %v2369
    %2773 = vmatprep.subr.mxu0 %v2374
    %2774 = vmatpush1.msra.mxu0 %v2373
    %2775 = vmatprep.subr.mxu0 %v2378
    %2776 = vmatpush1.msra.mxu0 %v2377
    %2777 = vmatprep.subr.mxu0 %v2382
    %2778 = vmatpush1.msra.mxu0 %v2381
    %2779 = vmatprep.subr.mxu0 %v2386
    %2780 = vmatpush1.msra.mxu0 %v2385
    %2781 = vmatprep.subr.mxu0 %v2390
    %2782 = vmatpush1.msra.mxu0 %v2389
    %2783 = vmatprep.subr.mxu0 %v2394
    %2784 = vmatpush1.msra.mxu0 %v2393
    %2785 = vmatprep.subr.mxu0 %v2398
    %2786 = vmatpush1.msra.mxu0 %v2397
    %2787 = vmatprep.subr.mxu0 %v2402
    %2788 = vmatpush1.msra.mxu0 %v2401
    %2789 = vmatprep.subr.mxu0 0.0
    %2790 = vmatpush1.msra.mxu0 0.0
    %2791 = vmatprep.subr.mxu0 0.0
    %2792 = vmatpush1.msra.mxu0 0.0
    %2793 = vmatprep.subr.mxu0 0.0
    %2794 = vmatpush1.msra.mxu0 0.0
    %2795 = vmatprep.subr.mxu0 0.0
    %2796 = vmatpush1.msra.mxu0 0.0
    %2797 = vmatprep.subr.mxu0 0.0
    %2798 = vmatpush1.msra.mxu0 0.0
    %2799 = vmatprep.subr.mxu0 0.0
    %2800 = vmatpush1.msra.mxu0 0.0
    %2801 = vmatprep.subr.mxu0 0.0
    %2802 = vmatpush1.msra.mxu0 0.0
    %2803 = vmatprep.subr.mxu0 0.0
    %2804 = vmatpush1.msra.mxu0 0.0
    %2805 = vmatprep.subr.mxu0 0.0
    %2806 = vmatpush1.msra.mxu0 0.0
    %2807 = vmatprep.subr.mxu0 0.0
    %2808 = vmatpush1.msra.mxu0 0.0
    %2809 = vmatprep.subr.mxu0 0.0
    %2810 = vmatpush1.msra.mxu0 0.0
    %2811 = vmatprep.subr.mxu0 0.0
    %2812 = vmatpush1.msra.mxu0 0.0
    %2813 = vmatprep.subr.mxu0 0.0
    %2814 = vmatpush1.msra.mxu0 0.0
    %2815 = vmatprep.subr.mxu0 0.0
    %2816 = vmatpush1.msra.mxu0 0.0
    %2817 = vmatprep.subr.mxu0 0.0
    %2818 = vmatpush1.msra.mxu0 0.0
    %2819 = vmatprep.subr.mxu0 0.0
    %2820 = vmatpush1.msra.mxu0 0.0
    %2821 = vmatprep.mubr.f32.mxu0 0.0
    %2822 = vmatmul.mubr.f32.gmra.mrb[0].mxu0 %v2750
    %v2823 = vpop.f32.mrb[0].mxu0
    %v2824 = vadd.f32 0.0, %v2823
    %v2825 = vpop.f32.mrb[0].mxu0
    %v2826 = vadd.f32 0.0, %v2825
    %2827 = vdwg.mxu0
    %2828 = vmatprep.subr.mxu0 %v2344
    %2829 = vmatpush1.msra.mxu0 %v2343
    %2830 = vmatprep.subr.mxu0 %v2348
    %2831 = vmatpush1.msra.mxu0 %v2347
    %2832 = vmatprep.subr.mxu0 %v2352
    %2833 = vmatpush1.msra.mxu0 %v2351
    %2834 = vmatprep.subr.mxu0 %v2356
    %2835 = vmatpush1.msra.mxu0 %v2355
    %2836 = vmatprep.subr.mxu0 %v2360
    %2837 = vmatpush1.msra.mxu0 %v2359
    %2838 = vmatprep.subr.mxu0 %v2364
    %2839 = vmatpush1.msra.mxu0 %v2363
    %2840 = vmatprep.subr.mxu0 %v2368
    %2841 = vmatpush1.msra.mxu0 %v2367
    %2842 = vmatprep.subr.mxu0 %v2372
    %2843 = vmatpush1.msra.mxu0 %v2371
    %2844 = vmatprep.subr.mxu0 %v2376
    %2845 = vmatpush1.msra.mxu0 %v2375
    %2846 = vmatprep.subr.mxu0 %v2380
    %2847 = vmatpush1.msra.mxu0 %v2379
    %2848 = vmatprep.subr.mxu0 %v2384
    %2849 = vmatpush1.msra.mxu0 %v2383
    %2850 = vmatprep.subr.mxu0 %v2388
    %2851 = vmatpush1.msra.mxu0 %v2387
    %2852 = vmatprep.subr.mxu0 %v2392
    %2853 = vmatpush1.msra.mxu0 %v2391
    %2854 = vmatprep.subr.mxu0 %v2396
    %2855 = vmatpush1.msra.mxu0 %v2395
    %2856 = vmatprep.subr.mxu0 %v2400
    %2857 = vmatpush1.msra.mxu0 %v2399
    %2858 = vmatprep.subr.mxu0 %v2404
    %2859 = vmatpush1.msra.mxu0 %v2403
    %2860 = vmatprep.subr.mxu0 0.0
    %2861 = vmatpush1.msra.mxu0 0.0
    %2862 = vmatprep.subr.mxu0 0.0
    %2863 = vmatpush1.msra.mxu0 0.0
    %2864 = vmatprep.subr.mxu0 0.0
    %2865 = vmatpush1.msra.mxu0 0.0
    %2866 = vmatprep.subr.mxu0 0.0
    %2867 = vmatpush1.msra.mxu0 0.0
    %2868 = vmatprep.subr.mxu0 0.0
    %2869 = vmatpush1.msra.mxu0 0.0
    %2870 = vmatprep.subr.mxu0 0.0
    %2871 = vmatpush1.msra.mxu0 0.0
    %2872 = vmatprep.subr.mxu0 0.0
    %2873 = vmatpush1.msra.mxu0 0.0
    %2874 = vmatprep.subr.mxu0 0.0
    %2875 = vmatpush1.msra.mxu0 0.0
    %2876 = vmatprep.subr.mxu0 0.0
    %2877 = vmatpush1.msra.mxu0 0.0
    %2878 = vmatprep.subr.mxu0 0.0
    %2879 = vmatpush1.msra.mxu0 0.0
    %2880 = vmatprep.subr.mxu0 0.0
    %2881 = vmatpush1.msra.mxu0 0.0
    %2882 = vmatprep.subr.mxu0 0.0
    %2883 = vmatpush1.msra.mxu0 0.0
    %2884 = vmatprep.subr.mxu0 0.0
    %2885 = vmatpush1.msra.mxu0 0.0
    %2886 = vmatprep.subr.mxu0 0.0
    %2887 = vmatpush1.msra.mxu0 0.0
    %2888 = vmatprep.subr.mxu0 0.0
    %2889 = vmatpush1.msra.mxu0 0.0
    %2890 = vmatprep.subr.mxu0 0.0
    %2891 = vmatpush1.msra.mxu0 0.0
    %2892 = vmatprep.mubr.f32.mxu0 0.0
    %2893 = vmatmul.mubr.f32.gmra.mrb[0].mxu0 %v2750
    %v2894 = vpop.f32.mrb[0].mxu0
    %v2895 = vadd.f32 0.0, %v2894
    %v2896 = vpop.f32.mrb[0].mxu0
    %v2897 = vadd.f32 0.0, %v2896
    %2898 = vdwg.mxu0
    %v2899 = vadd.f32 %v2753, %v2824
    %v2900 = vadd.f32 %v2754, %v2826
    %v2901 = vadd.f32 %v2755, %v2895
    %v2902 = vadd.f32 %v2756, %v2897
    %v2903 = vxor.u32 %v2899, 2147483648
    %v2904 = vxor.u32 %v2900, 2147483648
    %v2905 = vxor.u32 %v2901, 2147483648
    %v2906 = vmul.f32 %v2903, 1.442695
    %v2907 = vpow.pop %v2906
    %v2908 = vmul.f32 %v2904, 1.442695
    %v2909 = vpow.pop %v2908
    %v2910 = vmul.f32 %v2905, 1.442695
    %v2911 = vpow.pop %v2910
    %v2912 = vadd.f32 %v2907, 1.0
    %v2913 = vadd.f32 %v2909, 1.0
    %v2914 = vadd.f32 %v2911, 1.0
    %v2915 = vrcp.pop %v2912
    %v2916 = vmul.f32 1.0, %v2915
    %v2917 = vrcp.pop %v2913
    %v2918 = vmul.f32 1.0, %v2917
    %v2919 = vrcp.pop %v2914
    %v2920 = vmul.f32 1.0, %v2919
    %v2921 = vtanh.pop %v2902
    %v2922 = vmul.f32 %v2918, %v2748
    %v2923 = vmul.f32 %v2916, %v2921
    %v2924 = vadd.f32 %v2922, %v2923
    %v2925 = vtanh.pop %v2924
    %v2926 = vmul.f32 %v2920, %v2925
    %s2927 = smul.addr %s767, 8
    %s2928 = scalar_lea.vmem [#allocation3], %s2927
    %v2929 = vld [vmem:[%s2928] sm:$0xff]
    %v2930 = vld [vmem:[%s2928 + $0x8] sm:$0xff]
    %v2931 = vld [vmem:[%s2928 + $0x10] sm:$0xff]
    %v2932 = vld [vmem:[%s2928 + $0x18] sm:$0xff]
    %2933 = vmatprep.subr.mxu0 %v2342
    %2934 = vmatpush1.msra.mxu0 %v2341
    %2935 = vmatprep.subr.mxu0 %v2346
    %2936 = vmatpush1.msra.mxu0 %v2345
    %2937 = vmatprep.subr.mxu0 %v2350
    %2938 = vmatpush1.msra.mxu0 %v2349
    %2939 = vmatprep.subr.mxu0 %v2354
    %2940 = vmatpush1.msra.mxu0 %v2353
    %2941 = vmatprep.subr.mxu0 %v2358
    %2942 = vmatpush1.msra.mxu0 %v2357
    %2943 = vmatprep.subr.mxu0 %v2362
    %2944 = vmatpush1.msra.mxu0 %v2361
    %2945 = vmatprep.subr.mxu0 %v2366
    %2946 = vmatpush1.msra.mxu0 %v2365
    %2947 = vmatprep.subr.mxu0 %v2370
    %2948 = vmatpush1.msra.mxu0 %v2369
    %2949 = vmatprep.subr.mxu0 %v2374
    %2950 = vmatpush1.msra.mxu0 %v2373
    %2951 = vmatprep.subr.mxu0 %v2378
    %2952 = vmatpush1.msra.mxu0 %v2377
    %2953 = vmatprep.subr.mxu0 %v2382
    %2954 = vmatpush1.msra.mxu0 %v2381
    %2955 = vmatprep.subr.mxu0 %v2386
    %2956 = vmatpush1.msra.mxu0 %v2385
    %2957 = vmatprep.subr.mxu0 %v2390
    %2958 = vmatpush1.msra.mxu0 %v2389
    %2959 = vmatprep.subr.mxu0 %v2394
    %2960 = vmatpush1.msra.mxu0 %v2393
    %2961 = vmatprep.subr.mxu0 %v2398
    %2962 = vmatpush1.msra.mxu0 %v2397
    %2963 = vmatprep.subr.mxu0 %v2402
    %2964 = vmatpush1.msra.mxu0 %v2401
    %2965 = vmatprep.subr.mxu0 0.0
    %2966 = vmatpush1.msra.mxu0 0.0
    %2967 = vmatprep.subr.mxu0 0.0
    %2968 = vmatpush1.msra.mxu0 0.0
    %2969 = vmatprep.subr.mxu0 0.0
    %2970 = vmatpush1.msra.mxu0 0.0
    %2971 = vmatprep.subr.mxu0 0.0
    %2972 = vmatpush1.msra.mxu0 0.0
    %2973 = vmatprep.subr.mxu0 0.0
    %2974 = vmatpush1.msra.mxu0 0.0
    %2975 = vmatprep.subr.mxu0 0.0
    %2976 = vmatpush1.msra.mxu0 0.0
    %2977 = vmatprep.subr.mxu0 0.0
    %2978 = vmatpush1.msra.mxu0 0.0
    %2979 = vmatprep.subr.mxu0 0.0
    %2980 = vmatpush1.msra.mxu0 0.0
    %2981 = vmatprep.subr.mxu0 0.0
    %2982 = vmatpush1.msra.mxu0 0.0
    %2983 = vmatprep.subr.mxu0 0.0
    %2984 = vmatpush1.msra.mxu0 0.0
    %2985 = vmatprep.subr.mxu0 0.0
    %2986 = vmatpush1.msra.mxu0 0.0
    %2987 = vmatprep.subr.mxu0 0.0
    %2988 = vmatpush1.msra.mxu0 0.0
    %2989 = vmatprep.subr.mxu0 0.0
    %2990 = vmatpush1.msra.mxu0 0.0
    %2991 = vmatprep.subr.mxu0 0.0
    %2992 = vmatpush1.msra.mxu0 0.0
    %2993 = vmatprep.subr.mxu0 0.0
    %2994 = vmatpush1.msra.mxu0 0.0
    %2995 = vmatprep.subr.mxu0 0.0
    %2996 = vmatpush1.msra.mxu0 0.0
    %2997 = vmatprep.mubr.f32.mxu0 0.0
    %2998 = vmatmul.mubr.f32.gmra.mrb[0].mxu0 %v2926
    %v2999 = vpop.f32.mrb[0].mxu0
    %v3000 = vadd.f32 0.0, %v2999
    %v3001 = vpop.f32.mrb[0].mxu0
    %v3002 = vadd.f32 0.0, %v3001
    %3003 = vdwg.mxu0
    %3004 = vmatprep.subr.mxu0 %v2344
    %3005 = vmatpush1.msra.mxu0 %v2343
    %3006 = vmatprep.subr.mxu0 %v2348
    %3007 = vmatpush1.msra.mxu0 %v2347
    %3008 = vmatprep.subr.mxu0 %v2352
    %3009 = vmatpush1.msra.mxu0 %v2351
    %3010 = vmatprep.subr.mxu0 %v2356
    %3011 = vmatpush1.msra.mxu0 %v2355
    %3012 = vmatprep.subr.mxu0 %v2360
    %3013 = vmatpush1.msra.mxu0 %v2359
    %3014 = vmatprep.subr.mxu0 %v2364
    %3015 = vmatpush1.msra.mxu0 %v2363
    %3016 = vmatprep.subr.mxu0 %v2368
    %3017 = vmatpush1.msra.mxu0 %v2367
    %3018 = vmatprep.subr.mxu0 %v2372
    %3019 = vmatpush1.msra.mxu0 %v2371
    %3020 = vmatprep.subr.mxu0 %v2376
    %3021 = vmatpush1.msra.mxu0 %v2375
    %3022 = vmatprep.subr.mxu0 %v2380
    %3023 = vmatpush1.msra.mxu0 %v2379
    %3024 = vmatprep.subr.mxu0 %v2384
    %3025 = vmatpush1.msra.mxu0 %v2383
    %3026 = vmatprep.subr.mxu0 %v2388
    %3027 = vmatpush1.msra.mxu0 %v2387
    %3028 = vmatprep.subr.mxu0 %v2392
    %3029 = vmatpush1.msra.mxu0 %v2391
    %3030 = vmatprep.subr.mxu0 %v2396
    %3031 = vmatpush1.msra.mxu0 %v2395
    %3032 = vmatprep.subr.mxu0 %v2400
    %3033 = vmatpush1.msra.mxu0 %v2399
    %3034 = vmatprep.subr.mxu0 %v2404
    %3035 = vmatpush1.msra.mxu0 %v2403
    %3036 = vmatprep.subr.mxu0 0.0
    %3037 = vmatpush1.msra.mxu0 0.0
    %3038 = vmatprep.subr.mxu0 0.0
    %3039 = vmatpush1.msra.mxu0 0.0
    %3040 = vmatprep.subr.mxu0 0.0
    %3041 = vmatpush1.msra.mxu0 0.0
    %3042 = vmatprep.subr.mxu0 0.0
    %3043 = vmatpush1.msra.mxu0 0.0
    %3044 = vmatprep.subr.mxu0 0.0
    %3045 = vmatpush1.msra.mxu0 0.0
    %3046 = vmatprep.subr.mxu0 0.0
    %3047 = vmatpush1.msra.mxu0 0.0
    %3048 = vmatprep.subr.mxu0 0.0
    %3049 = vmatpush1.msra.mxu0 0.0
    %3050 = vmatprep.subr.mxu0 0.0
    %3051 = vmatpush1.msra.mxu0 0.0
    %3052 = vmatprep.subr.mxu0 0.0
    %3053 = vmatpush1.msra.mxu0 0.0
    %3054 = vmatprep.subr.mxu0 0.0
    %3055 = vmatpush1.msra.mxu0 0.0
    %3056 = vmatprep.subr.mxu0 0.0
    %3057 = vmatpush1.msra.mxu0 0.0
    %3058 = vmatprep.subr.mxu0 0.0
    %3059 = vmatpush1.msra.mxu0 0.0
    %3060 = vmatprep.subr.mxu0 0.0
    %3061 = vmatpush1.msra.mxu0 0.0
    %3062 = vmatprep.subr.mxu0 0.0
    %3063 = vmatpush1.msra.mxu0 0.0
    %3064 = vmatprep.subr.mxu0 0.0
    %3065 = vmatpush1.msra.mxu0 0.0
    %3066 = vmatprep.subr.mxu0 0.0
    %3067 = vmatpush1.msra.mxu0 0.0
    %3068 = vmatprep.mubr.f32.mxu0 0.0
    %3069 = vmatmul.mubr.f32.gmra.mrb[0].mxu0 %v2926
    %v3070 = vpop.f32.mrb[0].mxu0
    %v3071 = vadd.f32 0.0, %v3070
    %v3072 = vpop.f32.mrb[0].mxu0
    %v3073 = vadd.f32 0.0, %v3072
    %3074 = vdwg.mxu0
    %v3075 = vadd.f32 %v2929, %v3000
    %v3076 = vadd.f32 %v2930, %v3002
    %v3077 = vadd.f32 %v2931, %v3071
    %v3078 = vadd.f32 %v2932, %v3073
    %v3079 = vxor.u32 %v3075, 2147483648
    %v3080 = vxor.u32 %v3076, 2147483648
    %v3081 = vxor.u32 %v3077, 2147483648
    %v3082 = vmul.f32 %v3079, 1.442695
    %v3083 = vpow.pop %v3082
    %v3084 = vmul.f32 %v3080, 1.442695
    %v3085 = vpow.pop %v3084
    %v3086 = vmul.f32 %v3081, 1.442695
    %v3087 = vpow.pop %v3086
    %v3088 = vadd.f32 %v3083, 1.0
    %v3089 = vadd.f32 %v3085, 1.0
    %v3090 = vadd.f32 %v3087, 1.0
    %v3091 = vrcp.pop %v3088
    %v3092 = vmul.f32 1.0, %v3091
    %v3093 = vrcp.pop %v3089
    %v3094 = vmul.f32 1.0, %v3093
    %v3095 = vrcp.pop %v3090
    %v3096 = vmul.f32 1.0, %v3095
    %v3097 = vtanh.pop %v3078
    %v3098 = vmul.f32 %v3094, %v2924
    %v3099 = vmul.f32 %v3092, %v3097
    %v3100 = vadd.f32 %v3098, %v3099
    %v3101 = vtanh.pop %v3100
    %v3102 = vmul.f32 %v3096, %v3101
    %s3103 = smul.addr %s1010, 8
    %s3104 = scalar_lea.vmem [#allocation3], %s3103
    %v3105 = vld [vmem:[%s3104] sm:$0xff]
    %v3106 = vld [vmem:[%s3104 + $0x8] sm:$0xff]
    %v3107 = vld [vmem:[%s3104 + $0x10] sm:$0xff]
    %v3108 = vld [vmem:[%s3104 + $0x18] sm:$0xff]
    %3109 = vmatprep.subr.mxu0 %v2342
    %3110 = vmatpush1.msra.mxu0 %v2341
    %3111 = vmatprep.subr.mxu0 %v2346
    %3112 = vmatpush1.msra.mxu0 %v2345
    %3113 = vmatprep.subr.mxu0 %v2350
    %3114 = vmatpush1.msra.mxu0 %v2349
    %3115 = vmatprep.subr.mxu0 %v2354
    %3116 = vmatpush1.msra.mxu0 %v2353
    %3117 = vmatprep.subr.mxu0 %v2358
    %3118 = vmatpush1.msra.mxu0 %v2357
    %3119 = vmatprep.subr.mxu0 %v2362
    %3120 = vmatpush1.msra.mxu0 %v2361
    %3121 = vmatprep.subr.mxu0 %v2366
    %3122 = vmatpush1.msra.mxu0 %v2365
    %3123 = vmatprep.subr.mxu0 %v2370
    %3124 = vmatpush1.msra.mxu0 %v2369
    %3125 = vmatprep.subr.mxu0 %v2374
    %3126 = vmatpush1.msra.mxu0 %v2373
    %3127 = vmatprep.subr.mxu0 %v2378
    %3128 = vmatpush1.msra.mxu0 %v2377
    %3129 = vmatprep.subr.mxu0 %v2382
    %3130 = vmatpush1.msra.mxu0 %v2381
    %3131 = vmatprep.subr.mxu0 %v2386
    %3132 = vmatpush1.msra.mxu0 %v2385
    %3133 = vmatprep.subr.mxu0 %v2390
    %3134 = vmatpush1.msra.mxu0 %v2389
    %3135 = vmatprep.subr.mxu0 %v2394
    %3136 = vmatpush1.msra.mxu0 %v2393
    %3137 = vmatprep.subr.mxu0 %v2398
    %3138 = vmatpush1.msra.mxu0 %v2397
    %3139 = vmatprep.subr.mxu0 %v2402
    %3140 = vmatpush1.msra.mxu0 %v2401
    %3141 = vmatprep.subr.mxu0 0.0
    %3142 = vmatpush1.msra.mxu0 0.0
    %3143 = vmatprep.subr.mxu0 0.0
    %3144 = vmatpush1.msra.mxu0 0.0
    %3145 = vmatprep.subr.mxu0 0.0
    %3146 = vmatpush1.msra.mxu0 0.0
    %3147 = vmatprep.subr.mxu0 0.0
    %3148 = vmatpush1.msra.mxu0 0.0
    %3149 = vmatprep.subr.mxu0 0.0
    %3150 = vmatpush1.msra.mxu0 0.0
    %3151 = vmatprep.subr.mxu0 0.0
    %3152 = vmatpush1.msra.mxu0 0.0
    %3153 = vmatprep.subr.mxu0 0.0
    %3154 = vmatpush1.msra.mxu0 0.0
    %3155 = vmatprep.subr.mxu0 0.0
    %3156 = vmatpush1.msra.mxu0 0.0
    %3157 = vmatprep.subr.mxu0 0.0
    %3158 = vmatpush1.msra.mxu0 0.0
    %3159 = vmatprep.subr.mxu0 0.0
    %3160 = vmatpush1.msra.mxu0 0.0
    %3161 = vmatprep.subr.mxu0 0.0
    %3162 = vmatpush1.msra.mxu0 0.0
    %3163 = vmatprep.subr.mxu0 0.0
    %3164 = vmatpush1.msra.mxu0 0.0
    %3165 = vmatprep.subr.mxu0 0.0
    %3166 = vmatpush1.msra.mxu0 0.0
    %3167 = vmatprep.subr.mxu0 0.0
    %3168 = vmatpush1.msra.mxu0 0.0
    %3169 = vmatprep.subr.mxu0 0.0
    %3170 = vmatpush1.msra.mxu0 0.0
    %3171 = vmatprep.subr.mxu0 0.0
    %3172 = vmatpush1.msra.mxu0 0.0
    %3173 = vmatprep.mubr.f32.mxu0 0.0
    %3174 = vmatmul.mubr.f32.gmra.mrb[0].mxu0 %v3102
    %v3175 = vpop.f32.mrb[0].mxu0
    %v3176 = vadd.f32 0.0, %v3175
    %v3177 = vpop.f32.mrb[0].mxu0
    %v3178 = vadd.f32 0.0, %v3177
    %3179 = vdwg.mxu0
    %3180 = vmatprep.subr.mxu0 %v2344
    %3181 = vmatpush1.msra.mxu0 %v2343
    %3182 = vmatprep.subr.mxu0 %v2348
    %3183 = vmatpush1.msra.mxu0 %v2347
    %3184 = vmatprep.subr.mxu0 %v2352
    %3185 = vmatpush1.msra.mxu0 %v2351
    %3186 = vmatprep.subr.mxu0 %v2356
    %3187 = vmatpush1.msra.mxu0 %v2355
    %3188 = vmatprep.subr.mxu0 %v2360
    %3189 = vmatpush1.msra.mxu0 %v2359
    %3190 = vmatprep.subr.mxu0 %v2364
    %3191 = vmatpush1.msra.mxu0 %v2363
    %3192 = vmatprep.subr.mxu0 %v2368
    %3193 = vmatpush1.msra.mxu0 %v2367
    %3194 = vmatprep.subr.mxu0 %v2372
    %3195 = vmatpush1.msra.mxu0 %v2371
    %3196 = vmatprep.subr.mxu0 %v2376
    %3197 = vmatpush1.msra.mxu0 %v2375
    %3198 = vmatprep.subr.mxu0 %v2380
    %3199 = vmatpush1.msra.mxu0 %v2379
    %3200 = vmatprep.subr.mxu0 %v2384
    %3201 = vmatpush1.msra.mxu0 %v2383
    %3202 = vmatprep.subr.mxu0 %v2388
    %3203 = vmatpush1.msra.mxu0 %v2387
    %3204 = vmatprep.subr.mxu0 %v2392
    %3205 = vmatpush1.msra.mxu0 %v2391
    %3206 = vmatprep.subr.mxu0 %v2396
    %3207 = vmatpush1.msra.mxu0 %v2395
    %3208 = vmatprep.subr.mxu0 %v2400
    %3209 = vmatpush1.msra.mxu0 %v2399
    %3210 = vmatprep.subr.mxu0 %v2404
    %3211 = vmatpush1.msra.mxu0 %v2403
    %3212 = vmatprep.subr.mxu0 0.0
    %3213 = vmatpush1.msra.mxu0 0.0
    %3214 = vmatprep.subr.mxu0 0.0
    %3215 = vmatpush1.msra.mxu0 0.0
    %3216 = vmatprep.subr.mxu0 0.0
    %3217 = vmatpush1.msra.mxu0 0.0
    %3218 = vmatprep.subr.mxu0 0.0
    %3219 = vmatpush1.msra.mxu0 0.0
    %3220 = vmatprep.subr.mxu0 0.0
    %3221 = vmatpush1.msra.mxu0 0.0
    %3222 = vmatprep.subr.mxu0 0.0
    %3223 = vmatpush1.msra.mxu0 0.0
    %3224 = vmatprep.subr.mxu0 0.0
    %3225 = vmatpush1.msra.mxu0 0.0
    %3226 = vmatprep.subr.mxu0 0.0
    %3227 = vmatpush1.msra.mxu0 0.0
    %3228 = vmatprep.subr.mxu0 0.0
    %3229 = vmatpush1.msra.mxu0 0.0
    %3230 = vmatprep.subr.mxu0 0.0
    %3231 = vmatpush1.msra.mxu0 0.0
    %3232 = vmatprep.subr.mxu0 0.0
    %3233 = vmatpush1.msra.mxu0 0.0
    %3234 = vmatprep.subr.mxu0 0.0
    %3235 = vmatpush1.msra.mxu0 0.0
    %3236 = vmatprep.subr.mxu0 0.0
    %3237 = vmatpush1.msra.mxu0 0.0
    %3238 = vmatprep.subr.mxu0 0.0
    %3239 = vmatpush1.msra.mxu0 0.0
    %3240 = vmatprep.subr.mxu0 0.0
    %3241 = vmatpush1.msra.mxu0 0.0
    %3242 = vmatprep.subr.mxu0 0.0
    %3243 = vmatpush1.msra.mxu0 0.0
    %3244 = vmatprep.mubr.f32.mxu0 0.0
    %3245 = vmatmul.mubr.f32.gmra.mrb[0].mxu0 %v3102
    %v3246 = vpop.f32.mrb[0].mxu0
    %v3247 = vadd.f32 0.0, %v3246
    %v3248 = vpop.f32.mrb[0].mxu0
    %v3249 = vadd.f32 0.0, %v3248
    %3250 = vdwg.mxu0
    %v3251 = vadd.f32 %v3105, %v3176
    %v3252 = vadd.f32 %v3106, %v3178
    %v3253 = vadd.f32 %v3107, %v3247
    %v3254 = vadd.f32 %v3108, %v3249
    %v3255 = vxor.u32 %v3251, 2147483648
    %v3256 = vxor.u32 %v3252, 2147483648
    %v3257 = vxor.u32 %v3253, 2147483648
    %v3258 = vmul.f32 %v3255, 1.442695
    %v3259 = vpow.pop %v3258
    %v3260 = vmul.f32 %v3256, 1.442695
    %v3261 = vpow.pop %v3260
    %v3262 = vmul.f32 %v3257, 1.442695
    %v3263 = vpow.pop %v3262
    %v3264 = vadd.f32 %v3259, 1.0
    %v3265 = vadd.f32 %v3261, 1.0
    %v3266 = vadd.f32 %v3263, 1.0
    %v3267 = vrcp.pop %v3264
    %v3268 = vmul.f32 1.0, %v3267
    %v3269 = vrcp.pop %v3265
    %v3270 = vmul.f32 1.0, %v3269
    %v3271 = vrcp.pop %v3266
    %v3272 = vmul.f32 1.0, %v3271
    %v3273 = vtanh.pop %v3254
    %v3274 = vmul.f32 %v3270, %v3100
    %v3275 = vmul.f32 %v3268, %v3273
    %v3276 = vadd.f32 %v3274, %v3275
    %v3277 = vtanh.pop %v3276
    %v3278 = vmul.f32 %v3272, %v3277
    %s3279 = smul.addr %s1253, 8
    %s3280 = scalar_lea.vmem [#allocation3], %s3279
    %v3281 = vld [vmem:[%s3280] sm:$0xff]
    %v3282 = vld [vmem:[%s3280 + $0x8] sm:$0xff]
    %v3283 = vld [vmem:[%s3280 + $0x10] sm:$0xff]
    %v3284 = vld [vmem:[%s3280 + $0x18] sm:$0xff]
    %3285 = vmatprep.subr.mxu0 %v2342
    %3286 = vmatpush1.msra.mxu0 %v2341
    %3287 = vmatprep.subr.mxu0 %v2346
    %3288 = vmatpush1.msra.mxu0 %v2345
    %3289 = vmatprep.subr.mxu0 %v2350
    %3290 = vmatpush1.msra.mxu0 %v2349
    %3291 = vmatprep.subr.mxu0 %v2354
    %3292 = vmatpush1.msra.mxu0 %v2353
    %3293 = vmatprep.subr.mxu0 %v2358
    %3294 = vmatpush1.msra.mxu0 %v2357
    %3295 = vmatprep.subr.mxu0 %v2362
    %3296 = vmatpush1.msra.mxu0 %v2361
    %3297 = vmatprep.subr.mxu0 %v2366
    %3298 = vmatpush1.msra.mxu0 %v2365
    %3299 = vmatprep.subr.mxu0 %v2370
    %3300 = vmatpush1.msra.mxu0 %v2369
    %3301 = vmatprep.subr.mxu0 %v2374
    %3302 = vmatpush1.msra.mxu0 %v2373
    %3303 = vmatprep.subr.mxu0 %v2378
    %3304 = vmatpush1.msra.mxu0 %v2377
    %3305 = vmatprep.subr.mxu0 %v2382
    %3306 = vmatpush1.msra.mxu0 %v2381
    %3307 = vmatprep.subr.mxu0 %v2386
    %3308 = vmatpush1.msra.mxu0 %v2385
    %3309 = vmatprep.subr.mxu0 %v2390
    %3310 = vmatpush1.msra.mxu0 %v2389
    %3311 = vmatprep.subr.mxu0 %v2394
    %3312 = vmatpush1.msra.mxu0 %v2393
    %3313 = vmatprep.subr.mxu0 %v2398
    %3314 = vmatpush1.msra.mxu0 %v2397
    %3315 = vmatprep.subr.mxu0 %v2402
    %3316 = vmatpush1.msra.mxu0 %v2401
    %3317 = vmatprep.subr.mxu0 0.0
    %3318 = vmatpush1.msra.mxu0 0.0
    %3319 = vmatprep.subr.mxu0 0.0
    %3320 = vmatpush1.msra.mxu0 0.0
    %3321 = vmatprep.subr.mxu0 0.0
    %3322 = vmatpush1.msra.mxu0 0.0
    %3323 = vmatprep.subr.mxu0 0.0
    %3324 = vmatpush1.msra.mxu0 0.0
    %3325 = vmatprep.subr.mxu0 0.0
    %3326 = vmatpush1.msra.mxu0 0.0
    %3327 = vmatprep.subr.mxu0 0.0
    %3328 = vmatpush1.msra.mxu0 0.0
    %3329 = vmatprep.subr.mxu0 0.0
    %3330 = vmatpush1.msra.mxu0 0.0
    %3331 = vmatprep.subr.mxu0 0.0
    %3332 = vmatpush1.msra.mxu0 0.0
    %3333 = vmatprep.subr.mxu0 0.0
    %3334 = vmatpush1.msra.mxu0 0.0
    %3335 = vmatprep.subr.mxu0 0.0
    %3336 = vmatpush1.msra.mxu0 0.0
    %3337 = vmatprep.subr.mxu0 0.0
    %3338 = vmatpush1.msra.mxu0 0.0
    %3339 = vmatprep.subr.mxu0 0.0
    %3340 = vmatpush1.msra.mxu0 0.0
    %3341 = vmatprep.subr.mxu0 0.0
    %3342 = vmatpush1.msra.mxu0 0.0
    %3343 = vmatprep.subr.mxu0 0.0
    %3344 = vmatpush1.msra.mxu0 0.0
    %3345 = vmatprep.subr.mxu0 0.0
    %3346 = vmatpush1.msra.mxu0 0.0
    %3347 = vmatprep.subr.mxu0 0.0
    %3348 = vmatpush1.msra.mxu0 0.0
    %3349 = vmatprep.mubr.f32.mxu0 0.0
    %3350 = vmatmul.mubr.f32.gmra.mrb[0].mxu0 %v3278
    %v3351 = vpop.f32.mrb[0].mxu0
    %v3352 = vadd.f32 0.0, %v3351
    %v3353 = vpop.f32.mrb[0].mxu0
    %v3354 = vadd.f32 0.0, %v3353
    %3355 = vdwg.mxu0
    %3356 = vmatprep.subr.mxu0 %v2344
    %3357 = vmatpush1.msra.mxu0 %v2343
    %3358 = vmatprep.subr.mxu0 %v2348
    %3359 = vmatpush1.msra.mxu0 %v2347
    %3360 = vmatprep.subr.mxu0 %v2352
    %3361 = vmatpush1.msra.mxu0 %v2351
    %3362 = vmatprep.subr.mxu0 %v2356
    %3363 = vmatpush1.msra.mxu0 %v2355
    %3364 = vmatprep.subr.mxu0 %v2360
    %3365 = vmatpush1.msra.mxu0 %v2359
    %3366 = vmatprep.subr.mxu0 %v2364
    %3367 = vmatpush1.msra.mxu0 %v2363
    %3368 = vmatprep.subr.mxu0 %v2368
    %3369 = vmatpush1.msra.mxu0 %v2367
    %3370 = vmatprep.subr.mxu0 %v2372
    %3371 = vmatpush1.msra.mxu0 %v2371
    %3372 = vmatprep.subr.mxu0 %v2376
    %3373 = vmatpush1.msra.mxu0 %v2375
    %3374 = vmatprep.subr.mxu0 %v2380
    %3375 = vmatpush1.msra.mxu0 %v2379
    %3376 = vmatprep.subr.mxu0 %v2384
    %3377 = vmatpush1.msra.mxu0 %v2383
    %3378 = vmatprep.subr.mxu0 %v2388
    %3379 = vmatpush1.msra.mxu0 %v2387
    %3380 = vmatprep.subr.mxu0 %v2392
    %3381 = vmatpush1.msra.mxu0 %v2391
    %3382 = vmatprep.subr.mxu0 %v2396
    %3383 = vmatpush1.msra.mxu0 %v2395
    %3384 = vmatprep.subr.mxu0 %v2400
    %3385 = vmatpush1.msra.mxu0 %v2399
    %3386 = vmatprep.subr.mxu0 %v2404
    %3387 = vmatpush1.msra.mxu0 %v2403
    %3388 = vmatprep.subr.mxu0 0.0
    %3389 = vmatpush1.msra.mxu0 0.0
    %3390 = vmatprep.subr.mxu0 0.0
    %3391 = vmatpush1.msra.mxu0 0.0
    %3392 = vmatprep.subr.mxu0 0.0
    %3393 = vmatpush1.msra.mxu0 0.0
    %3394 = vmatprep.subr.mxu0 0.0
    %3395 = vmatpush1.msra.mxu0 0.0
    %3396 = vmatprep.subr.mxu0 0.0
    %3397 = vmatpush1.msra.mxu0 0.0
    %3398 = vmatprep.subr.mxu0 0.0
    %3399 = vmatpush1.msra.mxu0 0.0
    %3400 = vmatprep.subr.mxu0 0.0
    %3401 = vmatpush1.msra.mxu0 0.0
    %3402 = vmatprep.subr.mxu0 0.0
    %3403 = vmatpush1.msra.mxu0 0.0
    %3404 = vmatprep.subr.mxu0 0.0
    %3405 = vmatpush1.msra.mxu0 0.0
    %3406 = vmatprep.subr.mxu0 0.0
    %3407 = vmatpush1.msra.mxu0 0.0
    %3408 = vmatprep.subr.mxu0 0.0
    %3409 = vmatpush1.msra.mxu0 0.0
    %3410 = vmatprep.subr.mxu0 0.0
    %3411 = vmatpush1.msra.mxu0 0.0
    %3412 = vmatprep.subr.mxu0 0.0
    %3413 = vmatpush1.msra.mxu0 0.0
    %3414 = vmatprep.subr.mxu0 0.0
    %3415 = vmatpush1.msra.mxu0 0.0
    %3416 = vmatprep.subr.mxu0 0.0
    %3417 = vmatpush1.msra.mxu0 0.0
    %3418 = vmatprep.subr.mxu0 0.0
    %3419 = vmatpush1.msra.mxu0 0.0
    %3420 = vmatprep.mubr.f32.mxu0 0.0
    %3421 = vmatmul.mubr.f32.gmra.mrb[0].mxu0 %v3278
    %v3422 = vpop.f32.mrb[0].mxu0
    %v3423 = vadd.f32 0.0, %v3422
    %v3424 = vpop.f32.mrb[0].mxu0
    %v3425 = vadd.f32 0.0, %v3424
    %3426 = vdwg.mxu0
    %v3427 = vadd.f32 %v3281, %v3352
    %v3428 = vadd.f32 %v3282, %v3354
    %v3429 = vadd.f32 %v3283, %v3423
    %v3430 = vadd.f32 %v3284, %v3425
    %v3431 = vxor.u32 %v3427, 2147483648
    %v3432 = vxor.u32 %v3428, 2147483648
    %v3433 = vxor.u32 %v3429, 2147483648
    %v3434 = vmul.f32 %v3431, 1.442695
    %v3435 = vpow.pop %v3434
    %v3436 = vmul.f32 %v3432, 1.442695
    %v3437 = vpow.pop %v3436
    %v3438 = vmul.f32 %v3433, 1.442695
    %v3439 = vpow.pop %v3438
    %v3440 = vadd.f32 %v3435, 1.0
    %v3441 = vadd.f32 %v3437, 1.0
    %v3442 = vadd.f32 %v3439, 1.0
    %v3443 = vrcp.pop %v3440
    %v3444 = vmul.f32 1.0, %v3443
    %v3445 = vrcp.pop %v3441
    %v3446 = vmul.f32 1.0, %v3445
    %v3447 = vrcp.pop %v3442
    %v3448 = vmul.f32 1.0, %v3447
    %v3449 = vtanh.pop %v3430
    %v3450 = vmul.f32 %v3446, %v3276
    %v3451 = vmul.f32 %v3444, %v3449
    %v3452 = vadd.f32 %v3450, %v3451
    %v3453 = vtanh.pop %v3452
    %v3454 = vmul.f32 %v3448, %v3453
    %s3455 = smul.addr %s1496, 8
    %s3456 = scalar_lea.vmem [#allocation3], %s3455
    %v3457 = vld [vmem:[%s3456] sm:$0xff]
    %v3458 = vld [vmem:[%s3456 + $0x8] sm:$0xff]
    %v3459 = vld [vmem:[%s3456 + $0x10] sm:$0xff]
    %v3460 = vld [vmem:[%s3456 + $0x18] sm:$0xff]
    %3461 = vmatprep.subr.mxu0 %v2342
    %3462 = vmatpush1.msra.mxu0 %v2341
    %3463 = vmatprep.subr.mxu0 %v2346
    %3464 = vmatpush1.msra.mxu0 %v2345
    %3465 = vmatprep.subr.mxu0 %v2350
    %3466 = vmatpush1.msra.mxu0 %v2349
    %3467 = vmatprep.subr.mxu0 %v2354
    %3468 = vmatpush1.msra.mxu0 %v2353
    %3469 = vmatprep.subr.mxu0 %v2358
    %3470 = vmatpush1.msra.mxu0 %v2357
    %3471 = vmatprep.subr.mxu0 %v2362
    %3472 = vmatpush1.msra.mxu0 %v2361
    %3473 = vmatprep.subr.mxu0 %v2366
    %3474 = vmatpush1.msra.mxu0 %v2365
    %3475 = vmatprep.subr.mxu0 %v2370
    %3476 = vmatpush1.msra.mxu0 %v2369
    %3477 = vmatprep.subr.mxu0 %v2374
    %3478 = vmatpush1.msra.mxu0 %v2373
    %3479 = vmatprep.subr.mxu0 %v2378
    %3480 = vmatpush1.msra.mxu0 %v2377
    %3481 = vmatprep.subr.mxu0 %v2382
    %3482 = vmatpush1.msra.mxu0 %v2381
    %3483 = vmatprep.subr.mxu0 %v2386
    %3484 = vmatpush1.msra.mxu0 %v2385
    %3485 = vmatprep.subr.mxu0 %v2390
    %3486 = vmatpush1.msra.mxu0 %v2389
    %3487 = vmatprep.subr.mxu0 %v2394
    %3488 = vmatpush1.msra.mxu0 %v2393
    %3489 = vmatprep.subr.mxu0 %v2398
    %3490 = vmatpush1.msra.mxu0 %v2397
    %3491 = vmatprep.subr.mxu0 %v2402
    %3492 = vmatpush1.msra.mxu0 %v2401
    %3493 = vmatprep.subr.mxu0 0.0
    %3494 = vmatpush1.msra.mxu0 0.0
    %3495 = vmatprep.subr.mxu0 0.0
    %3496 = vmatpush1.msra.mxu0 0.0
    %3497 = vmatprep.subr.mxu0 0.0
    %3498 = vmatpush1.msra.mxu0 0.0
    %3499 = vmatprep.subr.mxu0 0.0
    %3500 = vmatpush1.msra.mxu0 0.0
    %3501 = vmatprep.subr.mxu0 0.0
    %3502 = vmatpush1.msra.mxu0 0.0
    %3503 = vmatprep.subr.mxu0 0.0
    %3504 = vmatpush1.msra.mxu0 0.0
    %3505 = vmatprep.subr.mxu0 0.0
    %3506 = vmatpush1.msra.mxu0 0.0
    %3507 = vmatprep.subr.mxu0 0.0
    %3508 = vmatpush1.msra.mxu0 0.0
    %3509 = vmatprep.subr.mxu0 0.0
    %3510 = vmatpush1.msra.mxu0 0.0
    %3511 = vmatprep.subr.mxu0 0.0
    %3512 = vmatpush1.msra.mxu0 0.0
    %3513 = vmatprep.subr.mxu0 0.0
    %3514 = vmatpush1.msra.mxu0 0.0
    %3515 = vmatprep.subr.mxu0 0.0
    %3516 = vmatpush1.msra.mxu0 0.0
    %3517 = vmatprep.subr.mxu0 0.0
    %3518 = vmatpush1.msra.mxu0 0.0
    %3519 = vmatprep.subr.mxu0 0.0
    %3520 = vmatpush1.msra.mxu0 0.0
    %3521 = vmatprep.subr.mxu0 0.0
    %3522 = vmatpush1.msra.mxu0 0.0
    %3523 = vmatprep.subr.mxu0 0.0
    %3524 = vmatpush1.msra.mxu0 0.0
    %3525 = vmatprep.mubr.f32.mxu0 0.0
    %3526 = vmatmul.mubr.f32.gmra.mrb[0].mxu0 %v3454
    %v3527 = vpop.f32.mrb[0].mxu0
    %v3528 = vadd.f32 0.0, %v3527
    %v3529 = vpop.f32.mrb[0].mxu0
    %v3530 = vadd.f32 0.0, %v3529
    %3531 = vdwg.mxu0
    %3532 = vmatprep.subr.mxu0 %v2344
    %3533 = vmatpush1.msra.mxu0 %v2343
    %3534 = vmatprep.subr.mxu0 %v2348
    %3535 = vmatpush1.msra.mxu0 %v2347
    %3536 = vmatprep.subr.mxu0 %v2352
    %3537 = vmatpush1.msra.mxu0 %v2351
    %3538 = vmatprep.subr.mxu0 %v2356
    %3539 = vmatpush1.msra.mxu0 %v2355
    %3540 = vmatprep.subr.mxu0 %v2360
    %3541 = vmatpush1.msra.mxu0 %v2359
    %3542 = vmatprep.subr.mxu0 %v2364
    %3543 = vmatpush1.msra.mxu0 %v2363
    %3544 = vmatprep.subr.mxu0 %v2368
    %3545 = vmatpush1.msra.mxu0 %v2367
    %3546 = vmatprep.subr.mxu0 %v2372
    %3547 = vmatpush1.msra.mxu0 %v2371
    %3548 = vmatprep.subr.mxu0 %v2376
    %3549 = vmatpush1.msra.mxu0 %v2375
    %3550 = vmatprep.subr.mxu0 %v2380
    %3551 = vmatpush1.msra.mxu0 %v2379
    %3552 = vmatprep.subr.mxu0 %v2384
    %3553 = vmatpush1.msra.mxu0 %v2383
    %3554 = vmatprep.subr.mxu0 %v2388
    %3555 = vmatpush1.msra.mxu0 %v2387
    %3556 = vmatprep.subr.mxu0 %v2392
    %3557 = vmatpush1.msra.mxu0 %v2391
    %3558 = vmatprep.subr.mxu0 %v2396
    %3559 = vmatpush1.msra.mxu0 %v2395
    %3560 = vmatprep.subr.mxu0 %v2400
    %3561 = vmatpush1.msra.mxu0 %v2399
    %3562 = vmatprep.subr.mxu0 %v2404
    %3563 = vmatpush1.msra.mxu0 %v2403
    %3564 = vmatprep.subr.mxu0 0.0
    %3565 = vmatpush1.msra.mxu0 0.0
    %3566 = vmatprep.subr.mxu0 0.0
    %3567 = vmatpush1.msra.mxu0 0.0
    %3568 = vmatprep.subr.mxu0 0.0
    %3569 = vmatpush1.msra.mxu0 0.0
    %3570 = vmatprep.subr.mxu0 0.0
    %3571 = vmatpush1.msra.mxu0 0.0
    %3572 = vmatprep.subr.mxu0 0.0
    %3573 = vmatpush1.msra.mxu0 0.0
    %3574 = vmatprep.subr.mxu0 0.0
    %3575 = vmatpush1.msra.mxu0 0.0
    %3576 = vmatprep.subr.mxu0 0.0
    %3577 = vmatpush1.msra.mxu0 0.0
    %3578 = vmatprep.subr.mxu0 0.0
    %3579 = vmatpush1.msra.mxu0 0.0
    %3580 = vmatprep.subr.mxu0 0.0
    %3581 = vmatpush1.msra.mxu0 0.0
    %3582 = vmatprep.subr.mxu0 0.0
    %3583 = vmatpush1.msra.mxu0 0.0
    %3584 = vmatprep.subr.mxu0 0.0
    %3585 = vmatpush1.msra.mxu0 0.0
    %3586 = vmatprep.subr.mxu0 0.0
    %3587 = vmatpush1.msra.mxu0 0.0
    %3588 = vmatprep.subr.mxu0 0.0
    %3589 = vmatpush1.msra.mxu0 0.0
    %3590 = vmatprep.subr.mxu0 0.0
    %3591 = vmatpush1.msra.mxu0 0.0
    %3592 = vmatprep.subr.mxu0 0.0
    %3593 = vmatpush1.msra.mxu0 0.0
    %3594 = vmatprep.subr.mxu0 0.0
    %3595 = vmatpush1.msra.mxu0 0.0
    %3596 = vmatprep.mubr.f32.mxu0 0.0
    %3597 = vmatmul.mubr.f32.gmra.mrb[0].mxu0 %v3454
    %v3598 = vpop.f32.mrb[0].mxu0
    %v3599 = vadd.f32 0.0, %v3598
    %v3600 = vpop.f32.mrb[0].mxu0
    %v3601 = vadd.f32 0.0, %v3600
    %3602 = vdwg.mxu0
    %v3603 = vadd.f32 %v3457, %v3528
    %v3604 = vadd.f32 %v3458, %v3530
    %v3605 = vadd.f32 %v3459, %v3599
    %v3606 = vadd.f32 %v3460, %v3601
    %v3607 = vxor.u32 %v3603, 2147483648
    %v3608 = vxor.u32 %v3604, 2147483648
    %v3609 = vxor.u32 %v3605, 2147483648
    %v3610 = vmul.f32 %v3607, 1.442695
    %v3611 = vpow.pop %v3610
    %v3612 = vmul.f32 %v3608, 1.442695
    %v3613 = vpow.pop %v3612
    %v3614 = vmul.f32 %v3609, 1.442695
    %v3615 = vpow.pop %v3614
    %v3616 = vadd.f32 %v3611, 1.0
    %v3617 = vadd.f32 %v3613, 1.0
    %v3618 = vadd.f32 %v3615, 1.0
    %v3619 = vrcp.pop %v3616
    %v3620 = vmul.f32 1.0, %v3619
    %v3621 = vrcp.pop %v3617
    %v3622 = vmul.f32 1.0, %v3621
    %v3623 = vrcp.pop %v3618
    %v3624 = vmul.f32 1.0, %v3623
    %v3625 = vtanh.pop %v3606
    %v3626 = vmul.f32 %v3622, %v3452
    %v3627 = vmul.f32 %v3620, %v3625
    %v3628 = vadd.f32 %v3626, %v3627
    %v3629 = vtanh.pop %v3628
    %v3630 = vmul.f32 %v3624, %v3629
    %s3631 = smul.addr %s1739, 8
    %s3632 = scalar_lea.vmem [#allocation3], %s3631
    %v3633 = vld [vmem:[%s3632] sm:$0xff]
    %v3634 = vld [vmem:[%s3632 + $0x8] sm:$0xff]
    %v3635 = vld [vmem:[%s3632 + $0x10] sm:$0xff]
    %v3636 = vld [vmem:[%s3632 + $0x18] sm:$0xff]
    %3637 = vmatprep.subr.mxu0 %v2342
    %3638 = vmatpush1.msra.mxu0 %v2341
    %3639 = vmatprep.subr.mxu0 %v2346
    %3640 = vmatpush1.msra.mxu0 %v2345
    %3641 = vmatprep.subr.mxu0 %v2350
    %3642 = vmatpush1.msra.mxu0 %v2349
    %3643 = vmatprep.subr.mxu0 %v2354
    %3644 = vmatpush1.msra.mxu0 %v2353
    %3645 = vmatprep.subr.mxu0 %v2358
    %3646 = vmatpush1.msra.mxu0 %v2357
    %3647 = vmatprep.subr.mxu0 %v2362
    %3648 = vmatpush1.msra.mxu0 %v2361
    %3649 = vmatprep.subr.mxu0 %v2366
    %3650 = vmatpush1.msra.mxu0 %v2365
    %3651 = vmatprep.subr.mxu0 %v2370
    %3652 = vmatpush1.msra.mxu0 %v2369
    %3653 = vmatprep.subr.mxu0 %v2374
    %3654 = vmatpush1.msra.mxu0 %v2373
    %3655 = vmatprep.subr.mxu0 %v2378
    %3656 = vmatpush1.msra.mxu0 %v2377
    %3657 = vmatprep.subr.mxu0 %v2382
    %3658 = vmatpush1.msra.mxu0 %v2381
    %3659 = vmatprep.subr.mxu0 %v2386
    %3660 = vmatpush1.msra.mxu0 %v2385
    %3661 = vmatprep.subr.mxu0 %v2390
    %3662 = vmatpush1.msra.mxu0 %v2389
    %3663 = vmatprep.subr.mxu0 %v2394
    %3664 = vmatpush1.msra.mxu0 %v2393
    %3665 = vmatprep.subr.mxu0 %v2398
    %3666 = vmatpush1.msra.mxu0 %v2397
    %3667 = vmatprep.subr.mxu0 %v2402
    %3668 = vmatpush1.msra.mxu0 %v2401
    %3669 = vmatprep.subr.mxu0 0.0
    %3670 = vmatpush1.msra.mxu0 0.0
    %3671 = vmatprep.subr.mxu0 0.0
    %3672 = vmatpush1.msra.mxu0 0.0
    %3673 = vmatprep.subr.mxu0 0.0
    %3674 = vmatpush1.msra.mxu0 0.0
    %3675 = vmatprep.subr.mxu0 0.0
    %3676 = vmatpush1.msra.mxu0 0.0
    %3677 = vmatprep.subr.mxu0 0.0
    %3678 = vmatpush1.msra.mxu0 0.0
    %3679 = vmatprep.subr.mxu0 0.0
    %3680 = vmatpush1.msra.mxu0 0.0
    %3681 = vmatprep.subr.mxu0 0.0
    %3682 = vmatpush1.msra.mxu0 0.0
    %3683 = vmatprep.subr.mxu0 0.0
    %3684 = vmatpush1.msra.mxu0 0.0
    %3685 = vmatprep.subr.mxu0 0.0
    %3686 = vmatpush1.msra.mxu0 0.0
    %3687 = vmatprep.subr.mxu0 0.0
    %3688 = vmatpush1.msra.mxu0 0.0
    %3689 = vmatprep.subr.mxu0 0.0
    %3690 = vmatpush1.msra.mxu0 0.0
    %3691 = vmatprep.subr.mxu0 0.0
    %3692 = vmatpush1.msra.mxu0 0.0
    %3693 = vmatprep.subr.mxu0 0.0
    %3694 = vmatpush1.msra.mxu0 0.0
    %3695 = vmatprep.subr.mxu0 0.0
    %3696 = vmatpush1.msra.mxu0 0.0
    %3697 = vmatprep.subr.mxu0 0.0
    %3698 = vmatpush1.msra.mxu0 0.0
    %3699 = vmatprep.subr.mxu0 0.0
    %3700 = vmatpush1.msra.mxu0 0.0
    %3701 = vmatprep.mubr.f32.mxu0 0.0
    %3702 = vmatmul.mubr.f32.gmra.mrb[0].mxu0 %v3630
    %v3703 = vpop.f32.mrb[0].mxu0
    %v3704 = vadd.f32 0.0, %v3703
    %v3705 = vpop.f32.mrb[0].mxu0
    %v3706 = vadd.f32 0.0, %v3705
    %3707 = vdwg.mxu0
    %3708 = vmatprep.subr.mxu0 %v2344
    %3709 = vmatpush1.msra.mxu0 %v2343
    %3710 = vmatprep.subr.mxu0 %v2348
    %3711 = vmatpush1.msra.mxu0 %v2347
    %3712 = vmatprep.subr.mxu0 %v2352
    %3713 = vmatpush1.msra.mxu0 %v2351
    %3714 = vmatprep.subr.mxu0 %v2356
    %3715 = vmatpush1.msra.mxu0 %v2355
    %3716 = vmatprep.subr.mxu0 %v2360
    %3717 = vmatpush1.msra.mxu0 %v2359
    %3718 = vmatprep.subr.mxu0 %v2364
    %3719 = vmatpush1.msra.mxu0 %v2363
    %3720 = vmatprep.subr.mxu0 %v2368
    %3721 = vmatpush1.msra.mxu0 %v2367
    %3722 = vmatprep.subr.mxu0 %v2372
    %3723 = vmatpush1.msra.mxu0 %v2371
    %3724 = vmatprep.subr.mxu0 %v2376
    %3725 = vmatpush1.msra.mxu0 %v2375
    %3726 = vmatprep.subr.mxu0 %v2380
    %3727 = vmatpush1.msra.mxu0 %v2379
    %3728 = vmatprep.subr.mxu0 %v2384
    %3729 = vmatpush1.msra.mxu0 %v2383
    %3730 = vmatprep.subr.mxu0 %v2388
    %3731 = vmatpush1.msra.mxu0 %v2387
    %3732 = vmatprep.subr.mxu0 %v2392
    %3733 = vmatpush1.msra.mxu0 %v2391
    %3734 = vmatprep.subr.mxu0 %v2396
    %3735 = vmatpush1.msra.mxu0 %v2395
    %3736 = vmatprep.subr.mxu0 %v2400
    %3737 = vmatpush1.msra.mxu0 %v2399
    %3738 = vmatprep.subr.mxu0 %v2404
    %3739 = vmatpush1.msra.mxu0 %v2403
    %3740 = vmatprep.subr.mxu0 0.0
    %3741 = vmatpush1.msra.mxu0 0.0
    %3742 = vmatprep.subr.mxu0 0.0
    %3743 = vmatpush1.msra.mxu0 0.0
    %3744 = vmatprep.subr.mxu0 0.0
    %3745 = vmatpush1.msra.mxu0 0.0
    %3746 = vmatprep.subr.mxu0 0.0
    %3747 = vmatpush1.msra.mxu0 0.0
    %3748 = vmatprep.subr.mxu0 0.0
    %3749 = vmatpush1.msra.mxu0 0.0
    %3750 = vmatprep.subr.mxu0 0.0
    %3751 = vmatpush1.msra.mxu0 0.0
    %3752 = vmatprep.subr.mxu0 0.0
    %3753 = vmatpush1.msra.mxu0 0.0
    %3754 = vmatprep.subr.mxu0 0.0
    %3755 = vmatpush1.msra.mxu0 0.0
    %3756 = vmatprep.subr.mxu0 0.0
    %3757 = vmatpush1.msra.mxu0 0.0
    %3758 = vmatprep.subr.mxu0 0.0
    %3759 = vmatpush1.msra.mxu0 0.0
    %3760 = vmatprep.subr.mxu0 0.0
    %3761 = vmatpush1.msra.mxu0 0.0
    %3762 = vmatprep.subr.mxu0 0.0
    %3763 = vmatpush1.msra.mxu0 0.0
    %3764 = vmatprep.subr.mxu0 0.0
    %3765 = vmatpush1.msra.mxu0 0.0
    %3766 = vmatprep.subr.mxu0 0.0
    %3767 = vmatpush1.msra.mxu0 0.0
    %3768 = vmatprep.subr.mxu0 0.0
    %3769 = vmatpush1.msra.mxu0 0.0
    %3770 = vmatprep.subr.mxu0 0.0
    %3771 = vmatpush1.msra.mxu0 0.0
    %3772 = vmatprep.mubr.f32.mxu0 0.0
    %3773 = vmatmul.mubr.f32.gmra.mrb[0].mxu0 %v3630
    %v3774 = vpop.f32.mrb[0].mxu0
    %v3775 = vadd.f32 0.0, %v3774
    %v3776 = vpop.f32.mrb[0].mxu0
    %v3777 = vadd.f32 0.0, %v3776
    %3778 = vdwg.mxu0
    %v3779 = vadd.f32 %v3633, %v3704
    %v3780 = vadd.f32 %v3634, %v3706
    %v3781 = vadd.f32 %v3635, %v3775
    %v3782 = vadd.f32 %v3636, %v3777
    %v3783 = vxor.u32 %v3779, 2147483648
    %v3784 = vxor.u32 %v3780, 2147483648
    %v3785 = vxor.u32 %v3781, 2147483648
    %v3786 = vmul.f32 %v3783, 1.442695
    %v3787 = vpow.pop %v3786
    %v3788 = vmul.f32 %v3784, 1.442695
    %v3789 = vpow.pop %v3788
    %v3790 = vmul.f32 %v3785, 1.442695
    %v3791 = vpow.pop %v3790
    %v3792 = vadd.f32 %v3787, 1.0
    %v3793 = vadd.f32 %v3789, 1.0
    %v3794 = vadd.f32 %v3791, 1.0
    %v3795 = vrcp.pop %v3792
    %v3796 = vmul.f32 1.0, %v3795
    %v3797 = vrcp.pop %v3793
    %v3798 = vmul.f32 1.0, %v3797
    %v3799 = vrcp.pop %v3794
    %v3800 = vmul.f32 1.0, %v3799
    %v3801 = vtanh.pop %v3782
    %v3802 = vmul.f32 %v3798, %v3628
    %v3803 = vmul.f32 %v3796, %v3801
    %v3804 = vadd.f32 %v3802, %v3803
    %v3805 = vtanh.pop %v3804
    %v3806 = vmul.f32 %v3800, %v3805
    %v3807 = vld [vmem:[%s4] sm:$0x1]
    %v3809 = vlaneseq
    %v3810 = vshrl.u32 %v3809, 7
    %v3811 = vsub.s32 0, %v3810
    %v3812 = vrot.slane %v3807, %v3811
    %v3814 = vmul.f32 %v3806, %v3812
    %3815 = vadd.xlane.f32.xlu0 %v3814
    %v3816 = vpop.xlane.xlu0 %3815
    %v3817 = vld [vmem:[#allocation4] sm:$0x1]
    %v3819 = vlaneseq
    %v3820 = vshrl.u32 %v3819, 7
    %v3821 = vsub.s32 0, %v3820
    %v3822 = vrot.slane %v3817, %v3821
    %v3824 = vadd.f32 %v3816, %v3822
    %vm3825 = vcmask 7168
    %3826 = vst.msk [vmem:[%s6] sm:$0xff] %vm3825, %v3824
    // Predicated region
    $region30: #{lstm_forward.1} parent=1 // pred_check
      _
    $region31: #{lstm_forward.1} parent=1 // pred_check_branch
      %3828 = sbr.rel (0) target = $region33
    $region32: #{lstm_forward.1} parent=1 // pred_region
      _
    $region33: #{lstm_forward.1} parent=1 // pred_fallthru
      _
    // Predicated region
    $region34: #{lstm_forward.1} parent=1 // pred_check
      _
    $region35: #{lstm_forward.1} parent=1 // pred_check_branch
      %3830 = sbr.rel (0) target = $region37
    $region36: #{lstm_forward.1} parent=1 // pred_region
      _
    $region37: #{lstm_forward.1} parent=1 // pred_fallthru
      _
    %3831 = vsyncpa [#allocation6], 1

</llo_original>
